<compile_context>
chip_gen: v6e
topology: v6e:2x2x1
jax: 0.10.0
libtpu: 0.0.40
codegen_flags: <defaults>
</compile_context>

<pallas_src>
import jax
import jax.numpy as jnp
from jax.experimental import pallas as pl
from jax.experimental.pallas import tpu as pltpu

# ----------------------------- configuration --------------------------------
LATENT = 32
OUT_NODE = 3            # out_channels_node
COORD = 3               # coordinates_dim
NODE_FEAT = 5           # node_features_dim
EDGE_FEAT = 1           # edge_features_dim
HIDDEN = 64             # mlp_hidden_size
NUM_GNN = 3             # num_gnn_layers
NUM_MIX = 8             # num_mixture_components
GAT_DIM = 2 * LATENT    # 64 : GATConv in/out channels
NEG_SLOPE = 0.2         # GATConv leaky-relu slope
OUT_PAD = 128           # lane-dense padded width of the fc_mu output (>= 24)
TILE_R = 128            # target-node row tile (multiple of 8; divides N_pad)
NEG_BIG = -1e30


def _silu(x):
    return x * jax.nn.sigmoid(x)


# ------------------------------- the kernel ---------------------------------
def gatgraph_kernel(
    # inputs
    xh_ref, ea_ref, bias_ref,
    w1_ref, b1_ref, w2_ref, b2_ref,                 # fused input MLP
    gat_w_ref, gat_adst_ref, gat_asrc_ref,          # per-layer GAT params
    gat_cedge_ref, gat_b_ref,
    wm1_ref, bm1_ref, wm2_ref, bm2_ref,             # fc_mu (padded to 128 cols)
    # output
    out_ref,
    # scratch (persistent across the grid)
    inp_sc, xs_sc, asrc_sc,
):
    f32 = jnp.float32
    l = pl.program_id(0)                   # GNN layer
    r = pl.program_id(1)                   # target-node row tile
    tile_r = ea_ref.shape[0]
    row0 = pl.multiple_of(r * tile_r, tile_r)

    # ---- once, at the first grid step: fused (block-diagonal) input MLPs ----
    @pl.when((l == 0) & (r == 0))
    def _input_mlp():
        t = jnp.dot(xh_ref[...], w1_ref[...], preferred_element_type=f32) + b1_ref[...]
        inp_sc[...] = (jnp.dot(_silu(t), w2_ref[...], preferred_element_type=f32)
                       + b2_ref[...])                       # = [x_l | h_l]

    # ---- once per layer: project all nodes + per-source attention row ------
    @pl.when(r == 0)
    def _project():
        xs = jnp.dot(inp_sc[...], gat_w_ref[...], preferred_element_type=f32)
        xs_sc[...] = xs                                     # (N_pad, 64)
        # alpha_src per source node, laid out as a (1, N_pad) lane row.
        # (one small contraction per layer; cheap relative to the N^2 work)
        asrc_sc[...] = jnp.einsum('hf,nf->hn', gat_asrc_ref[...], xs,
                                  preferred_element_type=f32)

    # ---- per (layer, row tile): masked softmax attention --------------------
    xs_all = xs_sc[...]                                     # (N_pad, 64)
    xs_rows = xs_sc[pl.ds(row0, tile_r), :]                 # (tile_r, 64)
    a_dst = jnp.dot(xs_rows, gat_adst_ref[...],
                    preferred_element_type=f32)             # (tile_r, 1)

    # logits[i, j] for edge j -> i ; additive -1e30 bias masks non-edges
    logits = (a_dst + asrc_sc[...]
              + ea_ref[...].astype(f32) * gat_cedge_ref[...]
              + bias_ref[...].astype(f32))                  # (tile_r, N_pad)
    logits = jnp.maximum(logits, NEG_SLOPE * logits)        # leaky relu (slope<1)

    m = jnp.max(logits, axis=-1, keepdims=True)
    p = jnp.exp(logits - m)                                 # masked entries -> 0
    alpha = p * pl.reciprocal(jnp.sum(p, axis=-1, keepdims=True), approx=True)

    # aggregate messages and write the next layer's input rows
    new_rows = jnp.dot(alpha, xs_all, preferred_element_type=f32) + gat_b_ref[...]
    inp_sc[pl.ds(row0, tile_r), :] = new_rows               # safe: inp_sc was
                                                            # fully read at r==0

    # ---- last layer: fc_mu head for this row tile (lane-dense output) ------
    @pl.when(l == pl.num_programs(0) - 1)
    def _head():
        t = jnp.dot(new_rows, wm1_ref[...], preferred_element_type=f32) + bm1_ref[...]
        out_ref[...] = (jnp.dot(_silu(t), wm2_ref[...], preferred_element_type=f32)
                        + bm2_ref[...])


# --------------------------- wrapper-side packing ----------------------------
def _pack_params(p):
    """Fuse / pad the module parameters for the kernel."""
    f32 = jnp.float32
    nin = COORD + NODE_FEAT
    # block-diagonal fused input MLP:  [x | h] @ W1 -> SiLU -> @ W2  = [x_l|h_l]
    w1 = jnp.zeros((nin, 2 * HIDDEN), f32)
    w1 = w1.at[:COORD, :HIDDEN].set(p['w1x'])
    w1 = w1.at[COORD:, HIDDEN:].set(p['w1h'])
    b1 = jnp.concatenate([p['b1x'], p['b1h']], axis=-1)                 # (1,128)
    w2 = jnp.zeros((2 * HIDDEN, GAT_DIM), f32)
    w2 = w2.at[:HIDDEN, :LATENT].set(p['w2x'])
    w2 = w2.at[HIDDEN:, LATENT:].set(p['w2h'])
    b2 = jnp.concatenate([p['b2x'], p['b2h']], axis=-1)                 # (1,64)
    # lane-dense (padded) fc_mu output projection
    wm2 = jnp.zeros((HIDDEN, OUT_PAD), f32).at[:, :NUM_MIX * OUT_NODE].set(p['wm2'])
    bm2 = jnp.zeros((1, OUT_PAD), f32).at[:, :NUM_MIX * OUT_NODE].set(p['bm2'])
    return dict(
        w1=w1, b1=b1, w2=w2, b2=b2,
        gat_w=p['gat_w'],                                               # (L,64,64)
        gat_adst=jnp.transpose(p['gat_adst'], (0, 2, 1)),               # (L,64,1)
        gat_asrc=p['gat_asrc'],                                         # (L,1,64)
        # lin_edge (edge_dim=1) folds to a scalar per layer
        gat_cedge=jnp.sum(p['gat_wedge'] * p['gat_aedge'],
                          axis=-1, keepdims=True),                      # (L,1,1)
        gat_b=p['gat_b'],                                               # (L,1,64)
        wm1=p['wm1'], bm1=p['bm1'], wm2=wm2, bm2=bm2,
    )


def _dense_graph(n_pad, edge_index, edge_attr):
    """Dense edge-attr matrix and additive mask bias (rows=target, cols=source),
    with PyG-style mean-filled self loops.  Padded nodes only get a self loop.
    TODO(synk): dense form collapses duplicate (target, source) edges that PyG
    would keep as separate softmax entries."""
    src = edge_index[0]
    dst = edge_index[1]
    ea_vals = edge_attr[:, 0].astype(jnp.float32)

    sums = jnp.zeros((n_pad,), jnp.float32).at[dst].add(ea_vals)
    cnts = jnp.zeros((n_pad,), jnp.float32).at[dst].add(jnp.ones_like(ea_vals))
    loop_attr = jnp.where(cnts > 0, sums / jnp.maximum(cnts, 1.0), 0.0)

    diag = jnp.arange(n_pad)
    ea = jnp.zeros((n_pad, n_pad), jnp.float32).at[dst, src].set(ea_vals)
    ea = ea.at[diag, diag].set(loop_attr)
    bias = jnp.full((n_pad, n_pad), NEG_BIG, jnp.float32).at[dst, src].set(0.0)
    bias = bias.at[diag, diag].set(0.0)      # self loops (also on padded rows)
    return ea, bias


# ------------------------------ JAX wrapper ----------------------------------
def gatgraph_forward(x, h, edge_attr, edge_index, params, *, tile_r=TILE_R):
    """x:(N,3) h:(N,5) edge_attr:(E,1) edge_index:(2,E) -> mu:(N, 8, 3)."""
    n = x.shape[0]
    n_pad = ((n + tile_r - 1) // tile_r) * tile_r
    rt = n_pad // tile_r

    ea32, bias32 = _dense_graph(n_pad, edge_index, edge_attr)
    ea = ea32.astype(jnp.bfloat16)        # O(N^2) operands in bf16 (half DMA)
    bias = bias32.astype(jnp.bfloat16)

    xh = jnp.zeros((n_pad, COORD + NODE_FEAT), jnp.float32)
    xh = xh.at[:n, :COORD].set(x.astype(jnp.float32))
    xh = xh.at[:n, COORD:].set(h.astype(jnp.float32))

    pk = _pack_params(params)

    full = lambda shape: pl.BlockSpec(shape, lambda l, r: (0,) * len(shape))
    per_layer = lambda s1, s2: pl.BlockSpec((None, s1, s2), lambda l, r: (l, 0, 0))
    row_slab = pl.BlockSpec((tile_r, n_pad), lambda l, r: (r, 0))

    in_specs = [
        full((n_pad, COORD + NODE_FEAT)),        # xh
        row_slab,                                # ea   (bf16 row slab)
        row_slab,                                # bias (bf16 row slab)
        full((COORD + NODE_FEAT, 2 * HIDDEN)),   # w1
        full((1, 2 * HIDDEN)),                   # b1
        full((2 * HIDDEN, GAT_DIM)),             # w2
        full((1, GAT_DIM)),                      # b2
        per_layer(GAT_DIM, GAT_DIM),             # gat_w
        per_layer(GAT_DIM, 1),                   # gat_adst
        per_layer(1, GAT_DIM),                   # gat_asrc
        per_layer(1, 1),                         # gat_cedge
        per_layer(1, GAT_DIM),                   # gat_b
        full((GAT_DIM, HIDDEN)),                 # wm1
        full((1, HIDDEN)),                       # bm1
        full((HIDDEN, OUT_PAD)),                 # wm2 (padded)
        full((1, OUT_PAD)),                      # bm2 (padded)
    ]

    mu_pad = pl.pallas_call(
        gatgraph_kernel,
        grid=(NUM_GNN, rt),
        in_specs=in_specs,
        out_specs=pl.BlockSpec((tile_r, OUT_PAD), lambda l, r: (r, 0)),
        out_shape=jax.ShapeDtypeStruct((n_pad, OUT_PAD), jnp.float32),
        scratch_shapes=[
            pltpu.VMEM((n_pad, GAT_DIM), jnp.float32),   # inp  (layer carry)
            pltpu.VMEM((n_pad, GAT_DIM), jnp.float32),   # xs   (projected feats)
            pltpu.VMEM((1, n_pad), jnp.float32),         # per-source attn row
        ],
        compiler_params=pltpu.CompilerParams(
            # layer axis is a true sequential dependence; row axis is coupled
            # through the VMEM scratch carries -> both "arbitrary".
            dimension_semantics=("arbitrary", "arbitrary")),
    )(xh, ea, bias,
      pk['w1'], pk['b1'], pk['w2'], pk['b2'],
      pk['gat_w'], pk['gat_adst'], pk['gat_asrc'], pk['gat_cedge'], pk['gat_b'],
      pk['wm1'], pk['bm1'], pk['wm2'], pk['bm2'])

    mu = mu_pad[:n, :NUM_MIX * OUT_NODE].reshape(n, NUM_MIX, OUT_NODE)
    # non-stochastic branch: return mu.squeeze(1) (no-op since NUM_MIX=8 > 1)
    return mu


# ---------------------------- parameter init ---------------------------------
def init_params(key):
    ks = jax.random.split(key, 20)

    def lin_w(k, fin, fout):
        s = 1.0 / jnp.sqrt(jnp.float32(fin))
        return jax.random.uniform(k, (fin, fout), jnp.float32, -s, s)

    def lin_b(k, fin, fout):
        s = 1.0 / jnp.sqrt(jnp.float32(fin))
        return jax.random.uniform(k, (1, fout), jnp.float32, -s, s)

    p = {}
    # mlp_x : Linear(3,64), Linear(64,32)
    p['w1x'] = lin_w(ks[0], COORD, HIDDEN);  p['b1x'] = lin_b(ks[1], COORD, HIDDEN)
    p['w2x'] = lin_w(ks[2], HIDDEN, LATENT); p['b2x'] = lin_b(ks[3], HIDDEN, LATENT)
    # mlp_h : Linear(5,64), Linear(64,32)
    p['w1h'] = lin_w(ks[4], NODE_FEAT, HIDDEN); p['b1h'] = lin_b(ks[5], NODE_FEAT, HIDDEN)
    p['w2h'] = lin_w(ks[6], HIDDEN, LATENT);    p['b2h'] = lin_b(ks[7], HIDDEN, LATENT)
    # GAT layers (stacked): lin (no bias), att_src/dst/edge, lin_edge, bias
    p['gat_w'] = 0.1 * jax.random.normal(ks[8], (NUM_GNN, GAT_DIM, GAT_DIM), jnp.float32)
    p['gat_asrc'] = 0.1 * jax.random.normal(ks[9], (NUM_GNN, 1, GAT_DIM), jnp.float32)
    p['gat_adst'] = 0.1 * jax.random.normal(ks[10], (NUM_GNN, 1, GAT_DIM), jnp.float32)
    p['gat_aedge'] = 0.1 * jax.random.normal(ks[11], (NUM_GNN, 1, GAT_DIM), jnp.float32)
    p['gat_wedge'] = 0.1 * jax.random.normal(ks[12], (NUM_GNN, 1, GAT_DIM), jnp.float32)
    p['gat_b'] = 0.01 * jax.random.normal(ks[13], (NUM_GNN, 1, GAT_DIM), jnp.float32)
    # fc_mu : Linear(64,64), Linear(64, 8*3)
    p['wm1'] = lin_w(ks[14], GAT_DIM, HIDDEN); p['bm1'] = lin_b(ks[15], GAT_DIM, HIDDEN)
    p['wm2'] = lin_w(ks[16], HIDDEN, NUM_MIX * OUT_NODE)
    p['bm2'] = lin_b(ks[17], HIDDEN, NUM_MIX * OUT_NODE)
    return p


# ---------------------- pure-JAX reference (f32, dense) -----------------------
def reference_forward(x, h, ea, bias, p):
    x_l = _silu(x @ p['w1x'] + p['b1x']) @ p['w2x'] + p['b2x']
    h_l = _silu(h @ p['w1h'] + p['b1h']) @ p['w2h'] + p['b2h']
    inp = jnp.concatenate([x_l, h_l], axis=-1)
    for l in range(NUM_GNN):
        xs = inp @ p['gat_w'][l]
        a_dst = xs @ p['gat_adst'][l].T                      # (n,1)
        a_src = xs @ p['gat_asrc'][l].T                      # (n,1)
        c_edge = jnp.sum(p['gat_wedge'][l] * p['gat_aedge'][l])
        logits = a_dst + a_src.T + ea * c_edge + bias
        logits = jnp.where(logits >= 0, logits, NEG_SLOPE * logits)
        alpha = jax.nn.softmax(logits, axis=-1)
        inp = alpha @ xs + p['gat_b'][l]
    mu = _silu(inp @ p['wm1'] + p['bm1']) @ p['wm2'] + p['bm2']
    return mu.reshape(-1, NUM_MIX, OUT_NODE)


# ----------------------------------- main -------------------------------------
if __name__ == "__main__":
    key = jax.random.PRNGKey(0)
    kp, kx, kh, ke = jax.random.split(key, 4)

    n = 8  # nodes
    params = init_params(kp)
    x = jax.random.normal(kx, (n, COORD), jnp.float32)
    h = jax.random.normal(kh, (n, NODE_FEAT), jnp.float32)

    # bidirectional ring graph, no self loops (self loops added in the wrapper)
    idx = jnp.arange(n)
    src = jnp.concatenate([idx, (idx + 1) % n])
    dst = jnp.concatenate([(idx + 1) % n, idx])
    edge_index = jnp.stack([src, dst]).astype(jnp.int32)     # (2, 16)
    edge_attr = jax.random.normal(ke, (edge_index.shape[1], EDGE_FEAT), jnp.float32)

    fwd = jax.jit(gatgraph_forward)
    mu = jax.block_until_ready(fwd(x, h, edge_attr, edge_index, params))
    assert mu.shape == (n, NUM_MIX, OUT_NODE)
    assert bool(jnp.all(jnp.isfinite(mu)))

    # tolerance check vs a pure-JAX f32 dense reference (loose: kernel uses
    # bf16 structural matrices and the approx EUP reciprocal in the softmax)
    ea_r, bias_r = _dense_graph(n, edge_index, edge_attr)
    ref = reference_forward(x, h, ea_r, bias_r, params)
    err = float(jnp.max(jnp.abs(mu - ref)))
    assert bool(jnp.allclose(mu, ref, rtol=5e-2, atol=5e-2)), f"max |err| = {err}"

    print("KERNEL_OK")
</pallas_src>

<mosaic_0001>
module attributes {stable_mosaic.version = 11 : i64} {
  func.func private @main(%arg0: i32) attributes {dimension_semantics = [#tpu.dimension_semantics<core_parallel>], iteration_bounds = array<i64: 2>, tpu.core_type = #tpu.core_type<sc_scalar_subcore>, window_params = []} {
    return
  }
}

module attributes {stable_mosaic.version = 11 : i64} {
  func.func private @main(%arg0: i32) attributes {dimension_semantics = [#tpu.dimension_semantics<core_parallel>], iteration_bounds = array<i64: 2>, tpu.core_type = #tpu.core_type<sc_scalar_subcore>, window_params = []} {
    return
  }
}

module attributes {stable_mosaic.version = 11 : i64} {
  func.func @gatgraph_kernel(%arg0: i32, %arg1: i32, %arg2: memref<128x8xf32, #tpu.memory_space<vmem>>, %arg3: memref<128x128xbf16, #tpu.memory_space<vmem>>, %arg4: memref<128x128xbf16, #tpu.memory_space<vmem>>, %arg5: memref<8x128xf32, #tpu.memory_space<vmem>>, %arg6: memref<1x128xf32, #tpu.memory_space<vmem>>, %arg7: memref<128x64xf32, #tpu.memory_space<vmem>>, %arg8: memref<1x64xf32, #tpu.memory_space<vmem>>, %arg9: memref<1x64x64xf32, #tpu.memory_space<vmem>>, %arg10: memref<1x64x1xf32, #tpu.memory_space<vmem>>, %arg11: memref<1x1x64xf32, #tpu.memory_space<vmem>>, %arg12: memref<1x1x1xf32, #tpu.memory_space<vmem>>, %arg13: memref<1x1x64xf32, #tpu.memory_space<vmem>>, %arg14: memref<64x64xf32, #tpu.memory_space<vmem>>, %arg15: memref<1x64xf32, #tpu.memory_space<vmem>>, %arg16: memref<64x128xf32, #tpu.memory_space<vmem>>, %arg17: memref<1x128xf32, #tpu.memory_space<vmem>>, %arg18: memref<128x128xf32, #tpu.memory_space<vmem>>, %arg19: memref<128x64xf32, #tpu.memory_space<vmem>>, %arg20: memref<128x64xf32, #tpu.memory_space<vmem>>, %arg21: memref<1x128xf32, #tpu.memory_space<vmem>>) attributes {dimension_semantics = [#tpu.dimension_semantics<arbitrary>, #tpu.dimension_semantics<arbitrary>], iteration_bounds = array<i64: 3, 1>, scalar_prefetch = 0 : i64, scratch_operands = 3 : i64, tpu.core_type = #tpu.core_type<tc>, window_params = [{pipeline_mode = #tpu.pipeline_mode<synchronous>, transform_indices = @transform_0, window_bounds = array<i64: 128, 8>}, {transform_indices = @transform_1, window_bounds = array<i64: 128, 128>}, {transform_indices = @transform_2, window_bounds = array<i64: 128, 128>}, {pipeline_mode = #tpu.pipeline_mode<synchronous>, transform_indices = @transform_3, window_bounds = array<i64: 8, 128>}, {pipeline_mode = #tpu.pipeline_mode<synchronous>, transform_indices = @transform_4, window_bounds = array<i64: 1, 128>}, {pipeline_mode = #tpu.pipeline_mode<synchronous>, transform_indices = @transform_5, window_bounds = array<i64: 128, 64>}, {pipeline_mode = #tpu.pipeline_mode<synchronous>, transform_indices = @transform_6, window_bounds = array<i64: 1, 64>}, {transform_indices = @transform_7, window_bounds = array<i64: 1, 64, 64>}, {transform_indices = @transform_8, window_bounds = array<i64: 1, 64, 1>}, {transform_indices = @transform_9, window_bounds = array<i64: 1, 1, 64>}, {transform_indices = @transform_10, window_bounds = array<i64: 1, 1, 1>}, {transform_indices = @transform_11, window_bounds = array<i64: 1, 1, 64>}, {pipeline_mode = #tpu.pipeline_mode<synchronous>, transform_indices = @transform_12, window_bounds = array<i64: 64, 64>}, {pipeline_mode = #tpu.pipeline_mode<synchronous>, transform_indices = @transform_13, window_bounds = array<i64: 1, 64>}, {pipeline_mode = #tpu.pipeline_mode<synchronous>, transform_indices = @transform_14, window_bounds = array<i64: 64, 128>}, {pipeline_mode = #tpu.pipeline_mode<synchronous>, transform_indices = @transform_15, window_bounds = array<i64: 1, 128>}, {transform_indices = @transform_16, window_bounds = array<i64: 128, 128>}]} {
    %c128_i32 = arith.constant 128 : i32
    %0 = arith.muli %arg1, %c128_i32 : i32
    %1 = tpu.assume_multiple %0, 128 : i32
    %c0_i32 = arith.constant 0 : i32
    %2 = arith.cmpi eq, %arg0, %c0_i32 : i32
    %c0_i32_0 = arith.constant 0 : i32
    %3 = arith.cmpi eq, %arg1, %c0_i32_0 : i32
    %4 = arith.andi %2, %3 : i1
    %5 = arith.extui %4 : i1 to i32
    %c0_i32_1 = arith.constant 0 : i32
    %6 = arith.cmpi ne, %5, %c0_i32_1 : i32
    scf.if %6 {
      %c0_27 = arith.constant 0 : index
      %c0_28 = arith.constant 0 : index
      %53 = vector.load %arg2[%c0_27, %c0_28] : memref<128x8xf32, #tpu.memory_space<vmem>>, vector<128x8xf32>
      %c0_29 = arith.constant 0 : index
      %c0_30 = arith.constant 0 : index
      %54 = vector.load %arg5[%c0_29, %c0_30] : memref<8x128xf32, #tpu.memory_space<vmem>>, vector<8x128xf32>
      %cst_31 = arith.constant dense<0.000000e+00> : vector<128x128xf32>
      %55 = tpu.matmul %53, %54, %cst_31 {dimension_numbers = #tpu.dot_dimension_numbers<[1], [0], [0], [1], [0, 0, 1, 1], [], []>} : vector<128x8xf32>, vector<8x128xf32>, vector<128x128xf32> -> vector<128x128xf32>
      %c0_32 = arith.constant 0 : index
      %c0_33 = arith.constant 0 : index
      %56 = vector.load %arg6[%c0_32, %c0_33] : memref<1x128xf32, #tpu.memory_space<vmem>>, vector<1x128xf32>
      %57 = vector.broadcast %56 : vector<1x128xf32> to vector<128x128xf32>
      %58 = arith.addf %55, %57 : vector<128x128xf32>
      %59 = arith.negf %58 : vector<128x128xf32>
      %60 = math.exp %59 : vector<128x128xf32>
      %cst_34 = arith.constant 1.000000e+00 : f32
      %61 = vector.broadcast %cst_34 : f32 to vector<128x128xf32>
      %62 = arith.addf %61, %60 : vector<128x128xf32>
      %63 = arith.divf %61, %62 : vector<128x128xf32>
      %64 = arith.mulf %58, %63 : vector<128x128xf32>
      %c0_35 = arith.constant 0 : index
      %c0_36 = arith.constant 0 : index
      %65 = vector.load %arg7[%c0_35, %c0_36] : memref<128x64xf32, #tpu.memory_space<vmem>>, vector<128x64xf32>
      %cst_37 = arith.constant dense<0.000000e+00> : vector<128x64xf32>
      %66 = tpu.matmul %64, %65, %cst_37 {dimension_numbers = #tpu.dot_dimension_numbers<[1], [0], [0], [1], [0, 0, 1, 1], [], []>} : vector<128x128xf32>, vector<128x64xf32>, vector<128x64xf32> -> vector<128x64xf32>
      %c0_38 = arith.constant 0 : index
      %c0_39 = arith.constant 0 : index
      %67 = vector.load %arg8[%c0_38, %c0_39] : memref<1x64xf32, #tpu.memory_space<vmem>>, vector<1x64xf32>
      %68 = vector.broadcast %67 : vector<1x64xf32> to vector<128x64xf32>
      %69 = arith.addf %66, %68 : vector<128x64xf32>
      %c0_40 = arith.constant 0 : index
      %c0_41 = arith.constant 0 : index
      %70 = vector.load %arg19[%c0_40, %c0_41] : memref<128x64xf32, #tpu.memory_space<vmem>>, vector<128x64xf32>
      tpu.vector_store %arg19[%c0_40, %c0_41], %69 {strides = array<i32>} : memref<128x64xf32, #tpu.memory_space<vmem>>, vector<128x64xf32>,
    } else {
    }
    %c0_i32_2 = arith.constant 0 : i32
    %7 = arith.cmpi eq, %arg1, %c0_i32_2 : i32
    %8 = arith.extui %7 : i1 to i32
    %c0_i32_3 = arith.constant 0 : i32
    %9 = arith.cmpi ne, %8, %c0_i32_3 : i32
    scf.if %9 {
      %c0_27 = arith.constant 0 : index
      %c0_28 = arith.constant 0 : index
      %53 = vector.load %arg19[%c0_27, %c0_28] : memref<128x64xf32, #tpu.memory_space<vmem>>, vector<128x64xf32>
      %c0_29 = arith.constant 0 : index
      %c0_30 = arith.constant 0 : index
      %c0_31 = arith.constant 0 : index
      %54 = vector.load %arg9[%c0_29, %c0_30, %c0_31] : memref<1x64x64xf32, #tpu.memory_space<vmem>>, vector<1x64x64xf32>
      %55 = vector.shape_cast %54 : vector<1x64x64xf32> to vector<64x64xf32>
      %cst_32 = arith.constant dense<0.000000e+00> : vector<128x64xf32>
      %56 = tpu.matmul %53, %55, %cst_32 {dimension_numbers = #tpu.dot_dimension_numbers<[1], [0], [0], [1], [0, 0, 1, 1], [], []>} : vector<128x64xf32>, vector<64x64xf32>, vector<128x64xf32> -> vector<128x64xf32>
      %c0_33 = arith.constant 0 : index
      %c0_34 = arith.constant 0 : index
      %57 = vector.load %arg20[%c0_33, %c0_34] : memref<128x64xf32, #tpu.memory_space<vmem>>, vector<128x64xf32>
      tpu.vector_store %arg20[%c0_33, %c0_34], %56 {strides = array<i32>} : memref<128x64xf32, #tpu.memory_space<vmem>>, vector<128x64xf32>,
      %c0_35 = arith.constant 0 : index
      %c0_36 = arith.constant 0 : index
      %c0_37 = arith.constant 0 : index
      %58 = vector.load %arg11[%c0_35, %c0_36, %c0_37] : memref<1x1x64xf32, #tpu.memory_space<vmem>>, vector<1x1x64xf32>
      %59 = vector.shape_cast %58 : vector<1x1x64xf32> to vector<1x64xf32>
      "tpu.trace_start"() <{level = 10 : i32, message = "hf,nf->hn"}> : () -> ()
      %cst_38 = arith.constant dense<0.000000e+00> : vector<1x128xf32>
      %60 = tpu.matmul %59, %56, %cst_38 {dimension_numbers = #tpu.dot_dimension_numbers<[1], [1], [0], [0], [0, 0, 1, 0], [], []>} : vector<1x64xf32>, vector<128x64xf32>, vector<1x128xf32> -> vector<1x128xf32>
      "tpu.trace_stop"() : () -> ()
      %c0_39 = arith.constant 0 : index
      %c0_40 = arith.constant 0 : index
      %61 = vector.load %arg21[%c0_39, %c0_40] : memref<1x128xf32, #tpu.memory_space<vmem>>, vector<1x128xf32>
      tpu.vector_store %arg21[%c0_39, %c0_40], %60 {strides = array<i32>} : memref<1x128xf32, #tpu.memory_space<vmem>>, vector<1x128xf32>,
    } else {
    }
    %c0 = arith.constant 0 : index
    %c0_4 = arith.constant 0 : index
    %10 = vector.load %arg20[%c0, %c0_4] : memref<128x64xf32, #tpu.memory_space<vmem>>, vector<128x64xf32>
    %11 = arith.index_cast %1 : i32 to index
    %c0_5 = arith.constant 0 : index
    %12 = vector.load %arg20[%11, %c0_5] : memref<128x64xf32, #tpu.memory_space<vmem>>, vector<128x64xf32>
    %c0_6 = arith.constant 0 : index
    %c0_7 = arith.constant 0 : index
    %c0_8 = arith.constant 0 : index
    %13 = vector.load %arg10[%c0_6, %c0_7, %c0_8] : memref<1x64x1xf32, #tpu.memory_space<vmem>>, vector<1x64x1xf32>
    %14 = vector.shape_cast %13 : vector<1x64x1xf32> to vector<64x1xf32>
    %cst = arith.constant dense<0.000000e+00> : vector<128x1xf32>
    %15 = tpu.matmul %12, %14, %cst {dimension_numbers = #tpu.dot_dimension_numbers<[1], [0], [0], [1], [0, 0, 1, 1], [], []>} : vector<128x64xf32>, vector<64x1xf32>, vector<128x1xf32> -> vector<128x1xf32>
    %c0_9 = arith.constant 0 : index
    %c0_10 = arith.constant 0 : index
    %16 = vector.load %arg21[%c0_9, %c0_10] : memref<1x128xf32, #tpu.memory_space<vmem>>, vector<1x128xf32>
    %17 = vector.broadcast %15 : vector<128x1xf32> to vector<128x128xf32>
    %18 = vector.broadcast %16 : vector<1x128xf32> to vector<128x128xf32>
    %19 = arith.addf %17, %18 : vector<128x128xf32>
    %c0_11 = arith.constant 0 : index
    %c0_12 = arith.constant 0 : index
    %20 = vector.load %arg3[%c0_11, %c0_12] : memref<128x128xbf16, #tpu.memory_space<vmem>>, vector<128x128xbf16>
    %21 = arith.extf %20 : vector<128x128xbf16> to vector<128x128xf32>
    %c0_13 = arith.constant 0 : index
    %c0_14 = arith.constant 0 : index
    %c0_15 = arith.constant 0 : index
    %22 = vector.load %arg12[%c0_13, %c0_14, %c0_15] : memref<1x1x1xf32, #tpu.memory_space<vmem>>, vector<1x1x1xf32>
    %23 = vector.shape_cast %22 : vector<1x1x1xf32> to vector<1x1xf32>
    %24 = vector.broadcast %23 : vector<1x1xf32> to vector<128x128xf32>
    %25 = arith.mulf %21, %24 : vector<128x128xf32>
    %26 = arith.addf %19, %25 : vector<128x128xf32>
    %c0_16 = arith.constant 0 : index
    %c0_17 = arith.constant 0 : index
    %27 = vector.load %arg4[%c0_16, %c0_17] : memref<128x128xbf16, #tpu.memory_space<vmem>>, vector<128x128xbf16>
    %28 = arith.extf %27 : vector<128x128xbf16> to vector<128x128xf32>
    %29 = arith.addf %26, %28 : vector<128x128xf32>
    %cst_18 = arith.constant 2.000000e-01 : f32
    %30 = vector.broadcast %cst_18 : f32 to vector<128x128xf32>
    %31 = arith.mulf %30, %29 : vector<128x128xf32>
    %32 = arith.maximumf %29, %31 : vector<128x128xf32>
    %cst_19 = arith.constant dense<0xFF800000> : vector<128xf32>
    %33 = vector.multi_reduction <maximumf>, %32, %cst_19 [1] : vector<128x128xf32> to vector<128xf32>
    %34 = vector.shape_cast %33 : vector<128xf32> to vector<128x1xf32>
    %35 = vector.broadcast %34 : vector<128x1xf32> to vector<128x128xf32>
    %36 = arith.subf %32, %35 : vector<128x128xf32>
    %37 = math.exp %36 : vector<128x128xf32>
    %cst_20 = arith.constant dense<0.000000e+00> : vector<128xf32>
    %38 = vector.multi_reduction <add>, %37, %cst_20 [1] : vector<128x128xf32> to vector<128xf32>
    %39 = vector.shape_cast %38 : vector<128xf32> to vector<128x1xf32>
    %40 = tpu.reciprocal %39 {approx = true} : vector<128x1xf32> -> vector<128x1xf32>
    %41 = vector.broadcast %40 : vector<128x1xf32> to vector<128x128xf32>
    %42 = arith.mulf %37, %41 : vector<128x128xf32>
    %cst_21 = arith.constant dense<0.000000e+00> : vector<128x64xf32>
    %43 = tpu.matmul %42, %10, %cst_21 {dimension_numbers = #tpu.dot_dimension_numbers<[1], [0], [0], [1], [0, 0, 1, 1], [], []>} : vector<128x128xf32>, vector<128x64xf32>, vector<128x64xf32> -> vector<128x64xf32>
    %c0_22 = arith.constant 0 : index
    %c0_23 = arith.constant 0 : index
    %c0_24 = arith.constant 0 : index
    %44 = vector.load %arg13[%c0_22, %c0_23, %c0_24] : memref<1x1x64xf32, #tpu.memory_space<vmem>>, vector<1x1x64xf32>
    %45 = vector.shape_cast %44 : vector<1x1x64xf32> to vector<1x64xf32>
    %46 = vector.broadcast %45 : vector<1x64xf32> to vector<128x64xf32>
    %47 = arith.addf %43, %46 : vector<128x64xf32>
    %48 = arith.index_cast %1 : i32 to index
    %c0_25 = arith.constant 0 : index
    %49 = vector.load %arg19[%48, %c0_25] : memref<128x64xf32, #tpu.memory_space<vmem>>, vector<128x64xf32>
    tpu.vector_store %arg19[%48, %c0_25], %47 {strides = array<i32>} : memref<128x64xf32, #tpu.memory_space<vmem>>, vector<128x64xf32>,
    %c2_i32 = arith.constant 2 : i32
    %50 = arith.cmpi eq, %arg0, %c2_i32 : i32
    %51 = arith.extui %50 : i1 to i32
    %c0_i32_26 = arith.constant 0 : i32
    %52 = arith.cmpi ne, %51, %c0_i32_26 : i32
    scf.if %52 {
      %c0_27 = arith.constant 0 : index
      %c0_28 = arith.constant 0 : index
      %53 = vector.load %arg14[%c0_27, %c0_28] : memref<64x64xf32, #tpu.memory_space<vmem>>, vector<64x64xf32>
      %cst_29 = arith.constant dense<0.000000e+00> : vector<128x64xf32>
      %54 = tpu.matmul %47, %53, %cst_29 {dimension_numbers = #tpu.dot_dimension_numbers<[1], [0], [0], [1], [0, 0, 1, 1], [], []>} : vector<128x64xf32>, vector<64x64xf32>, vector<128x64xf32> -> vector<128x64xf32>
      %c0_30 = arith.constant 0 : index
      %c0_31 = arith.constant 0 : index
      %55 = vector.load %arg15[%c0_30, %c0_31] : memref<1x64xf32, #tpu.memory_space<vmem>>, vector<1x64xf32>
      %56 = vector.broadcast %55 : vector<1x64xf32> to vector<128x64xf32>
      %57 = arith.addf %54, %56 : vector<128x64xf32>
      %58 = arith.negf %57 : vector<128x64xf32>
      %59 = math.exp %58 : vector<128x64xf32>
      %cst_32 = arith.constant 1.000000e+00 : f32
      %60 = vector.broadcast %cst_32 : f32 to vector<128x64xf32>
      %61 = arith.addf %60, %59 : vector<128x64xf32>
      %62 = arith.divf %60, %61 : vector<128x64xf32>
      %63 = arith.mulf %57, %62 : vector<128x64xf32>
      %c0_33 = arith.constant 0 : index
      %c0_34 = arith.constant 0 : index
      %64 = vector.load %arg16[%c0_33, %c0_34] : memref<64x128xf32, #tpu.memory_space<vmem>>, vector<64x128xf32>
      %cst_35 = arith.constant dense<0.000000e+00> : vector<128x128xf32>
      %65 = tpu.matmul %63, %64, %cst_35 {dimension_numbers = #tpu.dot_dimension_numbers<[1], [0], [0], [1], [0, 0, 1, 1], [], []>} : vector<128x64xf32>, vector<64x128xf32>, vector<128x128xf32> -> vector<128x128xf32>
      %c0_36 = arith.constant 0 : index
      %c0_37 = arith.constant 0 : index
      %66 = vector.load %arg17[%c0_36, %c0_37] : memref<1x128xf32, #tpu.memory_space<vmem>>, vector<1x128xf32>
      %67 = vector.broadcast %66 : vector<1x128xf32> to vector<128x128xf32>
      %68 = arith.addf %65, %67 : vector<128x128xf32>
      %c0_38 = arith.constant 0 : index
      %c0_39 = arith.constant 0 : index
      %69 = vector.load %arg18[%c0_38, %c0_39] : memref<128x128xf32, #tpu.memory_space<vmem>>, vector<128x128xf32>
      tpu.vector_store %arg18[%c0_38, %c0_39], %68 {strides = array<i32>} : memref<128x128xf32, #tpu.memory_space<vmem>>, vector<128x128xf32>,
    } else {
    }
    return
  }
  func.func @transform_0(%arg0: i32, %arg1: i32) -> (i32, i32) {
    %c0_i32 = arith.constant 0 : i32
    %c0_i32_0 = arith.constant 0 : i32
    %c0_i32_1 = arith.constant 0 : i32
    return %c0_i32, %c0_i32_0 : i32, i32
  }
  func.func @transform_1(%arg0: i32, %arg1: i32) -> (i32, i32) {
    %c0_i32 = arith.constant 0 : i32
    %c0_i32_0 = arith.constant 0 : i32
    return %arg1, %c0_i32 : i32, i32
  }
  func.func @transform_2(%arg0: i32, %arg1: i32) -> (i32, i32) {
    %c0_i32 = arith.constant 0 : i32
    %c0_i32_0 = arith.constant 0 : i32
    return %arg1, %c0_i32 : i32, i32
  }
  func.func @transform_3(%arg0: i32, %arg1: i32) -> (i32, i32) {
    %c0_i32 = arith.constant 0 : i32
    %c0_i32_0 = arith.constant 0 : i32
    %c0_i32_1 = arith.constant 0 : i32
    return %c0_i32, %c0_i32_0 : i32, i32
  }
  func.func @transform_4(%arg0: i32, %arg1: i32) -> (i32, i32) {
    %c0_i32 = arith.constant 0 : i32
    %c0_i32_0 = arith.constant 0 : i32
    %c0_i32_1 = arith.constant 0 : i32
    return %c0_i32, %c0_i32_0 : i32, i32
  }
  func.func @transform_5(%arg0: i32, %arg1: i32) -> (i32, i32) {
    %c0_i32 = arith.constant 0 : i32
    %c0_i32_0 = arith.constant 0 : i32
    %c0_i32_1 = arith.constant 0 : i32
    return %c0_i32, %c0_i32_0 : i32, i32
  }
  func.func @transform_6(%arg0: i32, %arg1: i32) -> (i32, i32) {
    %c0_i32 = arith.constant 0 : i32
    %c0_i32_0 = arith.constant 0 : i32
    %c0_i32_1 = arith.constant 0 : i32
    return %c0_i32, %c0_i32_0 : i32, i32
  }
  func.func @transform_7(%arg0: i32, %arg1: i32) -> (i32, i32, i32) {
    %c0_i32 = arith.constant 0 : i32
    %c0_i32_0 = arith.constant 0 : i32
    %c0_i32_1 = arith.constant 0 : i32
    return %arg0, %c0_i32, %c0_i32_0 : i32, i32, i32
  }
  func.func @transform_8(%arg0: i32, %arg1: i32) -> (i32, i32, i32) {
    %c0_i32 = arith.constant 0 : i32
    %c0_i32_0 = arith.constant 0 : i32
    %c0_i32_1 = arith.constant 0 : i32
    return %arg0, %c0_i32, %c0_i32_0 : i32, i32, i32
  }
  func.func @transform_9(%arg0: i32, %arg1: i32) -> (i32, i32, i32) {
    %c0_i32 = arith.constant 0 : i32
    %c0_i32_0 = arith.constant 0 : i32
    %c0_i32_1 = arith.constant 0 : i32
    return %arg0, %c0_i32, %c0_i32_0 : i32, i32, i32
  }
  func.func @transform_10(%arg0: i32, %arg1: i32) -> (i32, i32, i32) {
    %c0_i32 = arith.constant 0 : i32
    %c0_i32_0 = arith.constant 0 : i32
    %c0_i32_1 = arith.constant 0 : i32
    return %arg0, %c0_i32, %c0_i32_0 : i32, i32, i32
  }
  func.func @transform_11(%arg0: i32, %arg1: i32) -> (i32, i32, i32) {
    %c0_i32 = arith.constant 0 : i32
    %c0_i32_0 = arith.constant 0 : i32
    %c0_i32_1 = arith.constant 0 : i32
    return %arg0, %c0_i32, %c0_i32_0 : i32, i32, i32
  }
  func.func @transform_12(%arg0: i32, %arg1: i32) -> (i32, i32) {
    %c0_i32 = arith.constant 0 : i32
    %c0_i32_0 = arith.constant 0 : i32
    %c0_i32_1 = arith.constant 0 : i32
    return %c0_i32, %c0_i32_0 : i32, i32
  }
  func.func @transform_13(%arg0: i32, %arg1: i32) -> (i32, i32) {
    %c0_i32 = arith.constant 0 : i32
    %c0_i32_0 = arith.constant 0 : i32
    %c0_i32_1 = arith.constant 0 : i32
    return %c0_i32, %c0_i32_0 : i32, i32
  }
  func.func @transform_14(%arg0: i32, %arg1: i32) -> (i32, i32) {
    %c0_i32 = arith.constant 0 : i32
    %c0_i32_0 = arith.constant 0 : i32
    %c0_i32_1 = arith.constant 0 : i32
    return %c0_i32, %c0_i32_0 : i32, i32
  }
  func.func @transform_15(%arg0: i32, %arg1: i32) -> (i32, i32) {
    %c0_i32 = arith.constant 0 : i32
    %c0_i32_0 = arith.constant 0 : i32
    %c0_i32_1 = arith.constant 0 : i32
    return %c0_i32, %c0_i32_0 : i32, i32
  }
  func.func @transform_16(%arg0: i32, %arg1: i32) -> (i32, i32) {
    %c0_i32 = arith.constant 0 : i32
    %c0_i32_0 = arith.constant 0 : i32
    return %arg1, %c0_i32 : i32, i32
  }
}

</mosaic_0001>

<llo_original>
// kernel: gatgraph_forward.1
$region0: #{gatgraph_forward.1}
  #allocation0 [shape = 'u32[]', space=smem, size = 0x4, offset = 0x4, fixed_abs, tag = 'smem constant byte address 0x4 - core index']
  #allocation1 [shape = 'u32[144,128]{1,0:T(1,128)}', space=vmem, size = 0x12000, scoped, tag = 'internal scratch']
  #allocation2 [shape = 'f32[128,64]{1,0:T(8,128)}', space=vmem, size = 0x10000, scoped, tag = 'scratch operand']
  #allocation3 [shape = 'f32[128,64]{1,0:T(8,128)}', space=vmem, size = 0x10000, scoped, tag = 'scratch operand']
  #allocation4 [shape = 'f32[1,128]{1,0:T(1,128)}', space=vmem, size = 0x200, scoped, tag = 'scratch operand']
  %s0 = inlined_call_operand.vmem [shape: f32[128,8], index: 0, kind: input, shape index: {}]
  %s1 = inlined_call_operand.vmem [shape: bf16[128,128], index: 1, kind: input, shape index: {}]
  %s2 = inlined_call_operand.vmem [shape: bf16[128,128], index: 2, kind: input, shape index: {}]
  %s3 = inlined_call_operand.vmem [shape: f32[8,128], index: 3, kind: input, shape index: {}]
  %s4 = inlined_call_operand.vmem [shape: f32[1,128], index: 4, kind: input, shape index: {}]
  %s5 = inlined_call_operand.vmem [shape: f32[128,64], index: 5, kind: input, shape index: {}]
  %s6 = inlined_call_operand.vmem [shape: f32[1,64], index: 6, kind: input, shape index: {}]
  %s7 = inlined_call_operand.vmem [shape: f32[3,64,64], index: 7, kind: input, shape index: {}]
  %s8 = inlined_call_operand.vmem [shape: f32[3,64,1], index: 8, kind: input, shape index: {}]
  %s9 = inlined_call_operand.vmem [shape: f32[3,1,64], index: 9, kind: input, shape index: {}]
  %s10 = inlined_call_operand.vmem [shape: f32[3,1,1], index: 10, kind: input, shape index: {}]
  %s11 = inlined_call_operand.vmem [shape: f32[3,1,64], index: 11, kind: input, shape index: {}]
  %s12 = inlined_call_operand.vmem [shape: f32[64,64], index: 12, kind: input, shape index: {}]
  %s13 = inlined_call_operand.vmem [shape: f32[1,64], index: 13, kind: input, shape index: {}]
  %s14 = inlined_call_operand.vmem [shape: f32[64,128], index: 14, kind: input, shape index: {}]
  %s15 = inlined_call_operand.vmem [shape: f32[1,128], index: 15, kind: input, shape index: {}]
  %s16 = inlined_call_operand.vmem [shape: f32[128,128], index: 16, kind: output, shape index: {}]
  %s17 = sld [smem:[#allocation0]]
  $region109: #{gatgraph_forward.1} parent=0
    _
  %s19 = ssub.s32 1, %s17
  %s20 = scalar_select 0, %s19, %s17
  loop: start=0, step=1, limit=5
  $region2: #{gatgraph_forward.1} parent=0 // loop_pre_header
    _
  $region3: #{gatgraph_forward.1} parent=0 // loop_header
    %s22 = sphi 0, %s26
    %p23 = scmp.ge.s32.totalorder %s22, 5
    %s29 = sphi 0, %s41
    %s30 = sphi 0, %s37
    %s31 = sphi 0, %s29
    %s32 = sphi 0, %s30
    %s33 = sphi 0, %s31
    %s34 = sphi 0, %s32
    %s42 = sphi 0, %s42
    %s44 = sphi 0, %s42
    %s45 = sphi 0, %s44
    %s59 = sphi 0, %s45
    %s65 = sphi 0, %s67
    %s68 = sphi 0, %s65
    %s69 = sphi 0, %s68
    %s85 = sphi 0, %s69
    %s91 = sphi 0, %s93
    %s94 = sphi 0, %s91
    %s95 = sphi 0, %s94
    %s111 = sphi 0, %s95
    %s115 = sphi 0, %s115
    %s117 = sphi 0, %s115
    %s118 = sphi 0, %s117
    %s132 = sphi 0, %s118
    %s136 = sphi 0, %s136
    %s138 = sphi 0, %s136
    %s139 = sphi 0, %s138
    %s153 = sphi 0, %s139
    %s157 = sphi 0, %s157
    %s159 = sphi 0, %s157
    %s160 = sphi 0, %s159
    %s174 = sphi 0, %s160
    %s178 = sphi 0, %s178
    %s180 = sphi 0, %s178
    %s181 = sphi 0, %s180
    %s195 = sphi 0, %s181
    %s201 = sphi 0, %s203
    %s204 = sphi 0, %s201
    %s205 = sphi 0, %s204
    %s221 = sphi 0, %s205
    %s227 = sphi 0, %s229
    %s230 = sphi 0, %s227
    %s231 = sphi 0, %s230
    %s247 = sphi 0, %s231
    %s253 = sphi 0, %s255
    %s256 = sphi 0, %s253
    %s257 = sphi 0, %s256
    %s273 = sphi 0, %s257
    %s279 = sphi 0, %s281
    %s282 = sphi 0, %s279
    %s283 = sphi 0, %s282
    %s299 = sphi 0, %s283
    %s305 = sphi 0, %s307
    %s308 = sphi 0, %s305
    %s309 = sphi 0, %s308
    %s325 = sphi 0, %s309
    %s329 = sphi 0, %s329
    %s331 = sphi 0, %s329
    %s332 = sphi 0, %s331
    %s346 = sphi 0, %s332
    %s350 = sphi 0, %s350
    %s352 = sphi 0, %s350
    %s353 = sphi 0, %s352
    %s367 = sphi 0, %s353
    %s371 = sphi 0, %s371
    %s373 = sphi 0, %s371
    %s374 = sphi 0, %s373
    %s388 = sphi 0, %s374
    %s392 = sphi 0, %s392
    %s394 = sphi 0, %s392
    %s395 = sphi 0, %s394
    %s409 = sphi 0, %s395
    %s415 = sphi 0, %s417
    %s418 = sphi 0, %s415
    %s419 = sphi 0, %s418
    %s435 = sphi 0, %s419
  $region4: #{gatgraph_forward.1} parent=0 // loop_header_branch
    %25 = sbr.rel (%p23) target = $region8
  $region5: #{gatgraph_forward.1} parent=0 // loop_body
    %s27 = ssub.s32 %s22, 1
    %s28 = ssub.s32 %s22, 2
    %s35 = sadd.s32 1, %s30
    %p36 = scmp.ge.s32.totalorder %s35, 1
    %s37 = scalar_select %p36, 0, %s35
    %s38 = sadd.s32 1, %s29
    %s39 = scalar_select %p36, %s38, %s29
    %p40 = scmp.ge.s32.totalorder %s39, 3
    %s41 = scalar_select %p40, 0, %s39
    %s43 = sadd.s32 %s42, 1
    %p46 = scmp.eq.s32.totalorder %s22, 2
    %p47 = scmp.ne.s32.totalorder %s42, %s44
    %p48 = scmp.eq.s32.totalorder %s22, 0
    %p49 = por %p47, %p48
    %p50 = scmp.ne.s32.totalorder %s42, %s44
    %p51 = scmp.eq.s32.totalorder %s27, 2
    %p52 = por %p50, %p51
    %p53 = scmp.ne.s32.totalorder %s44, %s45
    %p54 = scmp.eq.s32.totalorder %s27, 0
    %p55 = por %p53, %p54
    %p56 = scmp.ne.s32.totalorder %s44, %s45
    %p57 = scmp.eq.s32.totalorder %s28, 2
    %p58 = por %p56, %p57
    %p60 = scmp.ne.s32.totalorder %s45, %s59
    %p61 = scmp.eq.s32.totalorder %s28, 0
    %p62 = por %p60, %p61
    %s63 = ssub.s32 %s30, %s37
    %p64 = scmp.eq.s32.totalorder %s63, 0
    %s66 = sadd.s32 %s65, 1
    %s67 = scalar_select %p64, %s65, %s66
    %p70 = pneg %p64
    %p71 = scmp.eq.s32.totalorder %s22, 2
    %p72 = por %p70, %p71
    %p73 = scmp.ne.s32.totalorder %s65, %s68
    %p74 = scmp.eq.s32.totalorder %s22, 0
    %p75 = por %p73, %p74
    %p76 = scmp.ne.s32.totalorder %s65, %s68
    %p77 = scmp.eq.s32.totalorder %s27, 2
    %p78 = por %p76, %p77
    %p79 = scmp.ne.s32.totalorder %s68, %s69
    %p80 = scmp.eq.s32.totalorder %s27, 0
    %p81 = por %p79, %p80
    %p82 = scmp.ne.s32.totalorder %s68, %s69
    %p83 = scmp.eq.s32.totalorder %s28, 2
    %p84 = por %p82, %p83
    %p86 = scmp.ne.s32.totalorder %s69, %s85
    %p87 = scmp.eq.s32.totalorder %s28, 0
    %p88 = por %p86, %p87
    %s89 = ssub.s32 %s30, %s37
    %p90 = scmp.eq.s32.totalorder %s89, 0
    %s92 = sadd.s32 %s91, 1
    %s93 = scalar_select %p90, %s91, %s92
    %p96 = pneg %p90
    %p97 = scmp.eq.s32.totalorder %s22, 2
    %p98 = por %p96, %p97
    %p99 = scmp.ne.s32.totalorder %s91, %s94
    %p100 = scmp.eq.s32.totalorder %s22, 0
    %p101 = por %p99, %p100
    %p102 = scmp.ne.s32.totalorder %s91, %s94
    %p103 = scmp.eq.s32.totalorder %s27, 2
    %p104 = por %p102, %p103
    %p105 = scmp.ne.s32.totalorder %s94, %s95
    %p106 = scmp.eq.s32.totalorder %s27, 0
    %p107 = por %p105, %p106
    %p108 = scmp.ne.s32.totalorder %s94, %s95
    %p109 = scmp.eq.s32.totalorder %s28, 2
    %p110 = por %p108, %p109
    %p112 = scmp.ne.s32.totalorder %s95, %s111
    %p113 = scmp.eq.s32.totalorder %s28, 0
    %p114 = por %p112, %p113
    %s116 = sadd.s32 %s115, 1
    %p119 = scmp.eq.s32.totalorder %s22, 2
    %p120 = scmp.ne.s32.totalorder %s115, %s117
    %p121 = scmp.eq.s32.totalorder %s22, 0
    %p122 = por %p120, %p121
    %p123 = scmp.ne.s32.totalorder %s115, %s117
    %p124 = scmp.eq.s32.totalorder %s27, 2
    %p125 = por %p123, %p124
    %p126 = scmp.ne.s32.totalorder %s117, %s118
    %p127 = scmp.eq.s32.totalorder %s27, 0
    %p128 = por %p126, %p127
    %p129 = scmp.ne.s32.totalorder %s117, %s118
    %p130 = scmp.eq.s32.totalorder %s28, 2
    %p131 = por %p129, %p130
    %p133 = scmp.ne.s32.totalorder %s118, %s132
    %p134 = scmp.eq.s32.totalorder %s28, 0
    %p135 = por %p133, %p134
    %s137 = sadd.s32 %s136, 1
    %p140 = scmp.eq.s32.totalorder %s22, 2
    %p141 = scmp.ne.s32.totalorder %s136, %s138
    %p142 = scmp.eq.s32.totalorder %s22, 0
    %p143 = por %p141, %p142
    %p144 = scmp.ne.s32.totalorder %s136, %s138
    %p145 = scmp.eq.s32.totalorder %s27, 2
    %p146 = por %p144, %p145
    %p147 = scmp.ne.s32.totalorder %s138, %s139
    %p148 = scmp.eq.s32.totalorder %s27, 0
    %p149 = por %p147, %p148
    %p150 = scmp.ne.s32.totalorder %s138, %s139
    %p151 = scmp.eq.s32.totalorder %s28, 2
    %p152 = por %p150, %p151
    %p154 = scmp.ne.s32.totalorder %s139, %s153
    %p155 = scmp.eq.s32.totalorder %s28, 0
    %p156 = por %p154, %p155
    %s158 = sadd.s32 %s157, 1
    %p161 = scmp.eq.s32.totalorder %s22, 2
    %p162 = scmp.ne.s32.totalorder %s157, %s159
    %p163 = scmp.eq.s32.totalorder %s22, 0
    %p164 = por %p162, %p163
    %p165 = scmp.ne.s32.totalorder %s157, %s159
    %p166 = scmp.eq.s32.totalorder %s27, 2
    %p167 = por %p165, %p166
    %p168 = scmp.ne.s32.totalorder %s159, %s160
    %p169 = scmp.eq.s32.totalorder %s27, 0
    %p170 = por %p168, %p169
    %p171 = scmp.ne.s32.totalorder %s159, %s160
    %p172 = scmp.eq.s32.totalorder %s28, 2
    %p173 = por %p171, %p172
    %p175 = scmp.ne.s32.totalorder %s160, %s174
    %p176 = scmp.eq.s32.totalorder %s28, 0
    %p177 = por %p175, %p176
    %s179 = sadd.s32 %s178, 1
    %p182 = scmp.eq.s32.totalorder %s22, 2
    %p183 = scmp.ne.s32.totalorder %s178, %s180
    %p184 = scmp.eq.s32.totalorder %s22, 0
    %p185 = por %p183, %p184
    %p186 = scmp.ne.s32.totalorder %s178, %s180
    %p187 = scmp.eq.s32.totalorder %s27, 2
    %p188 = por %p186, %p187
    %p189 = scmp.ne.s32.totalorder %s180, %s181
    %p190 = scmp.eq.s32.totalorder %s27, 0
    %p191 = por %p189, %p190
    %p192 = scmp.ne.s32.totalorder %s180, %s181
    %p193 = scmp.eq.s32.totalorder %s28, 2
    %p194 = por %p192, %p193
    %p196 = scmp.ne.s32.totalorder %s181, %s195
    %p197 = scmp.eq.s32.totalorder %s28, 0
    %p198 = por %p196, %p197
    %s199 = ssub.s32 %s29, %s41
    %p200 = scmp.eq.s32.totalorder %s199, 0
    %s202 = sadd.s32 %s201, 1
    %s203 = scalar_select %p200, %s201, %s202
    %p206 = pneg %p200
    %p207 = scmp.eq.s32.totalorder %s22, 2
    %p208 = por %p206, %p207
    %p209 = scmp.ne.s32.totalorder %s201, %s204
    %p210 = scmp.eq.s32.totalorder %s22, 0
    %p211 = por %p209, %p210
    %p212 = scmp.ne.s32.totalorder %s201, %s204
    %p213 = scmp.eq.s32.totalorder %s27, 2
    %p214 = por %p212, %p213
    %p215 = scmp.ne.s32.totalorder %s204, %s205
    %p216 = scmp.eq.s32.totalorder %s27, 0
    %p217 = por %p215, %p216
    %p218 = scmp.ne.s32.totalorder %s204, %s205
    %p219 = scmp.eq.s32.totalorder %s28, 2
    %p220 = por %p218, %p219
    %p222 = scmp.ne.s32.totalorder %s205, %s221
    %p223 = scmp.eq.s32.totalorder %s28, 0
    %p224 = por %p222, %p223
    %s225 = ssub.s32 %s29, %s41
    %p226 = scmp.eq.s32.totalorder %s225, 0
    %s228 = sadd.s32 %s227, 1
    %s229 = scalar_select %p226, %s227, %s228
    %p232 = pneg %p226
    %p233 = scmp.eq.s32.totalorder %s22, 2
    %p234 = por %p232, %p233
    %p235 = scmp.ne.s32.totalorder %s227, %s230
    %p236 = scmp.eq.s32.totalorder %s22, 0
    %p237 = por %p235, %p236
    %p238 = scmp.ne.s32.totalorder %s227, %s230
    %p239 = scmp.eq.s32.totalorder %s27, 2
    %p240 = por %p238, %p239
    %p241 = scmp.ne.s32.totalorder %s230, %s231
    %p242 = scmp.eq.s32.totalorder %s27, 0
    %p243 = por %p241, %p242
    %p244 = scmp.ne.s32.totalorder %s230, %s231
    %p245 = scmp.eq.s32.totalorder %s28, 2
    %p246 = por %p244, %p245
    %p248 = scmp.ne.s32.totalorder %s231, %s247
    %p249 = scmp.eq.s32.totalorder %s28, 0
    %p250 = por %p248, %p249
    %s251 = ssub.s32 %s29, %s41
    %p252 = scmp.eq.s32.totalorder %s251, 0
    %s254 = sadd.s32 %s253, 1
    %s255 = scalar_select %p252, %s253, %s254
    %p258 = pneg %p252
    %p259 = scmp.eq.s32.totalorder %s22, 2
    %p260 = por %p258, %p259
    %p261 = scmp.ne.s32.totalorder %s253, %s256
    %p262 = scmp.eq.s32.totalorder %s22, 0
    %p263 = por %p261, %p262
    %p264 = scmp.ne.s32.totalorder %s253, %s256
    %p265 = scmp.eq.s32.totalorder %s27, 2
    %p266 = por %p264, %p265
    %p267 = scmp.ne.s32.totalorder %s256, %s257
    %p268 = scmp.eq.s32.totalorder %s27, 0
    %p269 = por %p267, %p268
    %p270 = scmp.ne.s32.totalorder %s256, %s257
    %p271 = scmp.eq.s32.totalorder %s28, 2
    %p272 = por %p270, %p271
    %p274 = scmp.ne.s32.totalorder %s257, %s273
    %p275 = scmp.eq.s32.totalorder %s28, 0
    %p276 = por %p274, %p275
    %s277 = ssub.s32 %s29, %s41
    %p278 = scmp.eq.s32.totalorder %s277, 0
    %s280 = sadd.s32 %s279, 1
    %s281 = scalar_select %p278, %s279, %s280
    %p284 = pneg %p278
    %p285 = scmp.eq.s32.totalorder %s22, 2
    %p286 = por %p284, %p285
    %p287 = scmp.ne.s32.totalorder %s279, %s282
    %p288 = scmp.eq.s32.totalorder %s22, 0
    %p289 = por %p287, %p288
    %p290 = scmp.ne.s32.totalorder %s279, %s282
    %p291 = scmp.eq.s32.totalorder %s27, 2
    %p292 = por %p290, %p291
    %p293 = scmp.ne.s32.totalorder %s282, %s283
    %p294 = scmp.eq.s32.totalorder %s27, 0
    %p295 = por %p293, %p294
    %p296 = scmp.ne.s32.totalorder %s282, %s283
    %p297 = scmp.eq.s32.totalorder %s28, 2
    %p298 = por %p296, %p297
    %p300 = scmp.ne.s32.totalorder %s283, %s299
    %p301 = scmp.eq.s32.totalorder %s28, 0
    %p302 = por %p300, %p301
    %s303 = ssub.s32 %s29, %s41
    %p304 = scmp.eq.s32.totalorder %s303, 0
    %s306 = sadd.s32 %s305, 1
    %s307 = scalar_select %p304, %s305, %s306
    %p310 = pneg %p304
    %p311 = scmp.eq.s32.totalorder %s22, 2
    %p312 = por %p310, %p311
    %p313 = scmp.ne.s32.totalorder %s305, %s308
    %p314 = scmp.eq.s32.totalorder %s22, 0
    %p315 = por %p313, %p314
    %p316 = scmp.ne.s32.totalorder %s305, %s308
    %p317 = scmp.eq.s32.totalorder %s27, 2
    %p318 = por %p316, %p317
    %p319 = scmp.ne.s32.totalorder %s308, %s309
    %p320 = scmp.eq.s32.totalorder %s27, 0
    %p321 = por %p319, %p320
    %p322 = scmp.ne.s32.totalorder %s308, %s309
    %p323 = scmp.eq.s32.totalorder %s28, 2
    %p324 = por %p322, %p323
    %p326 = scmp.ne.s32.totalorder %s309, %s325
    %p327 = scmp.eq.s32.totalorder %s28, 0
    %p328 = por %p326, %p327
    %s330 = sadd.s32 %s329, 1
    %p333 = scmp.eq.s32.totalorder %s22, 2
    %p334 = scmp.ne.s32.totalorder %s329, %s331
    %p335 = scmp.eq.s32.totalorder %s22, 0
    %p336 = por %p334, %p335
    %p337 = scmp.ne.s32.totalorder %s329, %s331
    %p338 = scmp.eq.s32.totalorder %s27, 2
    %p339 = por %p337, %p338
    %p340 = scmp.ne.s32.totalorder %s331, %s332
    %p341 = scmp.eq.s32.totalorder %s27, 0
    %p342 = por %p340, %p341
    %p343 = scmp.ne.s32.totalorder %s331, %s332
    %p344 = scmp.eq.s32.totalorder %s28, 2
    %p345 = por %p343, %p344
    %p347 = scmp.ne.s32.totalorder %s332, %s346
    %p348 = scmp.eq.s32.totalorder %s28, 0
    %p349 = por %p347, %p348
    %s351 = sadd.s32 %s350, 1
    %p354 = scmp.eq.s32.totalorder %s22, 2
    %p355 = scmp.ne.s32.totalorder %s350, %s352
    %p356 = scmp.eq.s32.totalorder %s22, 0
    %p357 = por %p355, %p356
    %p358 = scmp.ne.s32.totalorder %s350, %s352
    %p359 = scmp.eq.s32.totalorder %s27, 2
    %p360 = por %p358, %p359
    %p361 = scmp.ne.s32.totalorder %s352, %s353
    %p362 = scmp.eq.s32.totalorder %s27, 0
    %p363 = por %p361, %p362
    %p364 = scmp.ne.s32.totalorder %s352, %s353
    %p365 = scmp.eq.s32.totalorder %s28, 2
    %p366 = por %p364, %p365
    %p368 = scmp.ne.s32.totalorder %s353, %s367
    %p369 = scmp.eq.s32.totalorder %s28, 0
    %p370 = por %p368, %p369
    %s372 = sadd.s32 %s371, 1
    %p375 = scmp.eq.s32.totalorder %s22, 2
    %p376 = scmp.ne.s32.totalorder %s371, %s373
    %p377 = scmp.eq.s32.totalorder %s22, 0
    %p378 = por %p376, %p377
    %p379 = scmp.ne.s32.totalorder %s371, %s373
    %p380 = scmp.eq.s32.totalorder %s27, 2
    %p381 = por %p379, %p380
    %p382 = scmp.ne.s32.totalorder %s373, %s374
    %p383 = scmp.eq.s32.totalorder %s27, 0
    %p384 = por %p382, %p383
    %p385 = scmp.ne.s32.totalorder %s373, %s374
    %p386 = scmp.eq.s32.totalorder %s28, 2
    %p387 = por %p385, %p386
    %p389 = scmp.ne.s32.totalorder %s374, %s388
    %p390 = scmp.eq.s32.totalorder %s28, 0
    %p391 = por %p389, %p390
    %s393 = sadd.s32 %s392, 1
    %p396 = scmp.eq.s32.totalorder %s22, 2
    %p397 = scmp.ne.s32.totalorder %s392, %s394
    %p398 = scmp.eq.s32.totalorder %s22, 0
    %p399 = por %p397, %p398
    %p400 = scmp.ne.s32.totalorder %s392, %s394
    %p401 = scmp.eq.s32.totalorder %s27, 2
    %p402 = por %p400, %p401
    %p403 = scmp.ne.s32.totalorder %s394, %s395
    %p404 = scmp.eq.s32.totalorder %s27, 0
    %p405 = por %p403, %p404
    %p406 = scmp.ne.s32.totalorder %s394, %s395
    %p407 = scmp.eq.s32.totalorder %s28, 2
    %p408 = por %p406, %p407
    %p410 = scmp.ne.s32.totalorder %s395, %s409
    %p411 = scmp.eq.s32.totalorder %s28, 0
    %p412 = por %p410, %p411
    %s413 = ssub.s32 %s30, %s37
    %p414 = scmp.eq.s32.totalorder %s413, 0
    %s416 = sadd.s32 %s415, 1
    %s417 = scalar_select %p414, %s415, %s416
    %p420 = pneg %p414
    %p421 = scmp.eq.s32.totalorder %s22, 2
    %p422 = por %p420, %p421
    %p423 = scmp.ne.s32.totalorder %s415, %s418
    %p424 = scmp.eq.s32.totalorder %s22, 0
    %p425 = por %p423, %p424
    %p426 = scmp.ne.s32.totalorder %s415, %s418
    %p427 = scmp.eq.s32.totalorder %s27, 2
    %p428 = por %p426, %p427
    %p429 = scmp.ne.s32.totalorder %s418, %s419
    %p430 = scmp.eq.s32.totalorder %s27, 0
    %p431 = por %p429, %p430
    %p432 = scmp.ne.s32.totalorder %s418, %s419
    %p433 = scmp.eq.s32.totalorder %s28, 2
    %p434 = por %p432, %p433
    %p436 = scmp.ne.s32.totalorder %s419, %s435
    %p437 = scmp.eq.s32.totalorder %s28, 0
    %p438 = por %p436, %p437
    %p439 = scmp.le.s32.totalorder 1, %s22
    %p440 = scmp.lt.s32.totalorder %s22, 4
    %p441 = pnand %p439, %p440
    %p442 = pneg %p441
    // Predicated region
    $region9: #{gatgraph_forward.1} parent=5 // pred_check
      _
    $region10: #{gatgraph_forward.1} parent=5 // pred_check_branch
      %444 = sbr.rel (%p441) target = $region12
    $region11: #{gatgraph_forward.1} parent=5 // pred_region
      %s445 = ssub.s32 %s22, 1
      // Predicated region
      $region13: #{gatgraph_forward.1} parent=11 // pred_check
        %p446 = pneg %p55
      $region14: #{gatgraph_forward.1} parent=11 // pred_check_branch
        %448 = sbr.rel (%p446) target = $region16
      $region15: #{gatgraph_forward.1} parent=11 // pred_region
        _
      $region16: #{gatgraph_forward.1} parent=11 // pred_fallthru
        _
      // Predicated region
      $region17: #{gatgraph_forward.1} parent=11 // pred_check
        %p449 = pneg %p81
      $region18: #{gatgraph_forward.1} parent=11 // pred_check_branch
        %451 = sbr.rel (%p449) target = $region20
      $region19: #{gatgraph_forward.1} parent=11 // pred_region
        %s452 = smul.u32 16, %s32
        %p453 = scmp.lt.s32.totalorder %s452, 15
        %s454 = scalar_select %p453, %s452, 15
        %s455 = smul.addr %s454, 4
        %s456 = scalar_lea.vmem %s1, %s455
        %s457 = smul.u32 16, %s32
      $region20: #{gatgraph_forward.1} parent=11 // pred_fallthru
        _
      // Predicated region
      $region21: #{gatgraph_forward.1} parent=11 // pred_check
        %p458 = pneg %p107
      $region22: #{gatgraph_forward.1} parent=11 // pred_check_branch
        %460 = sbr.rel (%p458) target = $region24
      $region23: #{gatgraph_forward.1} parent=11 // pred_region
        %s461 = smul.u32 16, %s32
        %p462 = scmp.lt.s32.totalorder %s461, 15
        %s463 = scalar_select %p462, %s461, 15
        %s464 = smul.addr %s463, 4
        %s465 = scalar_lea.vmem %s2, %s464
        %s466 = smul.u32 16, %s32
      $region24: #{gatgraph_forward.1} parent=11 // pred_fallthru
        _
      // Predicated region
      $region25: #{gatgraph_forward.1} parent=11 // pred_check
        %p467 = pneg %p128
      $region26: #{gatgraph_forward.1} parent=11 // pred_check_branch
        %469 = sbr.rel (%p467) target = $region28
      $region27: #{gatgraph_forward.1} parent=11 // pred_region
        _
      $region28: #{gatgraph_forward.1} parent=11 // pred_fallthru
        _
      // Predicated region
      $region29: #{gatgraph_forward.1} parent=11 // pred_check
        %p470 = pneg %p149
      $region30: #{gatgraph_forward.1} parent=11 // pred_check_branch
        %472 = sbr.rel (%p470) target = $region32
      $region31: #{gatgraph_forward.1} parent=11 // pred_region
        _
      $region32: #{gatgraph_forward.1} parent=11 // pred_fallthru
        _
      // Predicated region
      $region33: #{gatgraph_forward.1} parent=11 // pred_check
        %p473 = pneg %p170
      $region34: #{gatgraph_forward.1} parent=11 // pred_check_branch
        %475 = sbr.rel (%p473) target = $region36
      $region35: #{gatgraph_forward.1} parent=11 // pred_region
        _
      $region36: #{gatgraph_forward.1} parent=11 // pred_fallthru
        _
      // Predicated region
      $region37: #{gatgraph_forward.1} parent=11 // pred_check
        %p476 = pneg %p191
      $region38: #{gatgraph_forward.1} parent=11 // pred_check_branch
        %478 = sbr.rel (%p476) target = $region40
      $region39: #{gatgraph_forward.1} parent=11 // pred_region
        _
      $region40: #{gatgraph_forward.1} parent=11 // pred_fallthru
        _
      // Predicated region
      $region41: #{gatgraph_forward.1} parent=11 // pred_check
        %p479 = pneg %p342
      $region42: #{gatgraph_forward.1} parent=11 // pred_check_branch
        %481 = sbr.rel (%p479) target = $region44
      $region43: #{gatgraph_forward.1} parent=11 // pred_region
        _
      $region44: #{gatgraph_forward.1} parent=11 // pred_fallthru
        _
      // Predicated region
      $region45: #{gatgraph_forward.1} parent=11 // pred_check
        %p482 = pneg %p363
      $region46: #{gatgraph_forward.1} parent=11 // pred_check_branch
        %484 = sbr.rel (%p482) target = $region48
      $region47: #{gatgraph_forward.1} parent=11 // pred_region
        _
      $region48: #{gatgraph_forward.1} parent=11 // pred_fallthru
        _
      // Predicated region
      $region49: #{gatgraph_forward.1} parent=11 // pred_check
        %p485 = pneg %p384
      $region50: #{gatgraph_forward.1} parent=11 // pred_check_branch
        %487 = sbr.rel (%p485) target = $region52
      $region51: #{gatgraph_forward.1} parent=11 // pred_region
        _
      $region52: #{gatgraph_forward.1} parent=11 // pred_fallthru
        _
      // Predicated region
      $region53: #{gatgraph_forward.1} parent=11 // pred_check
        %p488 = pneg %p405
      $region54: #{gatgraph_forward.1} parent=11 // pred_check_branch
        %490 = sbr.rel (%p488) target = $region56
      $region55: #{gatgraph_forward.1} parent=11 // pred_region
        _
      $region56: #{gatgraph_forward.1} parent=11 // pred_fallthru
        _
    $region12: #{gatgraph_forward.1} parent=5 // pred_fallthru
      _
    %p491 = scmp.lt.s32.totalorder %s22, 3
    // Predicated region
    $region57: #{gatgraph_forward.1} parent=5 // pred_check
      %p492 = pneg %p491
    $region58: #{gatgraph_forward.1} parent=5 // pred_check_branch
      %494 = sbr.rel (%p492) target = $region60
    $region59: #{gatgraph_forward.1} parent=5 // pred_region
      // Predicated region
      $region61: #{gatgraph_forward.1} parent=59 // pred_check
        %p495 = pneg %p211
      $region62: #{gatgraph_forward.1} parent=59 // pred_check_branch
        %497 = sbr.rel (%p495) target = $region64
      $region63: #{gatgraph_forward.1} parent=59 // pred_region
        %p498 = scmp.lt.s32.totalorder %s29, 2
        %s499 = scalar_select %p498, %s29, 2
        %s500 = smul.addr %s499, 8
        %s501 = smul.addr %s500, 8
        %s502 = scalar_lea.vmem %s7, %s501
      $region64: #{gatgraph_forward.1} parent=59 // pred_fallthru
        _
      // Predicated region
      $region65: #{gatgraph_forward.1} parent=59 // pred_check
        %p503 = pneg %p237
      $region66: #{gatgraph_forward.1} parent=59 // pred_check_branch
        %505 = sbr.rel (%p503) target = $region68
      $region67: #{gatgraph_forward.1} parent=59 // pred_region
        %p506 = scmp.lt.s32.totalorder %s29, 2
        %s507 = scalar_select %p506, %s29, 2
        %s508 = smul.addr %s507, 8
        %s509 = smul.addr %s508, 8
        %s510 = scalar_lea.vmem %s8, %s509
      $region68: #{gatgraph_forward.1} parent=59 // pred_fallthru
        _
      // Predicated region
      $region69: #{gatgraph_forward.1} parent=59 // pred_check
        %p511 = pneg %p263
      $region70: #{gatgraph_forward.1} parent=59 // pred_check_branch
        %513 = sbr.rel (%p511) target = $region72
      $region71: #{gatgraph_forward.1} parent=59 // pred_region
        %p514 = scmp.lt.s32.totalorder %s29, 2
        %s515 = scalar_select %p514, %s29, 2
        %s516 = scalar_lea.vmem %s9, %s515
      $region72: #{gatgraph_forward.1} parent=59 // pred_fallthru
        _
      // Predicated region
      $region73: #{gatgraph_forward.1} parent=59 // pred_check
        %p517 = pneg %p289
      $region74: #{gatgraph_forward.1} parent=59 // pred_check_branch
        %519 = sbr.rel (%p517) target = $region76
      $region75: #{gatgraph_forward.1} parent=59 // pred_region
        %p520 = scmp.lt.s32.totalorder %s29, 2
        %s521 = scalar_select %p520, %s29, 2
        %s522 = scalar_lea.vmem %s10, %s521
      $region76: #{gatgraph_forward.1} parent=59 // pred_fallthru
        _
      // Predicated region
      $region77: #{gatgraph_forward.1} parent=59 // pred_check
        %p523 = pneg %p315
      $region78: #{gatgraph_forward.1} parent=59 // pred_check_branch
        %525 = sbr.rel (%p523) target = $region80
      $region79: #{gatgraph_forward.1} parent=59 // pred_region
        %p526 = scmp.lt.s32.totalorder %s29, 2
        %s527 = scalar_select %p526, %s29, 2
        %s528 = scalar_lea.vmem %s11, %s527
      $region80: #{gatgraph_forward.1} parent=59 // pred_fallthru
        _
    $region60: #{gatgraph_forward.1} parent=5 // pred_fallthru
      _
    %p529 = scmp.le.s32.totalorder 1, %s22
    %p530 = scmp.lt.s32.totalorder %s22, 4
    %p531 = pnand %p529, %p530
    %p532 = pneg %p531
    // Predicated region
    $region81: #{gatgraph_forward.1} parent=5 // pred_check
      _
    $region82: #{gatgraph_forward.1} parent=5 // pred_check_branch
      %534 = sbr.rel (%p531) target = $region84
    $region83: #{gatgraph_forward.1} parent=5 // pred_region
      %s535 = ssub.s32 %s22, 1
      %p536 = pneg %p55
      %p537 = pneg %p52
      %s538 = smul.u32 16, %s32
      %p539 = scmp.lt.s32.totalorder %s538, 15
      %s540 = scalar_select %p539, %s538, 15
      %s541 = smul.addr %s540, 4
      %s542 = scalar_lea.vmem %s1, %s541
      %p543 = pneg %p81
      %p544 = pneg %p78
      %s545 = smul.u32 16, %s32
      %p546 = scmp.lt.s32.totalorder %s545, 15
      %s547 = scalar_select %p546, %s545, 15
      %s548 = smul.addr %s547, 4
      %s549 = scalar_lea.vmem %s2, %s548
      %p550 = pneg %p107
      %p551 = pneg %p104
      %p552 = pneg %p128
      %p553 = pneg %p125
      %p554 = pneg %p149
      %p555 = pneg %p146
      %p556 = pneg %p170
      %p557 = pneg %p167
      %p558 = pneg %p191
      %p559 = pneg %p188
      %p560 = scmp.lt.s32.totalorder %s31, 2
      %s561 = scalar_select %p560, %s31, 2
      %s562 = smul.addr %s561, 8
      %s563 = smul.addr %s562, 8
      %s564 = scalar_lea.vmem %s7, %s563
      %p565 = pneg %p217
      %p566 = pneg %p214
      %p567 = scmp.lt.s32.totalorder %s31, 2
      %s568 = scalar_select %p567, %s31, 2
      %s569 = smul.addr %s568, 8
      %s570 = smul.addr %s569, 8
      %s571 = scalar_lea.vmem %s8, %s570
      %p572 = pneg %p243
      %p573 = pneg %p240
      %p574 = scmp.lt.s32.totalorder %s31, 2
      %s575 = scalar_select %p574, %s31, 2
      %s576 = scalar_lea.vmem %s9, %s575
      %p577 = pneg %p269
      %p578 = pneg %p266
      %p579 = scmp.lt.s32.totalorder %s31, 2
      %s580 = scalar_select %p579, %s31, 2
      %s581 = scalar_lea.vmem %s10, %s580
      %p582 = pneg %p295
      %p583 = pneg %p292
      %p584 = scmp.lt.s32.totalorder %s31, 2
      %s585 = scalar_select %p584, %s31, 2
      %s586 = scalar_lea.vmem %s11, %s585
      %p587 = pneg %p321
      %p588 = pneg %p318
      %p589 = pneg %p342
      %p590 = pneg %p339
      %p591 = pneg %p363
      %p592 = pneg %p360
      %p593 = pneg %p384
      %p594 = pneg %p381
      %p595 = pneg %p405
      %p596 = pneg %p402
      %p597 = pneg %p431
      %p598 = pneg %p428
      %s599 = smul.u32 16, %s32
      %p600 = scmp.lt.s32.totalorder %s599, 15
      %s601 = scalar_select %p600, %s599, 15
      %s602 = smul.addr %s601, 8
      %s603 = scalar_lea.vmem %s16, %s602
      %s604 = smul.u32 16, %s32
      %p605 = scmp.lt.s32.totalorder %s604, 15
      %s606 = scalar_select %p605, %s604, 15
      %s607 = smul.addr %s606, 4
      %s608 = scalar_lea.vmem %s1, %s607
      %s609 = smul.u32 16, %s32
      %s610 = smul.u32 16, %s32
      %p611 = scmp.lt.s32.totalorder %s610, 15
      %s612 = scalar_select %p611, %s610, 15
      %s613 = smul.addr %s612, 4
      %s614 = scalar_lea.vmem %s2, %s613
      %s615 = smul.u32 16, %s32
      %p616 = scmp.lt.s32.totalorder %s31, 2
      %s617 = scalar_select %p616, %s31, 2
      %s618 = smul.addr %s617, 8
      %s619 = smul.addr %s618, 8
      %s620 = scalar_lea.vmem %s7, %s619
      %p621 = scmp.lt.s32.totalorder %s31, 2
      %s622 = scalar_select %p621, %s31, 2
      %s623 = smul.addr %s622, 8
      %s624 = smul.addr %s623, 8
      %s625 = scalar_lea.vmem %s8, %s624
      %p626 = scmp.lt.s32.totalorder %s31, 2
      %s627 = scalar_select %p626, %s31, 2
      %s628 = scalar_lea.vmem %s9, %s627
      %p629 = scmp.lt.s32.totalorder %s31, 2
      %s630 = scalar_select %p629, %s31, 2
      %s631 = scalar_lea.vmem %s10, %s630
      %p632 = scmp.lt.s32.totalorder %s31, 2
      %s633 = scalar_select %p632, %s31, 2
      %s634 = scalar_lea.vmem %s11, %s633
      %s635 = smul.u32 16, %s32
      %p636 = scmp.lt.s32.totalorder %s635, 15
      %s637 = scalar_select %p636, %s635, 15
      %s638 = smul.addr %s637, 8
      %s639 = scalar_lea.vmem %s16, %s638
      %s640 = smul.u32 16, %s32
      %s641 = smul.u32 %s32, 128
      %p642 = scmp.eq.s32.totalorder %s31, 0
      %p643 = scmp.eq.s32.totalorder %s32, 0
      %p644 = pnand %p642, %p643
      %p645 = pneg %p644
      // Predicated region
      $region85: #{gatgraph_forward.1} parent=83 // pred_check
        _
      $region86: #{gatgraph_forward.1} parent=83 // pred_check_branch
        %647 = sbr.rel (%p644) target = $region88
      $region87: #{gatgraph_forward.1} parent=83 // pred_region
        %v648 = vld [vmem:[%s0] sm:$0xff]
        %v649 = vld [vmem:[%s0 + $0x8] sm:$0xff]
        %v650 = vld [vmem:[%s0 + $0x10] sm:$0xff]
        %v651 = vld [vmem:[%s0 + $0x18] sm:$0xff]
        %v652 = vld [vmem:[%s0 + $0x20] sm:$0xff]
        %v653 = vld [vmem:[%s0 + $0x28] sm:$0xff]
        %v654 = vld [vmem:[%s0 + $0x30] sm:$0xff]
        %v655 = vld [vmem:[%s0 + $0x38] sm:$0xff]
        %v656 = vld [vmem:[%s0 + $0x40] sm:$0xff]
        %v657 = vld [vmem:[%s0 + $0x48] sm:$0xff]
        %v658 = vld [vmem:[%s0 + $0x50] sm:$0xff]
        %v659 = vld [vmem:[%s0 + $0x58] sm:$0xff]
        %v660 = vld [vmem:[%s0 + $0x60] sm:$0xff]
        %v661 = vld [vmem:[%s0 + $0x68] sm:$0xff]
        %v662 = vld [vmem:[%s0 + $0x70] sm:$0xff]
        %v663 = vld [vmem:[%s0 + $0x78] sm:$0xff]
        %v664 = vld [vmem:[%s3] sm:$0xff]
        %v665 = vld [vmem:[%s4] sm:$0x1]
        %v667 = vlaneseq
        %v668 = vshrl.u32 %v667, 7
        %v669 = vsub.s32 0, %v668
        %v670 = vrot.slane %v665, %v669
        %vm672 = vcmask 64512
        %v674 = vsel %vm672, %v648, 0
        %v677 = vsel %vm672, %v649, 0
        %v680 = vsel %vm672, %v650, 0
        %v683 = vsel %vm672, %v651, 0
        %v686 = vsel %vm672, %v652, 0
        %v689 = vsel %vm672, %v653, 0
        %v692 = vsel %vm672, %v654, 0
        %v695 = vsel %vm672, %v655, 0
        %v698 = vsel %vm672, %v656, 0
        %v701 = vsel %vm672, %v657, 0
        %v704 = vsel %vm672, %v658, 0
        %v707 = vsel %vm672, %v659, 0
        %v710 = vsel %vm672, %v660, 0
        %v713 = vsel %vm672, %v661, 0
        %v716 = vsel %vm672, %v662, 0
        %v719 = vsel %vm672, %v663, 0
        %721 = vmatprep.subr.mxu0 0.0
        %722 = vmatpush1.msra.mxu0 0.0
        %723 = vmatprep.subr.mxu0 0.0
        %724 = vmatpush1.msra.mxu0 0.0
        %725 = vmatprep.subr.mxu0 0.0
        %726 = vmatpush1.msra.mxu0 0.0
        %727 = vmatprep.subr.mxu0 0.0
        %728 = vmatpush1.msra.mxu0 0.0
        %729 = vmatprep.subr.mxu0 0.0
        %730 = vmatpush1.msra.mxu0 0.0
        %731 = vmatprep.subr.mxu0 0.0
        %732 = vmatpush1.msra.mxu0 0.0
        %733 = vmatprep.subr.mxu0 0.0
        %734 = vmatpush1.msra.mxu0 0.0
        %735 = vmatprep.subr.mxu0 0.0
        %736 = vmatpush1.msra.mxu0 0.0
        %737 = vmatprep.subr.mxu0 0.0
        %738 = vmatpush1.msra.mxu0 0.0
        %739 = vmatprep.subr.mxu0 0.0
        %740 = vmatpush1.msra.mxu0 0.0
        %741 = vmatprep.subr.mxu0 0.0
        %742 = vmatpush1.msra.mxu0 0.0
        %743 = vmatprep.subr.mxu0 0.0
        %744 = vmatpush1.msra.mxu0 0.0
        %745 = vmatprep.subr.mxu0 0.0
        %746 = vmatpush1.msra.mxu0 0.0
        %747 = vmatprep.subr.mxu0 0.0
        %748 = vmatpush1.msra.mxu0 0.0
        %749 = vmatprep.subr.mxu0 0.0
        %750 = vmatpush1.msra.mxu0 0.0
        %751 = vmatprep.subr.mxu0 0.0
        %752 = vmatpush1.msra.mxu0 %v664
        %753 = vmatprep.subr.mxu0 0.0
        %754 = vmatpush2.msra.mxu0 0.0
        %755 = vmatprep.subr.mxu0 0.0
        %756 = vmatpush2.msra.mxu0 0.0
        %757 = vmatprep.subr.mxu0 0.0
        %758 = vmatpush2.msra.mxu0 0.0
        %759 = vmatprep.subr.mxu0 0.0
        %760 = vmatpush2.msra.mxu0 0.0
        %761 = vmatprep.subr.mxu0 0.0
        %762 = vmatpush2.msra.mxu0 0.0
        %763 = vmatprep.subr.mxu0 0.0
        %764 = vmatpush2.msra.mxu0 0.0
        %765 = vmatprep.subr.mxu0 0.0
        %766 = vmatpush2.msra.mxu0 0.0
        %767 = vmatprep.subr.mxu0 0.0
        %768 = vmatpush2.msra.mxu0 0.0
        %769 = vmatprep.subr.mxu0 0.0
        %770 = vmatpush2.msra.mxu0 0.0
        %771 = vmatprep.subr.mxu0 0.0
        %772 = vmatpush2.msra.mxu0 0.0
        %773 = vmatprep.subr.mxu0 0.0
        %774 = vmatpush2.msra.mxu0 0.0
        %775 = vmatprep.subr.mxu0 0.0
        %776 = vmatpush2.msra.mxu0 0.0
        %777 = vmatprep.subr.mxu0 0.0
        %778 = vmatpush2.msra.mxu0 0.0
        %779 = vmatprep.subr.mxu0 0.0
        %780 = vmatpush2.msra.mxu0 0.0
        %781 = vmatprep.subr.mxu0 0.0
        %782 = vmatpush2.msra.mxu0 0.0
        %783 = vmatprep.subr.mxu0 0.0
        %784 = vmatpush2.msra.mxu0 0.0
        %785 = vmatprep.mubr.f32.mxu0 0.0
        %786 = vmatmul.mubr.f32.gmra.mxu0 %v674
        %v787 = vpop.f32.mrf.mxu0
        %v788 = vadd.f32 %v670, %v787
        %v789 = vpop.f32.mrf.mxu0
        %790 = vmatprep.mubr.f32.mxu0 0.0
        %791 = vmatmul.mubr.f32.gmra.mxu0 %v677
        %v792 = vpop.f32.mrf.mxu0
        %v793 = vadd.f32 %v670, %v792
        %v794 = vpop.f32.mrf.mxu0
        %795 = vmatprep.mubr.f32.mxu0 0.0
        %796 = vmatmul.mubr.f32.gmra.mxu0 %v680
        %v797 = vpop.f32.mrf.mxu0
        %v798 = vadd.f32 %v670, %v797
        %v799 = vpop.f32.mrf.mxu0
        %800 = vmatprep.mubr.f32.mxu0 0.0
        %801 = vmatmul.mubr.f32.gmra.mxu0 %v683
        %v802 = vpop.f32.mrf.mxu0
        %v803 = vadd.f32 %v670, %v802
        %v804 = vpop.f32.mrf.mxu0
        %805 = vmatprep.mubr.f32.mxu0 0.0
        %806 = vmatmul.mubr.f32.gmra.mxu0 %v686
        %v807 = vpop.f32.mrf.mxu0
        %v808 = vadd.f32 %v670, %v807
        %v809 = vpop.f32.mrf.mxu0
        %810 = vmatprep.mubr.f32.mxu0 0.0
        %811 = vmatmul.mubr.f32.gmra.mxu0 %v689
        %v812 = vpop.f32.mrf.mxu0
        %v813 = vadd.f32 %v670, %v812
        %v814 = vpop.f32.mrf.mxu0
        %815 = vmatprep.mubr.f32.mxu0 0.0
        %816 = vmatmul.mubr.f32.gmra.mxu0 %v692
        %v817 = vpop.f32.mrf.mxu0
        %v818 = vadd.f32 %v670, %v817
        %v819 = vpop.f32.mrf.mxu0
        %820 = vmatprep.mubr.f32.mxu0 0.0
        %821 = vmatmul.mubr.f32.gmra.mxu0 %v695
        %v822 = vpop.f32.mrf.mxu0
        %v823 = vadd.f32 %v670, %v822
        %v824 = vpop.f32.mrf.mxu0
        %825 = vmatprep.mubr.f32.mxu0 0.0
        %826 = vmatmul.mubr.f32.gmra.mxu0 %v698
        %v827 = vpop.f32.mrf.mxu0
        %v828 = vadd.f32 %v670, %v827
        %v829 = vpop.f32.mrf.mxu0
        %830 = vmatprep.mubr.f32.mxu0 0.0
        %831 = vmatmul.mubr.f32.gmra.mxu0 %v701
        %v832 = vpop.f32.mrf.mxu0
        %v833 = vadd.f32 %v670, %v832
        %v834 = vpop.f32.mrf.mxu0
        %835 = vmatprep.mubr.f32.mxu0 0.0
        %836 = vmatmul.mubr.f32.gmra.mxu0 %v704
        %v837 = vpop.f32.mrf.mxu0
        %v838 = vadd.f32 %v670, %v837
        %v839 = vpop.f32.mrf.mxu0
        %840 = vmatprep.mubr.f32.mxu0 0.0
        %841 = vmatmul.mubr.f32.gmra.mxu0 %v707
        %v842 = vpop.f32.mrf.mxu0
        %v843 = vadd.f32 %v670, %v842
        %v844 = vpop.f32.mrf.mxu0
        %845 = vmatprep.mubr.f32.mxu0 0.0
        %846 = vmatmul.mubr.f32.gmra.mxu0 %v710
        %v847 = vpop.f32.mrf.mxu0
        %v848 = vadd.f32 %v670, %v847
        %v849 = vpop.f32.mrf.mxu0
        %850 = vmatprep.mubr.f32.mxu0 0.0
        %851 = vmatmul.mubr.f32.gmra.mxu0 %v713
        %v852 = vpop.f32.mrf.mxu0
        %v853 = vadd.f32 %v670, %v852
        %v854 = vpop.f32.mrf.mxu0
        %855 = vmatprep.mubr.f32.mxu0 0.0
        %856 = vmatmul.mubr.f32.gmra.mxu0 %v716
        %v857 = vpop.f32.mrf.mxu0
        %v858 = vadd.f32 %v670, %v857
        %v859 = vpop.f32.mrf.mxu0
        %860 = vmatprep.mubr.f32.mxu0 0.0
        %861 = vmatmul.mubr.f32.gmra.mxu0 %v719
        %v862 = vpop.f32.mrf.mxu0
        %v863 = vadd.f32 %v670, %v862
        %v864 = vpop.f32.mrf.mxu0
        %865 = vdwg.mxu0
        %v866 = vxor.u32 %v788, 2147483648
        %v867 = vxor.u32 %v793, 2147483648
        %v868 = vxor.u32 %v798, 2147483648
        %v869 = vxor.u32 %v803, 2147483648
        %v870 = vxor.u32 %v808, 2147483648
        %v871 = vxor.u32 %v813, 2147483648
        %v872 = vxor.u32 %v818, 2147483648
        %v873 = vxor.u32 %v823, 2147483648
        %v874 = vxor.u32 %v828, 2147483648
        %v875 = vxor.u32 %v833, 2147483648
        %v876 = vxor.u32 %v838, 2147483648
        %v877 = vxor.u32 %v843, 2147483648
        %v878 = vxor.u32 %v848, 2147483648
        %v879 = vxor.u32 %v853, 2147483648
        %v880 = vxor.u32 %v858, 2147483648
        %v881 = vxor.u32 %v863, 2147483648
        %v882 = vmul.f32 %v866, 1.442695
        %v883 = vpow.pop %v882
        %v884 = vmul.f32 %v867, 1.442695
        %v885 = vpow.pop %v884
        %v886 = vmul.f32 %v868, 1.442695
        %v887 = vpow.pop %v886
        %v888 = vmul.f32 %v869, 1.442695
        %v889 = vpow.pop %v888
        %v890 = vmul.f32 %v870, 1.442695
        %v891 = vpow.pop %v890
        %v892 = vmul.f32 %v871, 1.442695
        %v893 = vpow.pop %v892
        %v894 = vmul.f32 %v872, 1.442695
        %v895 = vpow.pop %v894
        %v896 = vmul.f32 %v873, 1.442695
        %v897 = vpow.pop %v896
        %v898 = vmul.f32 %v874, 1.442695
        %v899 = vpow.pop %v898
        %v900 = vmul.f32 %v875, 1.442695
        %v901 = vpow.pop %v900
        %v902 = vmul.f32 %v876, 1.442695
        %v903 = vpow.pop %v902
        %v904 = vmul.f32 %v877, 1.442695
        %v905 = vpow.pop %v904
        %v906 = vmul.f32 %v878, 1.442695
        %v907 = vpow.pop %v906
        %v908 = vmul.f32 %v879, 1.442695
        %v909 = vpow.pop %v908
        %v910 = vmul.f32 %v880, 1.442695
        %v911 = vpow.pop %v910
        %v912 = vmul.f32 %v881, 1.442695
        %v913 = vpow.pop %v912
        %v914 = vadd.f32 %v883, 1.0
        %v915 = vadd.f32 %v885, 1.0
        %v916 = vadd.f32 %v887, 1.0
        %v917 = vadd.f32 %v889, 1.0
        %v918 = vadd.f32 %v891, 1.0
        %v919 = vadd.f32 %v893, 1.0
        %v920 = vadd.f32 %v895, 1.0
        %v921 = vadd.f32 %v897, 1.0
        %v922 = vadd.f32 %v899, 1.0
        %v923 = vadd.f32 %v901, 1.0
        %v924 = vadd.f32 %v903, 1.0
        %v925 = vadd.f32 %v905, 1.0
        %v926 = vadd.f32 %v907, 1.0
        %v927 = vadd.f32 %v909, 1.0
        %v928 = vadd.f32 %v911, 1.0
        %v929 = vadd.f32 %v913, 1.0
        %v930 = vrcp.pop %v914
        %v931 = vmul.f32 1.0, %v930
        %v932 = vrcp.pop %v915
        %v933 = vmul.f32 1.0, %v932
        %v934 = vrcp.pop %v916
        %v935 = vmul.f32 1.0, %v934
        %v936 = vrcp.pop %v917
        %v937 = vmul.f32 1.0, %v936
        %v938 = vrcp.pop %v918
        %v939 = vmul.f32 1.0, %v938
        %v940 = vrcp.pop %v919
        %v941 = vmul.f32 1.0, %v940
        %v942 = vrcp.pop %v920
        %v943 = vmul.f32 1.0, %v942
        %v944 = vrcp.pop %v921
        %v945 = vmul.f32 1.0, %v944
        %v946 = vrcp.pop %v922
        %v947 = vmul.f32 1.0, %v946
        %v948 = vrcp.pop %v923
        %v949 = vmul.f32 1.0, %v948
        %v950 = vrcp.pop %v924
        %v951 = vmul.f32 1.0, %v950
        %v952 = vrcp.pop %v925
        %v953 = vmul.f32 1.0, %v952
        %v954 = vrcp.pop %v926
        %v955 = vmul.f32 1.0, %v954
        %v956 = vrcp.pop %v927
        %v957 = vmul.f32 1.0, %v956
        %v958 = vrcp.pop %v928
        %v959 = vmul.f32 1.0, %v958
        %v960 = vrcp.pop %v929
        %v961 = vmul.f32 1.0, %v960
        %v962 = vmul.f32 %v788, %v931
        %v963 = vmul.f32 %v793, %v933
        %v964 = vmul.f32 %v798, %v935
        %v965 = vmul.f32 %v803, %v937
        %v966 = vmul.f32 %v808, %v939
        %v967 = vmul.f32 %v813, %v941
        %v968 = vmul.f32 %v818, %v943
        %v969 = vmul.f32 %v823, %v945
        %v970 = vmul.f32 %v828, %v947
        %v971 = vmul.f32 %v833, %v949
        %v972 = vmul.f32 %v838, %v951
        %v973 = vmul.f32 %v843, %v953
        %v974 = vmul.f32 %v848, %v955
        %v975 = vmul.f32 %v853, %v957
        %v976 = vmul.f32 %v858, %v959
        %v977 = vmul.f32 %v863, %v961
        %v978 = vld [vmem:[%s5] sm:$0xff]
        %v979 = vld [vmem:[%s5 + $0x8] sm:$0xff]
        %v980 = vld [vmem:[%s5 + $0x10] sm:$0xff]
        %v981 = vld [vmem:[%s5 + $0x18] sm:$0xff]
        %v982 = vld [vmem:[%s5 + $0x20] sm:$0xff]
        %v983 = vld [vmem:[%s5 + $0x28] sm:$0xff]
        %v984 = vld [vmem:[%s5 + $0x30] sm:$0xff]
        %v985 = vld [vmem:[%s5 + $0x38] sm:$0xff]
        %v986 = vld [vmem:[%s5 + $0x40] sm:$0xff]
        %v987 = vld [vmem:[%s5 + $0x48] sm:$0xff]
        %v988 = vld [vmem:[%s5 + $0x50] sm:$0xff]
        %v989 = vld [vmem:[%s5 + $0x58] sm:$0xff]
        %v990 = vld [vmem:[%s5 + $0x60] sm:$0xff]
        %v991 = vld [vmem:[%s5 + $0x68] sm:$0xff]
        %v992 = vld [vmem:[%s5 + $0x70] sm:$0xff]
        %v993 = vld [vmem:[%s5 + $0x78] sm:$0xff]
        %v994 = vld [vmem:[%s6] sm:$0x1]
        %v996 = vlaneseq
        %v997 = vshrl.u32 %v996, 7
        %v998 = vsub.s32 0, %v997
        %v999 = vrot.slane %v994, %v998
        %1001 = vmatprep.subr.mxu0 0.0
        %1002 = vmatpush1.msra.mxu0 %v993
        %1003 = vmatprep.subr.mxu0 0.0
        %1004 = vmatpush1.msra.mxu0 %v992
        %1005 = vmatprep.subr.mxu0 0.0
        %1006 = vmatpush1.msra.mxu0 %v991
        %1007 = vmatprep.subr.mxu0 0.0
        %1008 = vmatpush1.msra.mxu0 %v990
        %1009 = vmatprep.subr.mxu0 0.0
        %1010 = vmatpush1.msra.mxu0 %v989
        %1011 = vmatprep.subr.mxu0 0.0
        %1012 = vmatpush1.msra.mxu0 %v988
        %1013 = vmatprep.subr.mxu0 0.0
        %1014 = vmatpush1.msra.mxu0 %v987
        %1015 = vmatprep.subr.mxu0 0.0
        %1016 = vmatpush1.msra.mxu0 %v986
        %1017 = vmatprep.subr.mxu0 0.0
        %1018 = vmatpush1.msra.mxu0 %v985
        %1019 = vmatprep.subr.mxu0 0.0
        %1020 = vmatpush1.msra.mxu0 %v984
        %1021 = vmatprep.subr.mxu0 0.0
        %1022 = vmatpush1.msra.mxu0 %v983
        %1023 = vmatprep.subr.mxu0 0.0
        %1024 = vmatpush1.msra.mxu0 %v982
        %1025 = vmatprep.subr.mxu0 0.0
        %1026 = vmatpush1.msra.mxu0 %v981
        %1027 = vmatprep.subr.mxu0 0.0
        %1028 = vmatpush1.msra.mxu0 %v980
        %1029 = vmatprep.subr.mxu0 0.0
        %1030 = vmatpush1.msra.mxu0 %v979
        %1031 = vmatprep.subr.mxu0 0.0
        %1032 = vmatpush1.msra.mxu0 %v978
        %1033 = vmatprep.subr.mxu0 0.0
        %1034 = vmatpush2.msra.mxu0 0.0
        %1035 = vmatprep.subr.mxu0 0.0
        %1036 = vmatpush2.msra.mxu0 0.0
        %1037 = vmatprep.subr.mxu0 0.0
        %1038 = vmatpush2.msra.mxu0 0.0
        %1039 = vmatprep.subr.mxu0 0.0
        %1040 = vmatpush2.msra.mxu0 0.0
        %1041 = vmatprep.subr.mxu0 0.0
        %1042 = vmatpush2.msra.mxu0 0.0
        %1043 = vmatprep.subr.mxu0 0.0
        %1044 = vmatpush2.msra.mxu0 0.0
        %1045 = vmatprep.subr.mxu0 0.0
        %1046 = vmatpush2.msra.mxu0 0.0
        %1047 = vmatprep.subr.mxu0 0.0
        %1048 = vmatpush2.msra.mxu0 0.0
        %1049 = vmatprep.subr.mxu0 0.0
        %1050 = vmatpush2.msra.mxu0 0.0
        %1051 = vmatprep.subr.mxu0 0.0
        %1052 = vmatpush2.msra.mxu0 0.0
        %1053 = vmatprep.subr.mxu0 0.0
        %1054 = vmatpush2.msra.mxu0 0.0
        %1055 = vmatprep.subr.mxu0 0.0
        %1056 = vmatpush2.msra.mxu0 0.0
        %1057 = vmatprep.subr.mxu0 0.0
        %1058 = vmatpush2.msra.mxu0 0.0
        %1059 = vmatprep.subr.mxu0 0.0
        %1060 = vmatpush2.msra.mxu0 0.0
        %1061 = vmatprep.subr.mxu0 0.0
        %1062 = vmatpush2.msra.mxu0 0.0
        %1063 = vmatprep.subr.mxu0 0.0
        %1064 = vmatpush2.msra.mxu0 0.0
        %1065 = vmatprep.mubr.f32.mxu0 0.0
        %1066 = vmatmul.mubr.f32.gmra.mxu0 %v962
        %v1067 = vpop.f32.mrf.mxu0
        %v1068 = vadd.f32 %v999, %v1067
        %v1069 = vpop.f32.mrf.mxu0
        %1070 = vmatprep.mubr.f32.mxu0 0.0
        %1071 = vmatmul.mubr.f32.gmra.mxu0 %v963
        %v1072 = vpop.f32.mrf.mxu0
        %v1073 = vadd.f32 %v999, %v1072
        %v1074 = vpop.f32.mrf.mxu0
        %1075 = vmatprep.mubr.f32.mxu0 0.0
        %1076 = vmatmul.mubr.f32.gmra.mxu0 %v964
        %v1077 = vpop.f32.mrf.mxu0
        %v1078 = vadd.f32 %v999, %v1077
        %v1079 = vpop.f32.mrf.mxu0
        %1080 = vmatprep.mubr.f32.mxu0 0.0
        %1081 = vmatmul.mubr.f32.gmra.mxu0 %v965
        %v1082 = vpop.f32.mrf.mxu0
        %v1083 = vadd.f32 %v999, %v1082
        %v1084 = vpop.f32.mrf.mxu0
        %1085 = vmatprep.mubr.f32.mxu0 0.0
        %1086 = vmatmul.mubr.f32.gmra.mxu0 %v966
        %v1087 = vpop.f32.mrf.mxu0
        %v1088 = vadd.f32 %v999, %v1087
        %v1089 = vpop.f32.mrf.mxu0
        %1090 = vmatprep.mubr.f32.mxu0 0.0
        %1091 = vmatmul.mubr.f32.gmra.mxu0 %v967
        %v1092 = vpop.f32.mrf.mxu0
        %v1093 = vadd.f32 %v999, %v1092
        %v1094 = vpop.f32.mrf.mxu0
        %1095 = vmatprep.mubr.f32.mxu0 0.0
        %1096 = vmatmul.mubr.f32.gmra.mxu0 %v968
        %v1097 = vpop.f32.mrf.mxu0
        %v1098 = vadd.f32 %v999, %v1097
        %v1099 = vpop.f32.mrf.mxu0
        %1100 = vmatprep.mubr.f32.mxu0 0.0
        %1101 = vmatmul.mubr.f32.gmra.mxu0 %v969
        %v1102 = vpop.f32.mrf.mxu0
        %v1103 = vadd.f32 %v999, %v1102
        %v1104 = vpop.f32.mrf.mxu0
        %1105 = vmatprep.mubr.f32.mxu0 0.0
        %1106 = vmatmul.mubr.f32.gmra.mxu0 %v970
        %v1107 = vpop.f32.mrf.mxu0
        %v1108 = vadd.f32 %v999, %v1107
        %v1109 = vpop.f32.mrf.mxu0
        %1110 = vmatprep.mubr.f32.mxu0 0.0
        %1111 = vmatmul.mubr.f32.gmra.mxu0 %v971
        %v1112 = vpop.f32.mrf.mxu0
        %v1113 = vadd.f32 %v999, %v1112
        %v1114 = vpop.f32.mrf.mxu0
        %1115 = vmatprep.mubr.f32.mxu0 0.0
        %1116 = vmatmul.mubr.f32.gmra.mxu0 %v972
        %v1117 = vpop.f32.mrf.mxu0
        %v1118 = vadd.f32 %v999, %v1117
        %v1119 = vpop.f32.mrf.mxu0
        %1120 = vmatprep.mubr.f32.mxu0 0.0
        %1121 = vmatmul.mubr.f32.gmra.mxu0 %v973
        %v1122 = vpop.f32.mrf.mxu0
        %v1123 = vadd.f32 %v999, %v1122
        %v1124 = vpop.f32.mrf.mxu0
        %1125 = vmatprep.mubr.f32.mxu0 0.0
        %1126 = vmatmul.mubr.f32.gmra.mxu0 %v974
        %v1127 = vpop.f32.mrf.mxu0
        %v1128 = vadd.f32 %v999, %v1127
        %v1129 = vpop.f32.mrf.mxu0
        %1130 = vmatprep.mubr.f32.mxu0 0.0
        %1131 = vmatmul.mubr.f32.gmra.mxu0 %v975
        %v1132 = vpop.f32.mrf.mxu0
        %v1133 = vadd.f32 %v999, %v1132
        %v1134 = vpop.f32.mrf.mxu0
        %1135 = vmatprep.mubr.f32.mxu0 0.0
        %1136 = vmatmul.mubr.f32.gmra.mxu0 %v976
        %v1137 = vpop.f32.mrf.mxu0
        %v1138 = vadd.f32 %v999, %v1137
        %v1139 = vpop.f32.mrf.mxu0
        %1140 = vmatprep.mubr.f32.mxu0 0.0
        %1141 = vmatmul.mubr.f32.gmra.mxu0 %v977
        %v1142 = vpop.f32.mrf.mxu0
        %v1143 = vadd.f32 %v999, %v1142
        %v1144 = vpop.f32.mrf.mxu0
        %1145 = vdwg.mxu0
        %vm1146 = vcmask 523264
        %1147 = vst.msk [vmem:[#allocation2] sm:$0xff] %vm1146, %v1068
        %1148 = vst.msk [vmem:[#allocation2 + $0x8] sm:$0xff] %vm1146, %v1073
        %1149 = vst.msk [vmem:[#allocation2 + $0x10] sm:$0xff] %vm1146, %v1078
        %1150 = vst.msk [vmem:[#allocation2 + $0x18] sm:$0xff] %vm1146, %v1083
        %1151 = vst.msk [vmem:[#allocation2 + $0x20] sm:$0xff] %vm1146, %v1088
        %1152 = vst.msk [vmem:[#allocation2 + $0x28] sm:$0xff] %vm1146, %v1093
        %1153 = vst.msk [vmem:[#allocation2 + $0x30] sm:$0xff] %vm1146, %v1098
        %1154 = vst.msk [vmem:[#allocation2 + $0x38] sm:$0xff] %vm1146, %v1103
        %1155 = vst.msk [vmem:[#allocation2 + $0x40] sm:$0xff] %vm1146, %v1108
        %1156 = vst.msk [vmem:[#allocation2 + $0x48] sm:$0xff] %vm1146, %v1113
        %1157 = vst.msk [vmem:[#allocation2 + $0x50] sm:$0xff] %vm1146, %v1118
        %1158 = vst.msk [vmem:[#allocation2 + $0x58] sm:$0xff] %vm1146, %v1123
        %1159 = vst.msk [vmem:[#allocation2 + $0x60] sm:$0xff] %vm1146, %v1128
        %1160 = vst.msk [vmem:[#allocation2 + $0x68] sm:$0xff] %vm1146, %v1133
        %1161 = vst.msk [vmem:[#allocation2 + $0x70] sm:$0xff] %vm1146, %v1138
        %1162 = vst.msk [vmem:[#allocation2 + $0x78] sm:$0xff] %vm1146, %v1143
      $region88: #{gatgraph_forward.1} parent=83 // pred_fallthru
        _
      // Predicated region
      $region89: #{gatgraph_forward.1} parent=83 // pred_check
        %p1163 = pneg %p643
      $region90: #{gatgraph_forward.1} parent=83 // pred_check_branch
        %1165 = sbr.rel (%p1163) target = $region92
      $region91: #{gatgraph_forward.1} parent=83 // pred_region
        %v1166 = vld [vmem:[#allocation2] sm:$0xff]
        %v1167 = vld [vmem:[#allocation2 + $0x8] sm:$0xff]
        %v1168 = vld [vmem:[#allocation2 + $0x10] sm:$0xff]
        %v1169 = vld [vmem:[#allocation2 + $0x18] sm:$0xff]
        %v1170 = vld [vmem:[#allocation2 + $0x20] sm:$0xff]
        %v1171 = vld [vmem:[#allocation2 + $0x28] sm:$0xff]
        %v1172 = vld [vmem:[#allocation2 + $0x30] sm:$0xff]
        %v1173 = vld [vmem:[#allocation2 + $0x38] sm:$0xff]
        %v1174 = vld [vmem:[#allocation2 + $0x40] sm:$0xff]
        %v1175 = vld [vmem:[#allocation2 + $0x48] sm:$0xff]
        %v1176 = vld [vmem:[#allocation2 + $0x50] sm:$0xff]
        %v1177 = vld [vmem:[#allocation2 + $0x58] sm:$0xff]
        %v1178 = vld [vmem:[#allocation2 + $0x60] sm:$0xff]
        %v1179 = vld [vmem:[#allocation2 + $0x68] sm:$0xff]
        %v1180 = vld [vmem:[#allocation2 + $0x70] sm:$0xff]
        %v1181 = vld [vmem:[#allocation2 + $0x78] sm:$0xff]
        %v1182 = vld [vmem:[%s620] sm:$0xff]
        %v1183 = vld [vmem:[%s620 + $0x8] sm:$0xff]
        %v1184 = vld [vmem:[%s620 + $0x10] sm:$0xff]
        %v1185 = vld [vmem:[%s620 + $0x18] sm:$0xff]
        %v1186 = vld [vmem:[%s620 + $0x20] sm:$0xff]
        %v1187 = vld [vmem:[%s620 + $0x28] sm:$0xff]
        %v1188 = vld [vmem:[%s620 + $0x30] sm:$0xff]
        %v1189 = vld [vmem:[%s620 + $0x38] sm:$0xff]
        %vm1190 = vcmask 523264
        %v1192 = vsel %vm1190, %v1166, 0
        %v1195 = vsel %vm1190, %v1167, 0
        %v1198 = vsel %vm1190, %v1168, 0
        %v1201 = vsel %vm1190, %v1169, 0
        %v1204 = vsel %vm1190, %v1170, 0
        %v1207 = vsel %vm1190, %v1171, 0
        %v1210 = vsel %vm1190, %v1172, 0
        %v1213 = vsel %vm1190, %v1173, 0
        %v1216 = vsel %vm1190, %v1174, 0
        %v1219 = vsel %vm1190, %v1175, 0
        %v1222 = vsel %vm1190, %v1176, 0
        %v1225 = vsel %vm1190, %v1177, 0
        %v1228 = vsel %vm1190, %v1178, 0
        %v1231 = vsel %vm1190, %v1179, 0
        %v1234 = vsel %vm1190, %v1180, 0
        %v1237 = vsel %vm1190, %v1181, 0
        %1239 = vmatprep.subr.mxu0 0.0
        %1240 = vmatpush1.msra.mxu0 0.0
        %1241 = vmatprep.subr.mxu0 0.0
        %1242 = vmatpush1.msra.mxu0 0.0
        %1243 = vmatprep.subr.mxu0 0.0
        %1244 = vmatpush1.msra.mxu0 0.0
        %1245 = vmatprep.subr.mxu0 0.0
        %1246 = vmatpush1.msra.mxu0 0.0
        %1247 = vmatprep.subr.mxu0 0.0
        %1248 = vmatpush1.msra.mxu0 0.0
        %1249 = vmatprep.subr.mxu0 0.0
        %1250 = vmatpush1.msra.mxu0 0.0
        %1251 = vmatprep.subr.mxu0 0.0
        %1252 = vmatpush1.msra.mxu0 0.0
        %1253 = vmatprep.subr.mxu0 0.0
        %1254 = vmatpush1.msra.mxu0 0.0
        %1255 = vmatprep.subr.mxu0 0.0
        %1256 = vmatpush1.msra.mxu0 %v1189
        %1257 = vmatprep.subr.mxu0 0.0
        %1258 = vmatpush1.msra.mxu0 %v1188
        %1259 = vmatprep.subr.mxu0 0.0
        %1260 = vmatpush1.msra.mxu0 %v1187
        %1261 = vmatprep.subr.mxu0 0.0
        %1262 = vmatpush1.msra.mxu0 %v1186
        %1263 = vmatprep.subr.mxu0 0.0
        %1264 = vmatpush1.msra.mxu0 %v1185
        %1265 = vmatprep.subr.mxu0 0.0
        %1266 = vmatpush1.msra.mxu0 %v1184
        %1267 = vmatprep.subr.mxu0 0.0
        %1268 = vmatpush1.msra.mxu0 %v1183
        %1269 = vmatprep.subr.mxu0 0.0
        %1270 = vmatpush1.msra.mxu0 %v1182
        %1271 = vmatprep.subr.mxu0 0.0
        %1272 = vmatpush2.msra.mxu0 0.0
        %1273 = vmatprep.subr.mxu0 0.0
        %1274 = vmatpush2.msra.mxu0 0.0
        %1275 = vmatprep.subr.mxu0 0.0
        %1276 = vmatpush2.msra.mxu0 0.0
        %1277 = vmatprep.subr.mxu0 0.0
        %1278 = vmatpush2.msra.mxu0 0.0
        %1279 = vmatprep.subr.mxu0 0.0
        %1280 = vmatpush2.msra.mxu0 0.0
        %1281 = vmatprep.subr.mxu0 0.0
        %1282 = vmatpush2.msra.mxu0 0.0
        %1283 = vmatprep.subr.mxu0 0.0
        %1284 = vmatpush2.msra.mxu0 0.0
        %1285 = vmatprep.subr.mxu0 0.0
        %1286 = vmatpush2.msra.mxu0 0.0
        %1287 = vmatprep.subr.mxu0 0.0
        %1288 = vmatpush2.msra.mxu0 0.0
        %1289 = vmatprep.subr.mxu0 0.0
        %1290 = vmatpush2.msra.mxu0 0.0
        %1291 = vmatprep.subr.mxu0 0.0
        %1292 = vmatpush2.msra.mxu0 0.0
        %1293 = vmatprep.subr.mxu0 0.0
        %1294 = vmatpush2.msra.mxu0 0.0
        %1295 = vmatprep.subr.mxu0 0.0
        %1296 = vmatpush2.msra.mxu0 0.0
        %1297 = vmatprep.subr.mxu0 0.0
        %1298 = vmatpush2.msra.mxu0 0.0
        %1299 = vmatprep.subr.mxu0 0.0
        %1300 = vmatpush2.msra.mxu0 0.0
        %1301 = vmatprep.subr.mxu0 0.0
        %1302 = vmatpush2.msra.mxu0 0.0
        %1303 = vmatprep.mubr.f32.mxu0 0.0
        %1304 = vmatmul.mubr.f32.gmra.mxu0 %v1192
        %v1305 = vpop.f32.mrf.mxu0
        %v1306 = vadd.f32 0.0, %v1305
        %v1307 = vpop.f32.mrf.mxu0
        %1308 = vmatprep.mubr.f32.mxu0 0.0
        %1309 = vmatmul.mubr.f32.gmra.mxu0 %v1195
        %v1310 = vpop.f32.mrf.mxu0
        %v1311 = vadd.f32 0.0, %v1310
        %v1312 = vpop.f32.mrf.mxu0
        %1313 = vmatprep.mubr.f32.mxu0 0.0
        %1314 = vmatmul.mubr.f32.gmra.mxu0 %v1198
        %v1315 = vpop.f32.mrf.mxu0
        %v1316 = vadd.f32 0.0, %v1315
        %v1317 = vpop.f32.mrf.mxu0
        %1318 = vmatprep.mubr.f32.mxu0 0.0
        %1319 = vmatmul.mubr.f32.gmra.mxu0 %v1201
        %v1320 = vpop.f32.mrf.mxu0
        %v1321 = vadd.f32 0.0, %v1320
        %v1322 = vpop.f32.mrf.mxu0
        %1323 = vmatprep.mubr.f32.mxu0 0.0
        %1324 = vmatmul.mubr.f32.gmra.mxu0 %v1204
        %v1325 = vpop.f32.mrf.mxu0
        %v1326 = vadd.f32 0.0, %v1325
        %v1327 = vpop.f32.mrf.mxu0
        %1328 = vmatprep.mubr.f32.mxu0 0.0
        %1329 = vmatmul.mubr.f32.gmra.mxu0 %v1207
        %v1330 = vpop.f32.mrf.mxu0
        %v1331 = vadd.f32 0.0, %v1330
        %v1332 = vpop.f32.mrf.mxu0
        %1333 = vmatprep.mubr.f32.mxu0 0.0
        %1334 = vmatmul.mubr.f32.gmra.mxu0 %v1210
        %v1335 = vpop.f32.mrf.mxu0
        %v1336 = vadd.f32 0.0, %v1335
        %v1337 = vpop.f32.mrf.mxu0
        %1338 = vmatprep.mubr.f32.mxu0 0.0
        %1339 = vmatmul.mubr.f32.gmra.mxu0 %v1213
        %v1340 = vpop.f32.mrf.mxu0
        %v1341 = vadd.f32 0.0, %v1340
        %v1342 = vpop.f32.mrf.mxu0
        %1343 = vmatprep.mubr.f32.mxu0 0.0
        %1344 = vmatmul.mubr.f32.gmra.mxu0 %v1216
        %v1345 = vpop.f32.mrf.mxu0
        %v1346 = vadd.f32 0.0, %v1345
        %v1347 = vpop.f32.mrf.mxu0
        %1348 = vmatprep.mubr.f32.mxu0 0.0
        %1349 = vmatmul.mubr.f32.gmra.mxu0 %v1219
        %v1350 = vpop.f32.mrf.mxu0
        %v1351 = vadd.f32 0.0, %v1350
        %v1352 = vpop.f32.mrf.mxu0
        %1353 = vmatprep.mubr.f32.mxu0 0.0
        %1354 = vmatmul.mubr.f32.gmra.mxu0 %v1222
        %v1355 = vpop.f32.mrf.mxu0
        %v1356 = vadd.f32 0.0, %v1355
        %v1357 = vpop.f32.mrf.mxu0
        %1358 = vmatprep.mubr.f32.mxu0 0.0
        %1359 = vmatmul.mubr.f32.gmra.mxu0 %v1225
        %v1360 = vpop.f32.mrf.mxu0
        %v1361 = vadd.f32 0.0, %v1360
        %v1362 = vpop.f32.mrf.mxu0
        %1363 = vmatprep.mubr.f32.mxu0 0.0
        %1364 = vmatmul.mubr.f32.gmra.mxu0 %v1228
        %v1365 = vpop.f32.mrf.mxu0
        %v1366 = vadd.f32 0.0, %v1365
        %v1367 = vpop.f32.mrf.mxu0
        %1368 = vmatprep.mubr.f32.mxu0 0.0
        %1369 = vmatmul.mubr.f32.gmra.mxu0 %v1231
        %v1370 = vpop.f32.mrf.mxu0
        %v1371 = vadd.f32 0.0, %v1370
        %v1372 = vpop.f32.mrf.mxu0
        %1373 = vmatprep.mubr.f32.mxu0 0.0
        %1374 = vmatmul.mubr.f32.gmra.mxu0 %v1234
        %v1375 = vpop.f32.mrf.mxu0
        %v1376 = vadd.f32 0.0, %v1375
        %v1377 = vpop.f32.mrf.mxu0
        %1378 = vmatprep.mubr.f32.mxu0 0.0
        %1379 = vmatmul.mubr.f32.gmra.mxu0 %v1237
        %v1380 = vpop.f32.mrf.mxu0
        %v1381 = vadd.f32 0.0, %v1380
        %v1382 = vpop.f32.mrf.mxu0
        %1383 = vdwg.mxu0
        %1384 = vst.msk [vmem:[#allocation3] sm:$0xff] %vm1190, %v1306
        %1385 = vst.msk [vmem:[#allocation3 + $0x8] sm:$0xff] %vm1190, %v1311
        %1386 = vst.msk [vmem:[#allocation3 + $0x10] sm:$0xff] %vm1190, %v1316
        %1387 = vst.msk [vmem:[#allocation3 + $0x18] sm:$0xff] %vm1190, %v1321
        %1388 = vst.msk [vmem:[#allocation3 + $0x20] sm:$0xff] %vm1190, %v1326
        %1389 = vst.msk [vmem:[#allocation3 + $0x28] sm:$0xff] %vm1190, %v1331
        %1390 = vst.msk [vmem:[#allocation3 + $0x30] sm:$0xff] %vm1190, %v1336
        %1391 = vst.msk [vmem:[#allocation3 + $0x38] sm:$0xff] %vm1190, %v1341
        %1392 = vst.msk [vmem:[#allocation3 + $0x40] sm:$0xff] %vm1190, %v1346
        %1393 = vst.msk [vmem:[#allocation3 + $0x48] sm:$0xff] %vm1190, %v1351
        %1394 = vst.msk [vmem:[#allocation3 + $0x50] sm:$0xff] %vm1190, %v1356
        %1395 = vst.msk [vmem:[#allocation3 + $0x58] sm:$0xff] %vm1190, %v1361
        %1396 = vst.msk [vmem:[#allocation3 + $0x60] sm:$0xff] %vm1190, %v1366
        %1397 = vst.msk [vmem:[#allocation3 + $0x68] sm:$0xff] %vm1190, %v1371
        %1398 = vst.msk [vmem:[#allocation3 + $0x70] sm:$0xff] %vm1190, %v1376
        %1399 = vst.msk [vmem:[#allocation3 + $0x78] sm:$0xff] %vm1190, %v1381
        %v1400 = vld [vmem:[%s628] sm:$0x1]
        %v1402 = vsel %vm1190, %v1400, 0
        %v1405 = vsel %vm1190, %v1306, 0
        %v1408 = vsel %vm1190, %v1311, 0
        %v1411 = vsel %vm1190, %v1316, 0
        %v1414 = vsel %vm1190, %v1321, 0
        %v1417 = vsel %vm1190, %v1326, 0
        %v1420 = vsel %vm1190, %v1331, 0
        %v1423 = vsel %vm1190, %v1336, 0
        %v1426 = vsel %vm1190, %v1341, 0
        %v1429 = vsel %vm1190, %v1346, 0
        %v1432 = vsel %vm1190, %v1351, 0
        %v1435 = vsel %vm1190, %v1356, 0
        %v1438 = vsel %vm1190, %v1361, 0
        %v1441 = vsel %vm1190, %v1366, 0
        %v1444 = vsel %vm1190, %v1371, 0
        %v1447 = vsel %vm1190, %v1376, 0
        %v1450 = vsel %vm1190, %v1381, 0
        %1452 = vmatprep.subr.mxu0 0.0
        %1453 = vmatpush1.xpose.msra.mxu0 %v1450
        %1454 = vmatprep.subr.mxu0 0.0
        %1455 = vmatpush1.xpose.msra.mxu0 %v1447
        %1456 = vmatprep.subr.mxu0 0.0
        %1457 = vmatpush1.xpose.msra.mxu0 %v1444
        %1458 = vmatprep.subr.mxu0 0.0
        %1459 = vmatpush1.xpose.msra.mxu0 %v1441
        %1460 = vmatprep.subr.mxu0 0.0
        %1461 = vmatpush1.xpose.msra.mxu0 %v1438
        %1462 = vmatprep.subr.mxu0 0.0
        %1463 = vmatpush1.xpose.msra.mxu0 %v1435
        %1464 = vmatprep.subr.mxu0 0.0
        %1465 = vmatpush1.xpose.msra.mxu0 %v1432
        %1466 = vmatprep.subr.mxu0 0.0
        %1467 = vmatpush1.xpose.msra.mxu0 %v1429
        %1468 = vmatprep.subr.mxu0 0.0
        %1469 = vmatpush1.xpose.msra.mxu0 %v1426
        %1470 = vmatprep.subr.mxu0 0.0
        %1471 = vmatpush1.xpose.msra.mxu0 %v1423
        %1472 = vmatprep.subr.mxu0 0.0
        %1473 = vmatpush1.xpose.msra.mxu0 %v1420
        %1474 = vmatprep.subr.mxu0 0.0
        %1475 = vmatpush1.xpose.msra.mxu0 %v1417
        %1476 = vmatprep.subr.mxu0 0.0
        %1477 = vmatpush1.xpose.msra.mxu0 %v1414
        %1478 = vmatprep.subr.mxu0 0.0
        %1479 = vmatpush1.xpose.msra.mxu0 %v1411
        %1480 = vmatprep.subr.mxu0 0.0
        %1481 = vmatpush1.xpose.msra.mxu0 %v1408
        %1482 = vmatprep.subr.mxu0 0.0
        %1483 = vmatpush1.xpose.msra.mxu0 %v1405
        %1484 = vmatprep.subr.mxu0 0.0
        %1485 = vmatpush2.xpose.msra.mxu0 0.0
        %1486 = vmatprep.subr.mxu0 0.0
        %1487 = vmatpush2.xpose.msra.mxu0 0.0
        %1488 = vmatprep.subr.mxu0 0.0
        %1489 = vmatpush2.xpose.msra.mxu0 0.0
        %1490 = vmatprep.subr.mxu0 0.0
        %1491 = vmatpush2.xpose.msra.mxu0 0.0
        %1492 = vmatprep.subr.mxu0 0.0
        %1493 = vmatpush2.xpose.msra.mxu0 0.0
        %1494 = vmatprep.subr.mxu0 0.0
        %1495 = vmatpush2.xpose.msra.mxu0 0.0
        %1496 = vmatprep.subr.mxu0 0.0
        %1497 = vmatpush2.xpose.msra.mxu0 0.0
        %1498 = vmatprep.subr.mxu0 0.0
        %1499 = vmatpush2.xpose.msra.mxu0 0.0
        %1500 = vmatprep.subr.mxu0 0.0
        %1501 = vmatpush2.xpose.msra.mxu0 0.0
        %1502 = vmatprep.subr.mxu0 0.0
        %1503 = vmatpush2.xpose.msra.mxu0 0.0
        %1504 = vmatprep.subr.mxu0 0.0
        %1505 = vmatpush2.xpose.msra.mxu0 0.0
        %1506 = vmatprep.subr.mxu0 0.0
        %1507 = vmatpush2.xpose.msra.mxu0 0.0
        %1508 = vmatprep.subr.mxu0 0.0
        %1509 = vmatpush2.xpose.msra.mxu0 0.0
        %1510 = vmatprep.subr.mxu0 0.0
        %1511 = vmatpush2.xpose.msra.mxu0 0.0
        %1512 = vmatprep.subr.mxu0 0.0
        %1513 = vmatpush2.xpose.msra.mxu0 0.0
        %1514 = vmatprep.subr.mxu0 0.0
        %1515 = vmatpush2.xpose.msra.mxu0 0.0
        %1516 = vmatprep.mubr.f32.mxu0 0.0
        %1517 = vmatmul.mubr.f32.gmra.mxu0 %v1402
        %v1518 = vpop.f32.mrf.mxu0
        %v1519 = vadd.f32 0.0, %v1518
        %v1520 = vpop.f32.mrf.mxu0
        %1521 = vdwg.mxu0
        %1522 = vst [vmem:[#allocation4] sm:$0x1] %v1519
      $region92: #{gatgraph_forward.1} parent=83 // pred_fallthru
        _
      %v1523 = vld [vmem:[#allocation3] sm:$0xff]
      %v1524 = vld [vmem:[#allocation3 + $0x8] sm:$0xff]
      %v1525 = vld [vmem:[#allocation3 + $0x10] sm:$0xff]
      %v1526 = vld [vmem:[#allocation3 + $0x18] sm:$0xff]
      %v1527 = vld [vmem:[#allocation3 + $0x20] sm:$0xff]
      %v1528 = vld [vmem:[#allocation3 + $0x28] sm:$0xff]
      %v1529 = vld [vmem:[#allocation3 + $0x30] sm:$0xff]
      %v1530 = vld [vmem:[#allocation3 + $0x38] sm:$0xff]
      %v1531 = vld [vmem:[#allocation3 + $0x40] sm:$0xff]
      %v1532 = vld [vmem:[#allocation3 + $0x48] sm:$0xff]
      %v1533 = vld [vmem:[#allocation3 + $0x50] sm:$0xff]
      %v1534 = vld [vmem:[#allocation3 + $0x58] sm:$0xff]
      %v1535 = vld [vmem:[#allocation3 + $0x60] sm:$0xff]
      %v1536 = vld [vmem:[#allocation3 + $0x68] sm:$0xff]
      %v1537 = vld [vmem:[#allocation3 + $0x70] sm:$0xff]
      %v1538 = vld [vmem:[#allocation3 + $0x78] sm:$0xff]
      %s1539 = scalar_lea.vmem [#allocation3], %s641
      %v1540 = vld [vmem:[%s1539] sm:$0xff]
      %v1541 = vld [vmem:[%s1539 + $0x8] sm:$0xff]
      %v1542 = vld [vmem:[%s1539 + $0x10] sm:$0xff]
      %v1543 = vld [vmem:[%s1539 + $0x18] sm:$0xff]
      %v1544 = vld [vmem:[%s1539 + $0x20] sm:$0xff]
      %v1545 = vld [vmem:[%s1539 + $0x28] sm:$0xff]
      %v1546 = vld [vmem:[%s1539 + $0x30] sm:$0xff]
      %v1547 = vld [vmem:[%s1539 + $0x38] sm:$0xff]
      %v1548 = vld [vmem:[%s1539 + $0x40] sm:$0xff]
      %v1549 = vld [vmem:[%s1539 + $0x48] sm:$0xff]
      %v1550 = vld [vmem:[%s1539 + $0x50] sm:$0xff]
      %v1551 = vld [vmem:[%s1539 + $0x58] sm:$0xff]
      %v1552 = vld [vmem:[%s1539 + $0x60] sm:$0xff]
      %v1553 = vld [vmem:[%s1539 + $0x68] sm:$0xff]
      %v1554 = vld [vmem:[%s1539 + $0x70] sm:$0xff]
      %v1555 = vld [vmem:[%s1539 + $0x78] sm:$0xff]
      %v1556 = vld [vmem:[%s625] sm:$0xff]
      %v1557 = vld [vmem:[%s625 + $0x8] sm:$0xff]
      %v1558 = vld [vmem:[%s625 + $0x10] sm:$0xff]
      %v1559 = vld [vmem:[%s625 + $0x18] sm:$0xff]
      %v1560 = vld [vmem:[%s625 + $0x20] sm:$0xff]
      %v1561 = vld [vmem:[%s625 + $0x28] sm:$0xff]
      %v1562 = vld [vmem:[%s625 + $0x30] sm:$0xff]
      %v1563 = vld [vmem:[%s625 + $0x38] sm:$0xff]
      %vm1564 = vcmask 523264
      %v1566 = vsel %vm1564, %v1540, 0
      %v1569 = vsel %vm1564, %v1541, 0
      %v1572 = vsel %vm1564, %v1542, 0
      %v1575 = vsel %vm1564, %v1543, 0
      %v1578 = vsel %vm1564, %v1544, 0
      %v1581 = vsel %vm1564, %v1545, 0
      %v1584 = vsel %vm1564, %v1546, 0
      %v1587 = vsel %vm1564, %v1547, 0
      %v1590 = vsel %vm1564, %v1548, 0
      %v1593 = vsel %vm1564, %v1549, 0
      %v1596 = vsel %vm1564, %v1550, 0
      %v1599 = vsel %vm1564, %v1551, 0
      %v1602 = vsel %vm1564, %v1552, 0
      %v1605 = vsel %vm1564, %v1553, 0
      %v1608 = vsel %vm1564, %v1554, 0
      %v1611 = vsel %vm1564, %v1555, 0
      %1613 = vmatprep.subr.mxu0 0.0
      %1614 = vmatpush1.msra.mxu0 0.0
      %1615 = vmatprep.subr.mxu0 0.0
      %1616 = vmatpush1.msra.mxu0 0.0
      %1617 = vmatprep.subr.mxu0 0.0
      %1618 = vmatpush1.msra.mxu0 0.0
      %1619 = vmatprep.subr.mxu0 0.0
      %1620 = vmatpush1.msra.mxu0 0.0
      %1621 = vmatprep.subr.mxu0 0.0
      %1622 = vmatpush1.msra.mxu0 0.0
      %1623 = vmatprep.subr.mxu0 0.0
      %1624 = vmatpush1.msra.mxu0 0.0
      %1625 = vmatprep.subr.mxu0 0.0
      %1626 = vmatpush1.msra.mxu0 0.0
      %1627 = vmatprep.subr.mxu0 0.0
      %1628 = vmatpush1.msra.mxu0 0.0
      %1629 = vmatprep.subr.mxu0 0.0
      %1630 = vmatpush1.msra.mxu0 %v1563
      %1631 = vmatprep.subr.mxu0 0.0
      %1632 = vmatpush1.msra.mxu0 %v1562
      %1633 = vmatprep.subr.mxu0 0.0
      %1634 = vmatpush1.msra.mxu0 %v1561
      %1635 = vmatprep.subr.mxu0 0.0
      %1636 = vmatpush1.msra.mxu0 %v1560
      %1637 = vmatprep.subr.mxu0 0.0
      %1638 = vmatpush1.msra.mxu0 %v1559
      %1639 = vmatprep.subr.mxu0 0.0
      %1640 = vmatpush1.msra.mxu0 %v1558
      %1641 = vmatprep.subr.mxu0 0.0
      %1642 = vmatpush1.msra.mxu0 %v1557
      %1643 = vmatprep.subr.mxu0 0.0
      %1644 = vmatpush1.msra.mxu0 %v1556
      %1645 = vmatprep.subr.mxu0 0.0
      %1646 = vmatpush2.msra.mxu0 0.0
      %1647 = vmatprep.subr.mxu0 0.0
      %1648 = vmatpush2.msra.mxu0 0.0
      %1649 = vmatprep.subr.mxu0 0.0
      %1650 = vmatpush2.msra.mxu0 0.0
      %1651 = vmatprep.subr.mxu0 0.0
      %1652 = vmatpush2.msra.mxu0 0.0
      %1653 = vmatprep.subr.mxu0 0.0
      %1654 = vmatpush2.msra.mxu0 0.0
      %1655 = vmatprep.subr.mxu0 0.0
      %1656 = vmatpush2.msra.mxu0 0.0
      %1657 = vmatprep.subr.mxu0 0.0
      %1658 = vmatpush2.msra.mxu0 0.0
      %1659 = vmatprep.subr.mxu0 0.0
      %1660 = vmatpush2.msra.mxu0 0.0
      %1661 = vmatprep.subr.mxu0 0.0
      %1662 = vmatpush2.msra.mxu0 0.0
      %1663 = vmatprep.subr.mxu0 0.0
      %1664 = vmatpush2.msra.mxu0 0.0
      %1665 = vmatprep.subr.mxu0 0.0
      %1666 = vmatpush2.msra.mxu0 0.0
      %1667 = vmatprep.subr.mxu0 0.0
      %1668 = vmatpush2.msra.mxu0 0.0
      %1669 = vmatprep.subr.mxu0 0.0
      %1670 = vmatpush2.msra.mxu0 0.0
      %1671 = vmatprep.subr.mxu0 0.0
      %1672 = vmatpush2.msra.mxu0 0.0
      %1673 = vmatprep.subr.mxu0 0.0
      %1674 = vmatpush2.msra.mxu0 0.0
      %1675 = vmatprep.subr.mxu0 0.0
      %1676 = vmatpush2.msra.mxu0 0.0
      %1677 = vmatprep.mubr.f32.mxu0 0.0
      %1678 = vmatmul.mubr.f32.gmra.mxu0 %v1566
      %v1679 = vpop.f32.mrf.mxu0
      %v1680 = vadd.f32 0.0, %v1679
      %v1681 = vpop.f32.mrf.mxu0
      %1682 = vmatprep.mubr.f32.mxu0 0.0
      %1683 = vmatmul.mubr.f32.gmra.mxu0 %v1569
      %v1684 = vpop.f32.mrf.mxu0
      %v1685 = vadd.f32 0.0, %v1684
      %v1686 = vpop.f32.mrf.mxu0
      %1687 = vmatprep.mubr.f32.mxu0 0.0
      %1688 = vmatmul.mubr.f32.gmra.mxu0 %v1572
      %v1689 = vpop.f32.mrf.mxu0
      %v1690 = vadd.f32 0.0, %v1689
      %v1691 = vpop.f32.mrf.mxu0
      %1692 = vmatprep.mubr.f32.mxu0 0.0
      %1693 = vmatmul.mubr.f32.gmra.mxu0 %v1575
      %v1694 = vpop.f32.mrf.mxu0
      %v1695 = vadd.f32 0.0, %v1694
      %v1696 = vpop.f32.mrf.mxu0
      %1697 = vmatprep.mubr.f32.mxu0 0.0
      %1698 = vmatmul.mubr.f32.gmra.mxu0 %v1578
      %v1699 = vpop.f32.mrf.mxu0
      %v1700 = vadd.f32 0.0, %v1699
      %v1701 = vpop.f32.mrf.mxu0
      %1702 = vmatprep.mubr.f32.mxu0 0.0
      %1703 = vmatmul.mubr.f32.gmra.mxu0 %v1581
      %v1704 = vpop.f32.mrf.mxu0
      %v1705 = vadd.f32 0.0, %v1704
      %v1706 = vpop.f32.mrf.mxu0
      %1707 = vmatprep.mubr.f32.mxu0 0.0
      %1708 = vmatmul.mubr.f32.gmra.mxu0 %v1584
      %v1709 = vpop.f32.mrf.mxu0
      %v1710 = vadd.f32 0.0, %v1709
      %v1711 = vpop.f32.mrf.mxu0
      %1712 = vmatprep.mubr.f32.mxu0 0.0
      %1713 = vmatmul.mubr.f32.gmra.mxu0 %v1587
      %v1714 = vpop.f32.mrf.mxu0
      %v1715 = vadd.f32 0.0, %v1714
      %v1716 = vpop.f32.mrf.mxu0
      %1717 = vmatprep.mubr.f32.mxu0 0.0
      %1718 = vmatmul.mubr.f32.gmra.mxu0 %v1590
      %v1719 = vpop.f32.mrf.mxu0
      %v1720 = vadd.f32 0.0, %v1719
      %v1721 = vpop.f32.mrf.mxu0
      %1722 = vmatprep.mubr.f32.mxu0 0.0
      %1723 = vmatmul.mubr.f32.gmra.mxu0 %v1593
      %v1724 = vpop.f32.mrf.mxu0
      %v1725 = vadd.f32 0.0, %v1724
      %v1726 = vpop.f32.mrf.mxu0
      %1727 = vmatprep.mubr.f32.mxu0 0.0
      %1728 = vmatmul.mubr.f32.gmra.mxu0 %v1596
      %v1729 = vpop.f32.mrf.mxu0
      %v1730 = vadd.f32 0.0, %v1729
      %v1731 = vpop.f32.mrf.mxu0
      %1732 = vmatprep.mubr.f32.mxu0 0.0
      %1733 = vmatmul.mubr.f32.gmra.mxu0 %v1599
      %v1734 = vpop.f32.mrf.mxu0
      %v1735 = vadd.f32 0.0, %v1734
      %v1736 = vpop.f32.mrf.mxu0
      %1737 = vmatprep.mubr.f32.mxu0 0.0
      %1738 = vmatmul.mubr.f32.gmra.mxu0 %v1602
      %v1739 = vpop.f32.mrf.mxu0
      %v1740 = vadd.f32 0.0, %v1739
      %v1741 = vpop.f32.mrf.mxu0
      %1742 = vmatprep.mubr.f32.mxu0 0.0
      %1743 = vmatmul.mubr.f32.gmra.mxu0 %v1605
      %v1744 = vpop.f32.mrf.mxu0
      %v1745 = vadd.f32 0.0, %v1744
      %v1746 = vpop.f32.mrf.mxu0
      %1747 = vmatprep.mubr.f32.mxu0 0.0
      %1748 = vmatmul.mubr.f32.gmra.mxu0 %v1608
      %v1749 = vpop.f32.mrf.mxu0
      %v1750 = vadd.f32 0.0, %v1749
      %v1751 = vpop.f32.mrf.mxu0
      %1752 = vmatprep.mubr.f32.mxu0 0.0
      %1753 = vmatmul.mubr.f32.gmra.mxu0 %v1611
      %v1754 = vpop.f32.mrf.mxu0
      %v1755 = vadd.f32 0.0, %v1754
      %v1756 = vpop.f32.mrf.mxu0
      %1757 = vdwg.mxu0
      %v1758 = vld [vmem:[#allocation4] sm:$0x1]
      %1760 = vset.pattern.permute.xlu0 0
      %1761 = vperm.xlu0 %1760, %v1680
      %v1762 = vpop.permute.xlu0 %1761
      %1765 = vset.pattern.permute.xlu0 0
      %1766 = vperm.xlu0 %1765, %v1685
      %v1767 = vpop.permute.xlu0 %1766
      %1770 = vset.pattern.permute.xlu0 0
      %1771 = vperm.xlu0 %1770, %v1690
      %v1772 = vpop.permute.xlu0 %1771
      %1775 = vset.pattern.permute.xlu0 0
      %1776 = vperm.xlu0 %1775, %v1695
      %v1777 = vpop.permute.xlu0 %1776
      %1780 = vset.pattern.permute.xlu0 0
      %1781 = vperm.xlu0 %1780, %v1700
      %v1782 = vpop.permute.xlu0 %1781
      %1785 = vset.pattern.permute.xlu0 0
      %1786 = vperm.xlu0 %1785, %v1705
      %v1787 = vpop.permute.xlu0 %1786
      %1790 = vset.pattern.permute.xlu0 0
      %1791 = vperm.xlu0 %1790, %v1710
      %v1792 = vpop.permute.xlu0 %1791
      %1795 = vset.pattern.permute.xlu0 0
      %1796 = vperm.xlu0 %1795, %v1715
      %v1797 = vpop.permute.xlu0 %1796
      %1800 = vset.pattern.permute.xlu0 0
      %1801 = vperm.xlu0 %1800, %v1720
      %v1802 = vpop.permute.xlu0 %1801
      %1805 = vset.pattern.permute.xlu0 0
      %1806 = vperm.xlu0 %1805, %v1725
      %v1807 = vpop.permute.xlu0 %1806
      %1810 = vset.pattern.permute.xlu0 0
      %1811 = vperm.xlu0 %1810, %v1730
      %v1812 = vpop.permute.xlu0 %1811
      %1815 = vset.pattern.permute.xlu0 0
      %1816 = vperm.xlu0 %1815, %v1735
      %v1817 = vpop.permute.xlu0 %1816
      %1820 = vset.pattern.permute.xlu0 0
      %1821 = vperm.xlu0 %1820, %v1740
      %v1822 = vpop.permute.xlu0 %1821
      %1825 = vset.pattern.permute.xlu0 0
      %1826 = vperm.xlu0 %1825, %v1745
      %v1827 = vpop.permute.xlu0 %1826
      %1830 = vset.pattern.permute.xlu0 0
      %1831 = vperm.xlu0 %1830, %v1750
      %v1832 = vpop.permute.xlu0 %1831
      %1835 = vset.pattern.permute.xlu0 0
      %1836 = vperm.xlu0 %1835, %v1755
      %v1837 = vpop.permute.xlu0 %1836
      %v1840 = vlaneseq
      %v1841 = vshrl.u32 %v1840, 7
      %v1842 = vsub.s32 0, %v1841
      %v1843 = vrot.slane %v1758, %v1842
      %v1845 = vadd.f32 %v1762, %v1843
      %v1846 = vadd.f32 %v1767, %v1843
      %v1847 = vadd.f32 %v1772, %v1843
      %v1848 = vadd.f32 %v1777, %v1843
      %v1849 = vadd.f32 %v1782, %v1843
      %v1850 = vadd.f32 %v1787, %v1843
      %v1851 = vadd.f32 %v1792, %v1843
      %v1852 = vadd.f32 %v1797, %v1843
      %v1853 = vadd.f32 %v1802, %v1843
      %v1854 = vadd.f32 %v1807, %v1843
      %v1855 = vadd.f32 %v1812, %v1843
      %v1856 = vadd.f32 %v1817, %v1843
      %v1857 = vadd.f32 %v1822, %v1843
      %v1858 = vadd.f32 %v1827, %v1843
      %v1859 = vadd.f32 %v1832, %v1843
      %v1860 = vadd.f32 %v1837, %v1843
      %v1861 = vld [vmem:[%s608] sm:$0xf]
      %v1862 = vld [vmem:[%s608 + $0x4] sm:$0xf]
      %v1863 = vld [vmem:[%s608 + $0x8] sm:$0xf]
      %v1864 = vld [vmem:[%s608 + $0xc] sm:$0xf]
      %v1865 = vld [vmem:[%s608 + $0x10] sm:$0xf]
      %v1866 = vld [vmem:[%s608 + $0x14] sm:$0xf]
      %v1867 = vld [vmem:[%s608 + $0x18] sm:$0xf]
      %v1868 = vld [vmem:[%s608 + $0x1c] sm:$0xf]
      %v1869 = vld [vmem:[%s608 + $0x20] sm:$0xf]
      %v1870 = vld [vmem:[%s608 + $0x24] sm:$0xf]
      %v1871 = vld [vmem:[%s608 + $0x28] sm:$0xf]
      %v1872 = vld [vmem:[%s608 + $0x2c] sm:$0xf]
      %v1873 = vld [vmem:[%s608 + $0x30] sm:$0xf]
      %v1874 = vld [vmem:[%s608 + $0x34] sm:$0xf]
      %v1875 = vld [vmem:[%s608 + $0x38] sm:$0xf]
      %v1876 = vld [vmem:[%s608 + $0x3c] sm:$0xf]
      %v1877 = vunpack.c.l.bf16 %v1861
      %v1878 = vunpack.c.l.bf16 %v1862
      %v1879 = vunpack.c.l.bf16 %v1863
      %v1880 = vunpack.c.l.bf16 %v1864
      %v1881 = vunpack.c.l.bf16 %v1865
      %v1882 = vunpack.c.l.bf16 %v1866
      %v1883 = vunpack.c.l.bf16 %v1867
      %v1884 = vunpack.c.l.bf16 %v1868
      %v1885 = vunpack.c.l.bf16 %v1869
      %v1886 = vunpack.c.l.bf16 %v1870
      %v1887 = vunpack.c.l.bf16 %v1871
      %v1888 = vunpack.c.l.bf16 %v1872
      %v1889 = vunpack.c.l.bf16 %v1873
      %v1890 = vunpack.c.l.bf16 %v1874
      %v1891 = vunpack.c.l.bf16 %v1875
      %v1892 = vunpack.c.l.bf16 %v1876
      %v1893 = vld [vmem:[%s631] sm:$0x1]
      %v1895 = vlaneseq
      %v1896 = vshrl.u32 %v1895, 7
      %v1897 = vsub.s32 0, %v1896
      %v1898 = vrot.slane %v1893, %v1897
      %1899 = vset.pattern.permute.xlu0 0
      %1900 = vperm.xlu0 %1899, %v1898
      %v1901 = vpop.permute.xlu0 %1900
      %v1903 = vmul.f32 %v1877, %v1901
      %v1904 = vmul.f32 %v1878, %v1901
      %v1905 = vmul.f32 %v1879, %v1901
      %v1906 = vmul.f32 %v1880, %v1901
      %v1907 = vmul.f32 %v1881, %v1901
      %v1908 = vmul.f32 %v1882, %v1901
      %v1909 = vmul.f32 %v1883, %v1901
      %v1910 = vmul.f32 %v1884, %v1901
      %v1911 = vmul.f32 %v1885, %v1901
      %v1912 = vmul.f32 %v1886, %v1901
      %v1913 = vmul.f32 %v1887, %v1901
      %v1914 = vmul.f32 %v1888, %v1901
      %v1915 = vmul.f32 %v1889, %v1901
      %v1916 = vmul.f32 %v1890, %v1901
      %v1917 = vmul.f32 %v1891, %v1901
      %v1918 = vmul.f32 %v1892, %v1901
      %v1919 = vadd.f32 %v1845, %v1903
      %v1920 = vadd.f32 %v1846, %v1904
      %v1921 = vadd.f32 %v1847, %v1905
      %v1922 = vadd.f32 %v1848, %v1906
      %v1923 = vadd.f32 %v1849, %v1907
      %v1924 = vadd.f32 %v1850, %v1908
      %v1925 = vadd.f32 %v1851, %v1909
      %v1926 = vadd.f32 %v1852, %v1910
      %v1927 = vadd.f32 %v1853, %v1911
      %v1928 = vadd.f32 %v1854, %v1912
      %v1929 = vadd.f32 %v1855, %v1913
      %v1930 = vadd.f32 %v1856, %v1914
      %v1931 = vadd.f32 %v1857, %v1915
      %v1932 = vadd.f32 %v1858, %v1916
      %v1933 = vadd.f32 %v1859, %v1917
      %v1934 = vadd.f32 %v1860, %v1918
      %v1935 = vld [vmem:[%s614] sm:$0xf]
      %v1936 = vld [vmem:[%s614 + $0x4] sm:$0xf]
      %v1937 = vld [vmem:[%s614 + $0x8] sm:$0xf]
      %v1938 = vld [vmem:[%s614 + $0xc] sm:$0xf]
      %v1939 = vld [vmem:[%s614 + $0x10] sm:$0xf]
      %v1940 = vld [vmem:[%s614 + $0x14] sm:$0xf]
      %v1941 = vld [vmem:[%s614 + $0x18] sm:$0xf]
      %v1942 = vld [vmem:[%s614 + $0x1c] sm:$0xf]
      %v1943 = vld [vmem:[%s614 + $0x20] sm:$0xf]
      %v1944 = vld [vmem:[%s614 + $0x24] sm:$0xf]
      %v1945 = vld [vmem:[%s614 + $0x28] sm:$0xf]
      %v1946 = vld [vmem:[%s614 + $0x2c] sm:$0xf]
      %v1947 = vld [vmem:[%s614 + $0x30] sm:$0xf]
      %v1948 = vld [vmem:[%s614 + $0x34] sm:$0xf]
      %v1949 = vld [vmem:[%s614 + $0x38] sm:$0xf]
      %v1950 = vld [vmem:[%s614 + $0x3c] sm:$0xf]
      %v1951 = vunpack.c.l.bf16 %v1935
      %v1952 = vunpack.c.l.bf16 %v1936
      %v1953 = vunpack.c.l.bf16 %v1937
      %v1954 = vunpack.c.l.bf16 %v1938
      %v1955 = vunpack.c.l.bf16 %v1939
      %v1956 = vunpack.c.l.bf16 %v1940
      %v1957 = vunpack.c.l.bf16 %v1941
      %v1958 = vunpack.c.l.bf16 %v1942
      %v1959 = vunpack.c.l.bf16 %v1943
      %v1960 = vunpack.c.l.bf16 %v1944
      %v1961 = vunpack.c.l.bf16 %v1945
      %v1962 = vunpack.c.l.bf16 %v1946
      %v1963 = vunpack.c.l.bf16 %v1947
      %v1964 = vunpack.c.l.bf16 %v1948
      %v1965 = vunpack.c.l.bf16 %v1949
      %v1966 = vunpack.c.l.bf16 %v1950
      %v1967 = vadd.f32 %v1919, %v1951
      %v1968 = vadd.f32 %v1920, %v1952
      %v1969 = vadd.f32 %v1921, %v1953
      %v1970 = vadd.f32 %v1922, %v1954
      %v1971 = vadd.f32 %v1923, %v1955
      %v1972 = vadd.f32 %v1924, %v1956
      %v1973 = vadd.f32 %v1925, %v1957
      %v1974 = vadd.f32 %v1926, %v1958
      %v1975 = vadd.f32 %v1927, %v1959
      %v1976 = vadd.f32 %v1928, %v1960
      %v1977 = vadd.f32 %v1929, %v1961
      %v1978 = vadd.f32 %v1930, %v1962
      %v1979 = vadd.f32 %v1931, %v1963
      %v1980 = vadd.f32 %v1932, %v1964
      %v1981 = vadd.f32 %v1933, %v1965
      %v1982 = vadd.f32 %v1934, %v1966
      %v1983 = vmul.f32 %v1967, 0.2
      %v1984 = vmul.f32 %v1968, 0.2
      %v1985 = vmul.f32 %v1969, 0.2
      %v1986 = vmul.f32 %v1970, 0.2
      %v1987 = vmul.f32 %v1971, 0.2
      %v1988 = vmul.f32 %v1972, 0.2
      %v1989 = vmul.f32 %v1973, 0.2
      %v1990 = vmul.f32 %v1974, 0.2
      %v1991 = vmul.f32 %v1975, 0.2
      %v1992 = vmul.f32 %v1976, 0.2
      %v1993 = vmul.f32 %v1977, 0.2
      %v1994 = vmul.f32 %v1978, 0.2
      %v1995 = vmul.f32 %v1979, 0.2
      %v1996 = vmul.f32 %v1980, 0.2
      %v1997 = vmul.f32 %v1981, 0.2
      %v1998 = vmul.f32 %v1982, 0.2
      %v1999 = vmax.f32 %v1967, %v1983
      %v2000 = vmax.f32 %v1968, %v1984
      %v2001 = vmax.f32 %v1969, %v1985
      %v2002 = vmax.f32 %v1970, %v1986
      %v2003 = vmax.f32 %v1971, %v1987
      %v2004 = vmax.f32 %v1972, %v1988
      %v2005 = vmax.f32 %v1973, %v1989
      %v2006 = vmax.f32 %v1974, %v1990
      %v2007 = vmax.f32 %v1975, %v1991
      %v2008 = vmax.f32 %v1976, %v1992
      %v2009 = vmax.f32 %v1977, %v1993
      %v2010 = vmax.f32 %v1978, %v1994
      %v2011 = vmax.f32 %v1979, %v1995
      %v2012 = vmax.f32 %v1980, %v1996
      %v2013 = vmax.f32 %v1981, %v1997
      %v2014 = vmax.f32 %v1982, %v1998
      %2015 = vmax.xlane.f32.xlu0 %v1999
      %v2016 = vpop.xlane.xlu0 %2015
      %2017 = vmax.xlane.f32.xlu0 %v2000
      %v2018 = vpop.xlane.xlu0 %2017
      %2019 = vmax.xlane.f32.xlu0 %v2001
      %v2020 = vpop.xlane.xlu0 %2019
      %2021 = vmax.xlane.f32.xlu0 %v2002
      %v2022 = vpop.xlane.xlu0 %2021
      %2023 = vmax.xlane.f32.xlu0 %v2003
      %v2024 = vpop.xlane.xlu0 %2023
      %2025 = vmax.xlane.f32.xlu0 %v2004
      %v2026 = vpop.xlane.xlu0 %2025
      %2027 = vmax.xlane.f32.xlu0 %v2005
      %v2028 = vpop.xlane.xlu0 %2027
      %2029 = vmax.xlane.f32.xlu0 %v2006
      %v2030 = vpop.xlane.xlu0 %2029
      %2031 = vmax.xlane.f32.xlu0 %v2007
      %v2032 = vpop.xlane.xlu0 %2031
      %2033 = vmax.xlane.f32.xlu0 %v2008
      %v2034 = vpop.xlane.xlu0 %2033
      %2035 = vmax.xlane.f32.xlu0 %v2009
      %v2036 = vpop.xlane.xlu0 %2035
      %2037 = vmax.xlane.f32.xlu0 %v2010
      %v2038 = vpop.xlane.xlu0 %2037
      %2039 = vmax.xlane.f32.xlu0 %v2011
      %v2040 = vpop.xlane.xlu0 %2039
      %2041 = vmax.xlane.f32.xlu0 %v2012
      %v2042 = vpop.xlane.xlu0 %2041
      %2043 = vmax.xlane.f32.xlu0 %v2013
      %v2044 = vpop.xlane.xlu0 %2043
      %2045 = vmax.xlane.f32.xlu0 %v2014
      %v2046 = vpop.xlane.xlu0 %2045
      %v2047 = vsub.f32 %v1999, %v2016
      %v2048 = vsub.f32 %v2000, %v2018
      %v2049 = vsub.f32 %v2001, %v2020
      %v2050 = vsub.f32 %v2002, %v2022
      %v2051 = vsub.f32 %v2003, %v2024
      %v2052 = vsub.f32 %v2004, %v2026
      %v2053 = vsub.f32 %v2005, %v2028
      %v2054 = vsub.f32 %v2006, %v2030
      %v2055 = vsub.f32 %v2007, %v2032
      %v2056 = vsub.f32 %v2008, %v2034
      %v2057 = vsub.f32 %v2009, %v2036
      %v2058 = vsub.f32 %v2010, %v2038
      %v2059 = vsub.f32 %v2011, %v2040
      %v2060 = vsub.f32 %v2012, %v2042
      %v2061 = vsub.f32 %v2013, %v2044
      %v2062 = vsub.f32 %v2014, %v2046
      %v2063 = vmul.f32 %v2047, 1.442695
      %v2064 = vpow.pop %v2063
      %v2065 = vmul.f32 %v2048, 1.442695
      %v2066 = vpow.pop %v2065
      %v2067 = vmul.f32 %v2049, 1.442695
      %v2068 = vpow.pop %v2067
      %v2069 = vmul.f32 %v2050, 1.442695
      %v2070 = vpow.pop %v2069
      %v2071 = vmul.f32 %v2051, 1.442695
      %v2072 = vpow.pop %v2071
      %v2073 = vmul.f32 %v2052, 1.442695
      %v2074 = vpow.pop %v2073
      %v2075 = vmul.f32 %v2053, 1.442695
      %v2076 = vpow.pop %v2075
      %v2077 = vmul.f32 %v2054, 1.442695
      %v2078 = vpow.pop %v2077
      %v2079 = vmul.f32 %v2055, 1.442695
      %v2080 = vpow.pop %v2079
      %v2081 = vmul.f32 %v2056, 1.442695
      %v2082 = vpow.pop %v2081
      %v2083 = vmul.f32 %v2057, 1.442695
      %v2084 = vpow.pop %v2083
      %v2085 = vmul.f32 %v2058, 1.442695
      %v2086 = vpow.pop %v2085
      %v2087 = vmul.f32 %v2059, 1.442695
      %v2088 = vpow.pop %v2087
      %v2089 = vmul.f32 %v2060, 1.442695
      %v2090 = vpow.pop %v2089
      %v2091 = vmul.f32 %v2061, 1.442695
      %v2092 = vpow.pop %v2091
      %v2093 = vmul.f32 %v2062, 1.442695
      %v2094 = vpow.pop %v2093
      %2095 = vadd.xlane.f32.xlu0 %v2064
      %v2096 = vpop.xlane.xlu0 %2095
      %2097 = vadd.xlane.f32.xlu0 %v2066
      %v2098 = vpop.xlane.xlu0 %2097
      %2099 = vadd.xlane.f32.xlu0 %v2068
      %v2100 = vpop.xlane.xlu0 %2099
      %2101 = vadd.xlane.f32.xlu0 %v2070
      %v2102 = vpop.xlane.xlu0 %2101
      %2103 = vadd.xlane.f32.xlu0 %v2072
      %v2104 = vpop.xlane.xlu0 %2103
      %2105 = vadd.xlane.f32.xlu0 %v2074
      %v2106 = vpop.xlane.xlu0 %2105
      %2107 = vadd.xlane.f32.xlu0 %v2076
      %v2108 = vpop.xlane.xlu0 %2107
      %2109 = vadd.xlane.f32.xlu0 %v2078
      %v2110 = vpop.xlane.xlu0 %2109
      %2111 = vadd.xlane.f32.xlu0 %v2080
      %v2112 = vpop.xlane.xlu0 %2111
      %2113 = vadd.xlane.f32.xlu0 %v2082
      %v2114 = vpop.xlane.xlu0 %2113
      %2115 = vadd.xlane.f32.xlu0 %v2084
      %v2116 = vpop.xlane.xlu0 %2115
      %2117 = vadd.xlane.f32.xlu0 %v2086
      %v2118 = vpop.xlane.xlu0 %2117
      %2119 = vadd.xlane.f32.xlu0 %v2088
      %v2120 = vpop.xlane.xlu0 %2119
      %2121 = vadd.xlane.f32.xlu0 %v2090
      %v2122 = vpop.xlane.xlu0 %2121
      %2123 = vadd.xlane.f32.xlu0 %v2092
      %v2124 = vpop.xlane.xlu0 %2123
      %2125 = vadd.xlane.f32.xlu0 %v2094
      %v2126 = vpop.xlane.xlu0 %2125
      %v2127 = vrcp.pop %v2096
      %v2128 = vrcp.pop %v2098
      %v2129 = vrcp.pop %v2100
      %v2130 = vrcp.pop %v2102
      %v2131 = vrcp.pop %v2104
      %v2132 = vrcp.pop %v2106
      %v2133 = vrcp.pop %v2108
      %v2134 = vrcp.pop %v2110
      %v2135 = vrcp.pop %v2112
      %v2136 = vrcp.pop %v2114
      %v2137 = vrcp.pop %v2116
      %v2138 = vrcp.pop %v2118
      %v2139 = vrcp.pop %v2120
      %v2140 = vrcp.pop %v2122
      %v2141 = vrcp.pop %v2124
      %v2142 = vrcp.pop %v2126
      %v2143 = vmul.f32 %v2064, %v2127
      %v2144 = vmul.f32 %v2066, %v2128
      %v2145 = vmul.f32 %v2068, %v2129
      %v2146 = vmul.f32 %v2070, %v2130
      %v2147 = vmul.f32 %v2072, %v2131
      %v2148 = vmul.f32 %v2074, %v2132
      %v2149 = vmul.f32 %v2076, %v2133
      %v2150 = vmul.f32 %v2078, %v2134
      %v2151 = vmul.f32 %v2080, %v2135
      %v2152 = vmul.f32 %v2082, %v2136
      %v2153 = vmul.f32 %v2084, %v2137
      %v2154 = vmul.f32 %v2086, %v2138
      %v2155 = vmul.f32 %v2088, %v2139
      %v2156 = vmul.f32 %v2090, %v2140
      %v2157 = vmul.f32 %v2092, %v2141
      %v2158 = vmul.f32 %v2094, %v2142
      %v2159 = vld [vmem:[%s634] sm:$0x1]
      %v2161 = vlaneseq
      %v2162 = vshrl.u32 %v2161, 7
      %v2163 = vsub.s32 0, %v2162
      %v2164 = vrot.slane %v2159, %v2163
      %2166 = vmatprep.subr.mxu0 0.0
      %2167 = vmatpush1.msra.mxu0 %v1538
      %2168 = vmatprep.subr.mxu0 0.0
      %2169 = vmatpush1.msra.mxu0 %v1537
      %2170 = vmatprep.subr.mxu0 0.0
      %2171 = vmatpush1.msra.mxu0 %v1536
      %2172 = vmatprep.subr.mxu0 0.0
      %2173 = vmatpush1.msra.mxu0 %v1535
      %2174 = vmatprep.subr.mxu0 0.0
      %2175 = vmatpush1.msra.mxu0 %v1534
      %2176 = vmatprep.subr.mxu0 0.0
      %2177 = vmatpush1.msra.mxu0 %v1533
      %2178 = vmatprep.subr.mxu0 0.0
      %2179 = vmatpush1.msra.mxu0 %v1532
      %2180 = vmatprep.subr.mxu0 0.0
      %2181 = vmatpush1.msra.mxu0 %v1531
      %2182 = vmatprep.subr.mxu0 0.0
      %2183 = vmatpush1.msra.mxu0 %v1530
      %2184 = vmatprep.subr.mxu0 0.0
      %2185 = vmatpush1.msra.mxu0 %v1529
      %2186 = vmatprep.subr.mxu0 0.0
      %2187 = vmatpush1.msra.mxu0 %v1528
      %2188 = vmatprep.subr.mxu0 0.0
      %2189 = vmatpush1.msra.mxu0 %v1527
      %2190 = vmatprep.subr.mxu0 0.0
      %2191 = vmatpush1.msra.mxu0 %v1526
      %2192 = vmatprep.subr.mxu0 0.0
      %2193 = vmatpush1.msra.mxu0 %v1525
      %2194 = vmatprep.subr.mxu0 0.0
      %2195 = vmatpush1.msra.mxu0 %v1524
      %2196 = vmatprep.subr.mxu0 0.0
      %2197 = vmatpush1.msra.mxu0 %v1523
      %2198 = vmatprep.subr.mxu0 0.0
      %2199 = vmatpush2.msra.mxu0 0.0
      %2200 = vmatprep.subr.mxu0 0.0
      %2201 = vmatpush2.msra.mxu0 0.0
      %2202 = vmatprep.subr.mxu0 0.0
      %2203 = vmatpush2.msra.mxu0 0.0
      %2204 = vmatprep.subr.mxu0 0.0
      %2205 = vmatpush2.msra.mxu0 0.0
      %2206 = vmatprep.subr.mxu0 0.0
      %2207 = vmatpush2.msra.mxu0 0.0
      %2208 = vmatprep.subr.mxu0 0.0
      %2209 = vmatpush2.msra.mxu0 0.0
      %2210 = vmatprep.subr.mxu0 0.0
      %2211 = vmatpush2.msra.mxu0 0.0
      %2212 = vmatprep.subr.mxu0 0.0
      %2213 = vmatpush2.msra.mxu0 0.0
      %2214 = vmatprep.subr.mxu0 0.0
      %2215 = vmatpush2.msra.mxu0 0.0
      %2216 = vmatprep.subr.mxu0 0.0
      %2217 = vmatpush2.msra.mxu0 0.0
      %2218 = vmatprep.subr.mxu0 0.0
      %2219 = vmatpush2.msra.mxu0 0.0
      %2220 = vmatprep.subr.mxu0 0.0
      %2221 = vmatpush2.msra.mxu0 0.0
      %2222 = vmatprep.subr.mxu0 0.0
      %2223 = vmatpush2.msra.mxu0 0.0
      %2224 = vmatprep.subr.mxu0 0.0
      %2225 = vmatpush2.msra.mxu0 0.0
      %2226 = vmatprep.subr.mxu0 0.0
      %2227 = vmatpush2.msra.mxu0 0.0
      %2228 = vmatprep.subr.mxu0 0.0
      %2229 = vmatpush2.msra.mxu0 0.0
      %2230 = vmatprep.mubr.f32.mxu0 0.0
      %2231 = vmatmul.mubr.f32.gmra.mxu0 %v2143
      %v2232 = vpop.f32.mrf.mxu0
      %v2233 = vadd.f32 %v2164, %v2232
      %v2234 = vpop.f32.mrf.mxu0
      %2235 = vmatprep.mubr.f32.mxu0 0.0
      %2236 = vmatmul.mubr.f32.gmra.mxu0 %v2144
      %v2237 = vpop.f32.mrf.mxu0
      %v2238 = vadd.f32 %v2164, %v2237
      %v2239 = vpop.f32.mrf.mxu0
      %2240 = vmatprep.mubr.f32.mxu0 0.0
      %2241 = vmatmul.mubr.f32.gmra.mxu0 %v2145
      %v2242 = vpop.f32.mrf.mxu0
      %v2243 = vadd.f32 %v2164, %v2242
      %v2244 = vpop.f32.mrf.mxu0
      %2245 = vmatprep.mubr.f32.mxu0 0.0
      %2246 = vmatmul.mubr.f32.gmra.mxu0 %v2146
      %v2247 = vpop.f32.mrf.mxu0
      %v2248 = vadd.f32 %v2164, %v2247
      %v2249 = vpop.f32.mrf.mxu0
      %2250 = vmatprep.mubr.f32.mxu0 0.0
      %2251 = vmatmul.mubr.f32.gmra.mxu0 %v2147
      %v2252 = vpop.f32.mrf.mxu0
      %v2253 = vadd.f32 %v2164, %v2252
      %v2254 = vpop.f32.mrf.mxu0
      %2255 = vmatprep.mubr.f32.mxu0 0.0
      %2256 = vmatmul.mubr.f32.gmra.mxu0 %v2148
      %v2257 = vpop.f32.mrf.mxu0
      %v2258 = vadd.f32 %v2164, %v2257
      %v2259 = vpop.f32.mrf.mxu0
      %2260 = vmatprep.mubr.f32.mxu0 0.0
      %2261 = vmatmul.mubr.f32.gmra.mxu0 %v2149
      %v2262 = vpop.f32.mrf.mxu0
      %v2263 = vadd.f32 %v2164, %v2262
      %v2264 = vpop.f32.mrf.mxu0
      %2265 = vmatprep.mubr.f32.mxu0 0.0
      %2266 = vmatmul.mubr.f32.gmra.mxu0 %v2150
      %v2267 = vpop.f32.mrf.mxu0
      %v2268 = vadd.f32 %v2164, %v2267
      %v2269 = vpop.f32.mrf.mxu0
      %2270 = vmatprep.mubr.f32.mxu0 0.0
      %2271 = vmatmul.mubr.f32.gmra.mxu0 %v2151
      %v2272 = vpop.f32.mrf.mxu0
      %v2273 = vadd.f32 %v2164, %v2272
      %v2274 = vpop.f32.mrf.mxu0
      %2275 = vmatprep.mubr.f32.mxu0 0.0
      %2276 = vmatmul.mubr.f32.gmra.mxu0 %v2152
      %v2277 = vpop.f32.mrf.mxu0
      %v2278 = vadd.f32 %v2164, %v2277
      %v2279 = vpop.f32.mrf.mxu0
      %2280 = vmatprep.mubr.f32.mxu0 0.0
      %2281 = vmatmul.mubr.f32.gmra.mxu0 %v2153
      %v2282 = vpop.f32.mrf.mxu0
      %v2283 = vadd.f32 %v2164, %v2282
      %v2284 = vpop.f32.mrf.mxu0
      %2285 = vmatprep.mubr.f32.mxu0 0.0
      %2286 = vmatmul.mubr.f32.gmra.mxu0 %v2154
      %v2287 = vpop.f32.mrf.mxu0
      %v2288 = vadd.f32 %v2164, %v2287
      %v2289 = vpop.f32.mrf.mxu0
      %2290 = vmatprep.mubr.f32.mxu0 0.0
      %2291 = vmatmul.mubr.f32.gmra.mxu0 %v2155
      %v2292 = vpop.f32.mrf.mxu0
      %v2293 = vadd.f32 %v2164, %v2292
      %v2294 = vpop.f32.mrf.mxu0
      %2295 = vmatprep.mubr.f32.mxu0 0.0
      %2296 = vmatmul.mubr.f32.gmra.mxu0 %v2156
      %v2297 = vpop.f32.mrf.mxu0
      %v2298 = vadd.f32 %v2164, %v2297
      %v2299 = vpop.f32.mrf.mxu0
      %2300 = vmatprep.mubr.f32.mxu0 0.0
      %2301 = vmatmul.mubr.f32.gmra.mxu0 %v2157
      %v2302 = vpop.f32.mrf.mxu0
      %v2303 = vadd.f32 %v2164, %v2302
      %v2304 = vpop.f32.mrf.mxu0
      %2305 = vmatprep.mubr.f32.mxu0 0.0
      %2306 = vmatmul.mubr.f32.gmra.mxu0 %v2158
      %v2307 = vpop.f32.mrf.mxu0
      %v2308 = vadd.f32 %v2164, %v2307
      %v2309 = vpop.f32.mrf.mxu0
      %2310 = vdwg.mxu0
      %s2311 = scalar_lea.vmem [#allocation2], %s641
      %2312 = vst.msk [vmem:[%s2311] sm:$0xff] %vm1564, %v2233
      %2313 = vst.msk [vmem:[%s2311 + $0x8] sm:$0xff] %vm1564, %v2238
      %2314 = vst.msk [vmem:[%s2311 + $0x10] sm:$0xff] %vm1564, %v2243
      %2315 = vst.msk [vmem:[%s2311 + $0x18] sm:$0xff] %vm1564, %v2248
      %2316 = vst.msk [vmem:[%s2311 + $0x20] sm:$0xff] %vm1564, %v2253
      %2317 = vst.msk [vmem:[%s2311 + $0x28] sm:$0xff] %vm1564, %v2258
      %2318 = vst.msk [vmem:[%s2311 + $0x30] sm:$0xff] %vm1564, %v2263
      %2319 = vst.msk [vmem:[%s2311 + $0x38] sm:$0xff] %vm1564, %v2268
      %2320 = vst.msk [vmem:[%s2311 + $0x40] sm:$0xff] %vm1564, %v2273
      %2321 = vst.msk [vmem:[%s2311 + $0x48] sm:$0xff] %vm1564, %v2278
      %2322 = vst.msk [vmem:[%s2311 + $0x50] sm:$0xff] %vm1564, %v2283
      %2323 = vst.msk [vmem:[%s2311 + $0x58] sm:$0xff] %vm1564, %v2288
      %2324 = vst.msk [vmem:[%s2311 + $0x60] sm:$0xff] %vm1564, %v2293
      %2325 = vst.msk [vmem:[%s2311 + $0x68] sm:$0xff] %vm1564, %v2298
      %2326 = vst.msk [vmem:[%s2311 + $0x70] sm:$0xff] %vm1564, %v2303
      %2327 = vst.msk [vmem:[%s2311 + $0x78] sm:$0xff] %vm1564, %v2308
      %p2328 = scmp.eq.s32.totalorder %s31, 2
      // Predicated region
      $region93: #{gatgraph_forward.1} parent=83 // pred_check
        %p2329 = pneg %p2328
      $region94: #{gatgraph_forward.1} parent=83 // pred_check_branch
        %2331 = sbr.rel (%p2329) target = $region96
      $region95: #{gatgraph_forward.1} parent=83 // pred_region
        %v2332 = vld [vmem:[%s12] sm:$0xff]
        %v2333 = vld [vmem:[%s12 + $0x8] sm:$0xff]
        %v2334 = vld [vmem:[%s12 + $0x10] sm:$0xff]
        %v2335 = vld [vmem:[%s12 + $0x18] sm:$0xff]
        %v2336 = vld [vmem:[%s12 + $0x20] sm:$0xff]
        %v2337 = vld [vmem:[%s12 + $0x28] sm:$0xff]
        %v2338 = vld [vmem:[%s12 + $0x30] sm:$0xff]
        %v2339 = vld [vmem:[%s12 + $0x38] sm:$0xff]
        %v2340 = vld [vmem:[%s13] sm:$0x1]
        %v2342 = vlaneseq
        %v2343 = vshrl.u32 %v2342, 7
        %v2344 = vsub.s32 0, %v2343
        %v2345 = vrot.slane %v2340, %v2344
        %v2348 = vsel %vm1564, %v2233, 0
        %v2351 = vsel %vm1564, %v2238, 0
        %v2354 = vsel %vm1564, %v2243, 0
        %v2357 = vsel %vm1564, %v2248, 0
        %v2360 = vsel %vm1564, %v2253, 0
        %v2363 = vsel %vm1564, %v2258, 0
        %v2366 = vsel %vm1564, %v2263, 0
        %v2369 = vsel %vm1564, %v2268, 0
        %v2372 = vsel %vm1564, %v2273, 0
        %v2375 = vsel %vm1564, %v2278, 0
        %v2378 = vsel %vm1564, %v2283, 0
        %v2381 = vsel %vm1564, %v2288, 0
        %v2384 = vsel %vm1564, %v2293, 0
        %v2387 = vsel %vm1564, %v2298, 0
        %v2390 = vsel %vm1564, %v2303, 0
        %v2393 = vsel %vm1564, %v2308, 0
        %2395 = vmatprep.subr.mxu0 0.0
        %2396 = vmatpush1.msra.mxu0 0.0
        %2397 = vmatprep.subr.mxu0 0.0
        %2398 = vmatpush1.msra.mxu0 0.0
        %2399 = vmatprep.subr.mxu0 0.0
        %2400 = vmatpush1.msra.mxu0 0.0
        %2401 = vmatprep.subr.mxu0 0.0
        %2402 = vmatpush1.msra.mxu0 0.0
        %2403 = vmatprep.subr.mxu0 0.0
        %2404 = vmatpush1.msra.mxu0 0.0
        %2405 = vmatprep.subr.mxu0 0.0
        %2406 = vmatpush1.msra.mxu0 0.0
        %2407 = vmatprep.subr.mxu0 0.0
        %2408 = vmatpush1.msra.mxu0 0.0
        %2409 = vmatprep.subr.mxu0 0.0
        %2410 = vmatpush1.msra.mxu0 0.0
        %2411 = vmatprep.subr.mxu0 0.0
        %2412 = vmatpush1.msra.mxu0 %v2339
        %2413 = vmatprep.subr.mxu0 0.0
        %2414 = vmatpush1.msra.mxu0 %v2338
        %2415 = vmatprep.subr.mxu0 0.0
        %2416 = vmatpush1.msra.mxu0 %v2337
        %2417 = vmatprep.subr.mxu0 0.0
        %2418 = vmatpush1.msra.mxu0 %v2336
        %2419 = vmatprep.subr.mxu0 0.0
        %2420 = vmatpush1.msra.mxu0 %v2335
        %2421 = vmatprep.subr.mxu0 0.0
        %2422 = vmatpush1.msra.mxu0 %v2334
        %2423 = vmatprep.subr.mxu0 0.0
        %2424 = vmatpush1.msra.mxu0 %v2333
        %2425 = vmatprep.subr.mxu0 0.0
        %2426 = vmatpush1.msra.mxu0 %v2332
        %2427 = vmatprep.subr.mxu0 0.0
        %2428 = vmatpush2.msra.mxu0 0.0
        %2429 = vmatprep.subr.mxu0 0.0
        %2430 = vmatpush2.msra.mxu0 0.0
        %2431 = vmatprep.subr.mxu0 0.0
        %2432 = vmatpush2.msra.mxu0 0.0
        %2433 = vmatprep.subr.mxu0 0.0
        %2434 = vmatpush2.msra.mxu0 0.0
        %2435 = vmatprep.subr.mxu0 0.0
        %2436 = vmatpush2.msra.mxu0 0.0
        %2437 = vmatprep.subr.mxu0 0.0
        %2438 = vmatpush2.msra.mxu0 0.0
        %2439 = vmatprep.subr.mxu0 0.0
        %2440 = vmatpush2.msra.mxu0 0.0
        %2441 = vmatprep.subr.mxu0 0.0
        %2442 = vmatpush2.msra.mxu0 0.0
        %2443 = vmatprep.subr.mxu0 0.0
        %2444 = vmatpush2.msra.mxu0 0.0
        %2445 = vmatprep.subr.mxu0 0.0
        %2446 = vmatpush2.msra.mxu0 0.0
        %2447 = vmatprep.subr.mxu0 0.0
        %2448 = vmatpush2.msra.mxu0 0.0
        %2449 = vmatprep.subr.mxu0 0.0
        %2450 = vmatpush2.msra.mxu0 0.0
        %2451 = vmatprep.subr.mxu0 0.0
        %2452 = vmatpush2.msra.mxu0 0.0
        %2453 = vmatprep.subr.mxu0 0.0
        %2454 = vmatpush2.msra.mxu0 0.0
        %2455 = vmatprep.subr.mxu0 0.0
        %2456 = vmatpush2.msra.mxu0 0.0
        %2457 = vmatprep.subr.mxu0 0.0
        %2458 = vmatpush2.msra.mxu0 0.0
        %2459 = vmatprep.mubr.f32.mxu0 0.0
        %2460 = vmatmul.mubr.f32.gmra.mxu0 %v2348
        %v2461 = vpop.f32.mrf.mxu0
        %v2462 = vadd.f32 %v2345, %v2461
        %v2463 = vpop.f32.mrf.mxu0
        %2464 = vmatprep.mubr.f32.mxu0 0.0
        %2465 = vmatmul.mubr.f32.gmra.mxu0 %v2351
        %v2466 = vpop.f32.mrf.mxu0
        %v2467 = vadd.f32 %v2345, %v2466
        %v2468 = vpop.f32.mrf.mxu0
        %2469 = vmatprep.mubr.f32.mxu0 0.0
        %2470 = vmatmul.mubr.f32.gmra.mxu0 %v2354
        %v2471 = vpop.f32.mrf.mxu0
        %v2472 = vadd.f32 %v2345, %v2471
        %v2473 = vpop.f32.mrf.mxu0
        %2474 = vmatprep.mubr.f32.mxu0 0.0
        %2475 = vmatmul.mubr.f32.gmra.mxu0 %v2357
        %v2476 = vpop.f32.mrf.mxu0
        %v2477 = vadd.f32 %v2345, %v2476
        %v2478 = vpop.f32.mrf.mxu0
        %2479 = vmatprep.mubr.f32.mxu0 0.0
        %2480 = vmatmul.mubr.f32.gmra.mxu0 %v2360
        %v2481 = vpop.f32.mrf.mxu0
        %v2482 = vadd.f32 %v2345, %v2481
        %v2483 = vpop.f32.mrf.mxu0
        %2484 = vmatprep.mubr.f32.mxu0 0.0
        %2485 = vmatmul.mubr.f32.gmra.mxu0 %v2363
        %v2486 = vpop.f32.mrf.mxu0
        %v2487 = vadd.f32 %v2345, %v2486
        %v2488 = vpop.f32.mrf.mxu0
        %2489 = vmatprep.mubr.f32.mxu0 0.0
        %2490 = vmatmul.mubr.f32.gmra.mxu0 %v2366
        %v2491 = vpop.f32.mrf.mxu0
        %v2492 = vadd.f32 %v2345, %v2491
        %v2493 = vpop.f32.mrf.mxu0
        %2494 = vmatprep.mubr.f32.mxu0 0.0
        %2495 = vmatmul.mubr.f32.gmra.mxu0 %v2369
        %v2496 = vpop.f32.mrf.mxu0
        %v2497 = vadd.f32 %v2345, %v2496
        %v2498 = vpop.f32.mrf.mxu0
        %2499 = vmatprep.mubr.f32.mxu0 0.0
        %2500 = vmatmul.mubr.f32.gmra.mxu0 %v2372
        %v2501 = vpop.f32.mrf.mxu0
        %v2502 = vadd.f32 %v2345, %v2501
        %v2503 = vpop.f32.mrf.mxu0
        %2504 = vmatprep.mubr.f32.mxu0 0.0
        %2505 = vmatmul.mubr.f32.gmra.mxu0 %v2375
        %v2506 = vpop.f32.mrf.mxu0
        %v2507 = vadd.f32 %v2345, %v2506
        %v2508 = vpop.f32.mrf.mxu0
        %2509 = vmatprep.mubr.f32.mxu0 0.0
        %2510 = vmatmul.mubr.f32.gmra.mxu0 %v2378
        %v2511 = vpop.f32.mrf.mxu0
        %v2512 = vadd.f32 %v2345, %v2511
        %v2513 = vpop.f32.mrf.mxu0
        %2514 = vmatprep.mubr.f32.mxu0 0.0
        %2515 = vmatmul.mubr.f32.gmra.mxu0 %v2381
        %v2516 = vpop.f32.mrf.mxu0
        %v2517 = vadd.f32 %v2345, %v2516
        %v2518 = vpop.f32.mrf.mxu0
        %2519 = vmatprep.mubr.f32.mxu0 0.0
        %2520 = vmatmul.mubr.f32.gmra.mxu0 %v2384
        %v2521 = vpop.f32.mrf.mxu0
        %v2522 = vadd.f32 %v2345, %v2521
        %v2523 = vpop.f32.mrf.mxu0
        %2524 = vmatprep.mubr.f32.mxu0 0.0
        %2525 = vmatmul.mubr.f32.gmra.mxu0 %v2387
        %v2526 = vpop.f32.mrf.mxu0
        %v2527 = vadd.f32 %v2345, %v2526
        %v2528 = vpop.f32.mrf.mxu0
        %2529 = vmatprep.mubr.f32.mxu0 0.0
        %2530 = vmatmul.mubr.f32.gmra.mxu0 %v2390
        %v2531 = vpop.f32.mrf.mxu0
        %v2532 = vadd.f32 %v2345, %v2531
        %v2533 = vpop.f32.mrf.mxu0
        %2534 = vmatprep.mubr.f32.mxu0 0.0
        %2535 = vmatmul.mubr.f32.gmra.mxu0 %v2393
        %v2536 = vpop.f32.mrf.mxu0
        %v2537 = vadd.f32 %v2345, %v2536
        %v2538 = vpop.f32.mrf.mxu0
        %2539 = vdwg.mxu0
        %v2540 = vxor.u32 %v2462, 2147483648
        %v2541 = vxor.u32 %v2467, 2147483648
        %v2542 = vxor.u32 %v2472, 2147483648
        %v2543 = vxor.u32 %v2477, 2147483648
        %v2544 = vxor.u32 %v2482, 2147483648
        %v2545 = vxor.u32 %v2487, 2147483648
        %v2546 = vxor.u32 %v2492, 2147483648
        %v2547 = vxor.u32 %v2497, 2147483648
        %v2548 = vxor.u32 %v2502, 2147483648
        %v2549 = vxor.u32 %v2507, 2147483648
        %v2550 = vxor.u32 %v2512, 2147483648
        %v2551 = vxor.u32 %v2517, 2147483648
        %v2552 = vxor.u32 %v2522, 2147483648
        %v2553 = vxor.u32 %v2527, 2147483648
        %v2554 = vxor.u32 %v2532, 2147483648
        %v2555 = vxor.u32 %v2537, 2147483648
        %v2556 = vmul.f32 %v2540, 1.442695
        %v2557 = vpow.pop %v2556
        %v2558 = vmul.f32 %v2541, 1.442695
        %v2559 = vpow.pop %v2558
        %v2560 = vmul.f32 %v2542, 1.442695
        %v2561 = vpow.pop %v2560
        %v2562 = vmul.f32 %v2543, 1.442695
        %v2563 = vpow.pop %v2562
        %v2564 = vmul.f32 %v2544, 1.442695
        %v2565 = vpow.pop %v2564
        %v2566 = vmul.f32 %v2545, 1.442695
        %v2567 = vpow.pop %v2566
        %v2568 = vmul.f32 %v2546, 1.442695
        %v2569 = vpow.pop %v2568
        %v2570 = vmul.f32 %v2547, 1.442695
        %v2571 = vpow.pop %v2570
        %v2572 = vmul.f32 %v2548, 1.442695
        %v2573 = vpow.pop %v2572
        %v2574 = vmul.f32 %v2549, 1.442695
        %v2575 = vpow.pop %v2574
        %v2576 = vmul.f32 %v2550, 1.442695
        %v2577 = vpow.pop %v2576
        %v2578 = vmul.f32 %v2551, 1.442695
        %v2579 = vpow.pop %v2578
        %v2580 = vmul.f32 %v2552, 1.442695
        %v2581 = vpow.pop %v2580
        %v2582 = vmul.f32 %v2553, 1.442695
        %v2583 = vpow.pop %v2582
        %v2584 = vmul.f32 %v2554, 1.442695
        %v2585 = vpow.pop %v2584
        %v2586 = vmul.f32 %v2555, 1.442695
        %v2587 = vpow.pop %v2586
        %v2588 = vadd.f32 %v2557, 1.0
        %v2589 = vadd.f32 %v2559, 1.0
        %v2590 = vadd.f32 %v2561, 1.0
        %v2591 = vadd.f32 %v2563, 1.0
        %v2592 = vadd.f32 %v2565, 1.0
        %v2593 = vadd.f32 %v2567, 1.0
        %v2594 = vadd.f32 %v2569, 1.0
        %v2595 = vadd.f32 %v2571, 1.0
        %v2596 = vadd.f32 %v2573, 1.0
        %v2597 = vadd.f32 %v2575, 1.0
        %v2598 = vadd.f32 %v2577, 1.0
        %v2599 = vadd.f32 %v2579, 1.0
        %v2600 = vadd.f32 %v2581, 1.0
        %v2601 = vadd.f32 %v2583, 1.0
        %v2602 = vadd.f32 %v2585, 1.0
        %v2603 = vadd.f32 %v2587, 1.0
        %v2604 = vrcp.pop %v2588
        %v2605 = vmul.f32 1.0, %v2604
        %v2606 = vrcp.pop %v2589
        %v2607 = vmul.f32 1.0, %v2606
        %v2608 = vrcp.pop %v2590
        %v2609 = vmul.f32 1.0, %v2608
        %v2610 = vrcp.pop %v2591
        %v2611 = vmul.f32 1.0, %v2610
        %v2612 = vrcp.pop %v2592
        %v2613 = vmul.f32 1.0, %v2612
        %v2614 = vrcp.pop %v2593
        %v2615 = vmul.f32 1.0, %v2614
        %v2616 = vrcp.pop %v2594
        %v2617 = vmul.f32 1.0, %v2616
        %v2618 = vrcp.pop %v2595
        %v2619 = vmul.f32 1.0, %v2618
        %v2620 = vrcp.pop %v2596
        %v2621 = vmul.f32 1.0, %v2620
        %v2622 = vrcp.pop %v2597
        %v2623 = vmul.f32 1.0, %v2622
        %v2624 = vrcp.pop %v2598
        %v2625 = vmul.f32 1.0, %v2624
        %v2626 = vrcp.pop %v2599
        %v2627 = vmul.f32 1.0, %v2626
        %v2628 = vrcp.pop %v2600
        %v2629 = vmul.f32 1.0, %v2628
        %v2630 = vrcp.pop %v2601
        %v2631 = vmul.f32 1.0, %v2630
        %v2632 = vrcp.pop %v2602
        %v2633 = vmul.f32 1.0, %v2632
        %v2634 = vrcp.pop %v2603
        %v2635 = vmul.f32 1.0, %v2634
        %v2636 = vmul.f32 %v2462, %v2605
        %v2637 = vmul.f32 %v2467, %v2607
        %v2638 = vmul.f32 %v2472, %v2609
        %v2639 = vmul.f32 %v2477, %v2611
        %v2640 = vmul.f32 %v2482, %v2613
        %v2641 = vmul.f32 %v2487, %v2615
        %v2642 = vmul.f32 %v2492, %v2617
        %v2643 = vmul.f32 %v2497, %v2619
        %v2644 = vmul.f32 %v2502, %v2621
        %v2645 = vmul.f32 %v2507, %v2623
        %v2646 = vmul.f32 %v2512, %v2625
        %v2647 = vmul.f32 %v2517, %v2627
        %v2648 = vmul.f32 %v2522, %v2629
        %v2649 = vmul.f32 %v2527, %v2631
        %v2650 = vmul.f32 %v2532, %v2633
        %v2651 = vmul.f32 %v2537, %v2635
        %v2652 = vld [vmem:[%s14] sm:$0xff]
        %v2653 = vld [vmem:[%s14 + $0x8] sm:$0xff]
        %v2654 = vld [vmem:[%s14 + $0x10] sm:$0xff]
        %v2655 = vld [vmem:[%s14 + $0x18] sm:$0xff]
        %v2656 = vld [vmem:[%s14 + $0x20] sm:$0xff]
        %v2657 = vld [vmem:[%s14 + $0x28] sm:$0xff]
        %v2658 = vld [vmem:[%s14 + $0x30] sm:$0xff]
        %v2659 = vld [vmem:[%s14 + $0x38] sm:$0xff]
        %v2660 = vld [vmem:[%s15] sm:$0x1]
        %v2662 = vlaneseq
        %v2663 = vshrl.u32 %v2662, 7
        %v2664 = vsub.s32 0, %v2663
        %v2665 = vrot.slane %v2660, %v2664
        %v2668 = vsel %vm1564, %v2636, 0
        %v2671 = vsel %vm1564, %v2637, 0
        %v2674 = vsel %vm1564, %v2638, 0
        %v2677 = vsel %vm1564, %v2639, 0
        %v2680 = vsel %vm1564, %v2640, 0
        %v2683 = vsel %vm1564, %v2641, 0
        %v2686 = vsel %vm1564, %v2642, 0
        %v2689 = vsel %vm1564, %v2643, 0
        %v2692 = vsel %vm1564, %v2644, 0
        %v2695 = vsel %vm1564, %v2645, 0
        %v2698 = vsel %vm1564, %v2646, 0
        %v2701 = vsel %vm1564, %v2647, 0
        %v2704 = vsel %vm1564, %v2648, 0
        %v2707 = vsel %vm1564, %v2649, 0
        %v2710 = vsel %vm1564, %v2650, 0
        %v2713 = vsel %vm1564, %v2651, 0
        %2715 = vmatprep.subr.mxu0 0.0
        %2716 = vmatpush1.msra.mxu0 0.0
        %2717 = vmatprep.subr.mxu0 0.0
        %2718 = vmatpush1.msra.mxu0 0.0
        %2719 = vmatprep.subr.mxu0 0.0
        %2720 = vmatpush1.msra.mxu0 0.0
        %2721 = vmatprep.subr.mxu0 0.0
        %2722 = vmatpush1.msra.mxu0 0.0
        %2723 = vmatprep.subr.mxu0 0.0
        %2724 = vmatpush1.msra.mxu0 0.0
        %2725 = vmatprep.subr.mxu0 0.0
        %2726 = vmatpush1.msra.mxu0 0.0
        %2727 = vmatprep.subr.mxu0 0.0
        %2728 = vmatpush1.msra.mxu0 0.0
        %2729 = vmatprep.subr.mxu0 0.0
        %2730 = vmatpush1.msra.mxu0 0.0
        %2731 = vmatprep.subr.mxu0 0.0
        %2732 = vmatpush1.msra.mxu0 %v2659
        %2733 = vmatprep.subr.mxu0 0.0
        %2734 = vmatpush1.msra.mxu0 %v2658
        %2735 = vmatprep.subr.mxu0 0.0
        %2736 = vmatpush1.msra.mxu0 %v2657
        %2737 = vmatprep.subr.mxu0 0.0
        %2738 = vmatpush1.msra.mxu0 %v2656
        %2739 = vmatprep.subr.mxu0 0.0
        %2740 = vmatpush1.msra.mxu0 %v2655
        %2741 = vmatprep.subr.mxu0 0.0
        %2742 = vmatpush1.msra.mxu0 %v2654
        %2743 = vmatprep.subr.mxu0 0.0
        %2744 = vmatpush1.msra.mxu0 %v2653
        %2745 = vmatprep.subr.mxu0 0.0
        %2746 = vmatpush1.msra.mxu0 %v2652
        %2747 = vmatprep.subr.mxu0 0.0
        %2748 = vmatpush2.msra.mxu0 0.0
        %2749 = vmatprep.subr.mxu0 0.0
        %2750 = vmatpush2.msra.mxu0 0.0
        %2751 = vmatprep.subr.mxu0 0.0
        %2752 = vmatpush2.msra.mxu0 0.0
        %2753 = vmatprep.subr.mxu0 0.0
        %2754 = vmatpush2.msra.mxu0 0.0
        %2755 = vmatprep.subr.mxu0 0.0
        %2756 = vmatpush2.msra.mxu0 0.0
        %2757 = vmatprep.subr.mxu0 0.0
        %2758 = vmatpush2.msra.mxu0 0.0
        %2759 = vmatprep.subr.mxu0 0.0
        %2760 = vmatpush2.msra.mxu0 0.0
        %2761 = vmatprep.subr.mxu0 0.0
        %2762 = vmatpush2.msra.mxu0 0.0
        %2763 = vmatprep.subr.mxu0 0.0
        %2764 = vmatpush2.msra.mxu0 0.0
        %2765 = vmatprep.subr.mxu0 0.0
        %2766 = vmatpush2.msra.mxu0 0.0
        %2767 = vmatprep.subr.mxu0 0.0
        %2768 = vmatpush2.msra.mxu0 0.0
        %2769 = vmatprep.subr.mxu0 0.0
        %2770 = vmatpush2.msra.mxu0 0.0
        %2771 = vmatprep.subr.mxu0 0.0
        %2772 = vmatpush2.msra.mxu0 0.0
        %2773 = vmatprep.subr.mxu0 0.0
        %2774 = vmatpush2.msra.mxu0 0.0
        %2775 = vmatprep.subr.mxu0 0.0
        %2776 = vmatpush2.msra.mxu0 0.0
        %2777 = vmatprep.subr.mxu0 0.0
        %2778 = vmatpush2.msra.mxu0 0.0
        %2779 = vmatprep.mubr.f32.mxu0 0.0
        %2780 = vmatmul.mubr.f32.gmra.mxu0 %v2668
        %v2781 = vpop.f32.mrf.mxu0
        %v2782 = vadd.f32 %v2665, %v2781
        %v2783 = vpop.f32.mrf.mxu0
        %2784 = vmatprep.mubr.f32.mxu0 0.0
        %2785 = vmatmul.mubr.f32.gmra.mxu0 %v2671
        %v2786 = vpop.f32.mrf.mxu0
        %v2787 = vadd.f32 %v2665, %v2786
        %v2788 = vpop.f32.mrf.mxu0
        %2789 = vmatprep.mubr.f32.mxu0 0.0
        %2790 = vmatmul.mubr.f32.gmra.mxu0 %v2674
        %v2791 = vpop.f32.mrf.mxu0
        %v2792 = vadd.f32 %v2665, %v2791
        %v2793 = vpop.f32.mrf.mxu0
        %2794 = vmatprep.mubr.f32.mxu0 0.0
        %2795 = vmatmul.mubr.f32.gmra.mxu0 %v2677
        %v2796 = vpop.f32.mrf.mxu0
        %v2797 = vadd.f32 %v2665, %v2796
        %v2798 = vpop.f32.mrf.mxu0
        %2799 = vmatprep.mubr.f32.mxu0 0.0
        %2800 = vmatmul.mubr.f32.gmra.mxu0 %v2680
        %v2801 = vpop.f32.mrf.mxu0
        %v2802 = vadd.f32 %v2665, %v2801
        %v2803 = vpop.f32.mrf.mxu0
        %2804 = vmatprep.mubr.f32.mxu0 0.0
        %2805 = vmatmul.mubr.f32.gmra.mxu0 %v2683
        %v2806 = vpop.f32.mrf.mxu0
        %v2807 = vadd.f32 %v2665, %v2806
        %v2808 = vpop.f32.mrf.mxu0
        %2809 = vmatprep.mubr.f32.mxu0 0.0
        %2810 = vmatmul.mubr.f32.gmra.mxu0 %v2686
        %v2811 = vpop.f32.mrf.mxu0
        %v2812 = vadd.f32 %v2665, %v2811
        %v2813 = vpop.f32.mrf.mxu0
        %2814 = vmatprep.mubr.f32.mxu0 0.0
        %2815 = vmatmul.mubr.f32.gmra.mxu0 %v2689
        %v2816 = vpop.f32.mrf.mxu0
        %v2817 = vadd.f32 %v2665, %v2816
        %v2818 = vpop.f32.mrf.mxu0
        %2819 = vmatprep.mubr.f32.mxu0 0.0
        %2820 = vmatmul.mubr.f32.gmra.mxu0 %v2692
        %v2821 = vpop.f32.mrf.mxu0
        %v2822 = vadd.f32 %v2665, %v2821
        %v2823 = vpop.f32.mrf.mxu0
        %2824 = vmatprep.mubr.f32.mxu0 0.0
        %2825 = vmatmul.mubr.f32.gmra.mxu0 %v2695
        %v2826 = vpop.f32.mrf.mxu0
        %v2827 = vadd.f32 %v2665, %v2826
        %v2828 = vpop.f32.mrf.mxu0
        %2829 = vmatprep.mubr.f32.mxu0 0.0
        %2830 = vmatmul.mubr.f32.gmra.mxu0 %v2698
        %v2831 = vpop.f32.mrf.mxu0
        %v2832 = vadd.f32 %v2665, %v2831
        %v2833 = vpop.f32.mrf.mxu0
        %2834 = vmatprep.mubr.f32.mxu0 0.0
        %2835 = vmatmul.mubr.f32.gmra.mxu0 %v2701
        %v2836 = vpop.f32.mrf.mxu0
        %v2837 = vadd.f32 %v2665, %v2836
        %v2838 = vpop.f32.mrf.mxu0
        %2839 = vmatprep.mubr.f32.mxu0 0.0
        %2840 = vmatmul.mubr.f32.gmra.mxu0 %v2704
        %v2841 = vpop.f32.mrf.mxu0
        %v2842 = vadd.f32 %v2665, %v2841
        %v2843 = vpop.f32.mrf.mxu0
        %2844 = vmatprep.mubr.f32.mxu0 0.0
        %2845 = vmatmul.mubr.f32.gmra.mxu0 %v2707
        %v2846 = vpop.f32.mrf.mxu0
        %v2847 = vadd.f32 %v2665, %v2846
        %v2848 = vpop.f32.mrf.mxu0
        %2849 = vmatprep.mubr.f32.mxu0 0.0
        %2850 = vmatmul.mubr.f32.gmra.mxu0 %v2710
        %v2851 = vpop.f32.mrf.mxu0
        %v2852 = vadd.f32 %v2665, %v2851
        %v2853 = vpop.f32.mrf.mxu0
        %2854 = vmatprep.mubr.f32.mxu0 0.0
        %2855 = vmatmul.mubr.f32.gmra.mxu0 %v2713
        %v2856 = vpop.f32.mrf.mxu0
        %v2857 = vadd.f32 %v2665, %v2856
        %v2858 = vpop.f32.mrf.mxu0
        %2859 = vdwg.mxu0
        %2860 = vst [vmem:[%s639] sm:$0xff] %v2782
        %2861 = vst [vmem:[%s639 + $0x8] sm:$0xff] %v2787
        %2862 = vst [vmem:[%s639 + $0x10] sm:$0xff] %v2792
        %2863 = vst [vmem:[%s639 + $0x18] sm:$0xff] %v2797
        %2864 = vst [vmem:[%s639 + $0x20] sm:$0xff] %v2802
        %2865 = vst [vmem:[%s639 + $0x28] sm:$0xff] %v2807
        %2866 = vst [vmem:[%s639 + $0x30] sm:$0xff] %v2812
        %2867 = vst [vmem:[%s639 + $0x38] sm:$0xff] %v2817
        %2868 = vst [vmem:[%s639 + $0x40] sm:$0xff] %v2822
        %2869 = vst [vmem:[%s639 + $0x48] sm:$0xff] %v2827
        %2870 = vst [vmem:[%s639 + $0x50] sm:$0xff] %v2832
        %2871 = vst [vmem:[%s639 + $0x58] sm:$0xff] %v2837
        %2872 = vst [vmem:[%s639 + $0x60] sm:$0xff] %v2842
        %2873 = vst [vmem:[%s639 + $0x68] sm:$0xff] %v2847
        %2874 = vst [vmem:[%s639 + $0x70] sm:$0xff] %v2852
        %2875 = vst [vmem:[%s639 + $0x78] sm:$0xff] %v2857
      $region96: #{gatgraph_forward.1} parent=83 // pred_fallthru
        _
      %s2876 = smul.u32 16, %s32
      %p2877 = scmp.lt.s32.totalorder %s2876, 15
      %s2878 = scalar_select %p2877, %s2876, 15
      %s2879 = smul.addr %s2878, 8
      %s2880 = scalar_lea.vmem %s16, %s2879
      // Predicated region
      $region97: #{gatgraph_forward.1} parent=83 // pred_check
        %p2881 = pneg %p428
      $region98: #{gatgraph_forward.1} parent=83 // pred_check_branch
        %2883 = sbr.rel (%p2881) target = $region100
      $region99: #{gatgraph_forward.1} parent=83 // pred_region
        %s2884 = smul.u32 16, %s32
      $region100: #{gatgraph_forward.1} parent=83 // pred_fallthru
        _
      // Predicated region
      $region101: #{gatgraph_forward.1} parent=83 // pred_check
        %p2885 = pneg %p428
      $region102: #{gatgraph_forward.1} parent=83 // pred_check_branch
        %2887 = sbr.rel (%p2885) target = $region104
      $region103: #{gatgraph_forward.1} parent=83 // pred_region
        %s2888 = smul.u32 16, %s32
        %p2889 = scmp.lt.s32.totalorder %s2888, 15
        %s2890 = scalar_select %p2889, %s2888, 15
        %s2891 = smul.addr %s2890, 8
        %s2892 = scalar_lea.vmem %s16, %s2891
      $region104: #{gatgraph_forward.1} parent=83 // pred_fallthru
        _
    $region84: #{gatgraph_forward.1} parent=5 // pred_fallthru
      _
    %p2893 = scmp.le.s32.totalorder 2, %s22
    // Predicated region
    $region105: #{gatgraph_forward.1} parent=5 // pred_check
      %p2894 = pneg %p2893
    $region106: #{gatgraph_forward.1} parent=5 // pred_check_branch
      %2896 = sbr.rel (%p2894) target = $region108
    $region107: #{gatgraph_forward.1} parent=5 // pred_region
      %s2897 = ssub.s32 %s22, 2
    $region108: #{gatgraph_forward.1} parent=5 // pred_fallthru
      _
  $region6: #{gatgraph_forward.1} parent=0 // loop_footer
    %s26 = sadd.s32 1, %s22
  $region7: #{gatgraph_forward.1} parent=0 // loop_footer_branch
    %21 = sbr.rel target = $region3
  $region8: #{gatgraph_forward.1} parent=0 // loop_exit
    _

</llo_original>
